<compile_context>
chip_gen: v7x
topology: tpu7x:2x2x1
jax: 0.10.0
libtpu: 0.0.40
codegen_flags: <defaults>
</compile_context>

<pallas_src>
import functools

import jax
import jax.numpy as jnp
import numpy as np
from jax import lax
from jax.experimental import pallas as pl
from jax.experimental.pallas import tpu as pltpu

NF = 128      # fused head width (lane padded): cols 0:3 gate, 3:5 span, rest 0
_NEG = -1e30  # "minus infinity" for masked softmax entries


def dst_kernel(gate_lbl_ref, span_lbl_ref, tvidx_ref,            # SMEM prefetch
               outputs_ref, w_fused_ref, b_fused_ref,
               vclsT_ref, v_inv_ref, tvcls_ref, gw_ref,          # gw: SMEM (3,)
               out_ref, *, margin, bb, l_real, n_values):
    base = pl.program_id(0) * bb
    BB, Lp, H = outputs_ref.shape
    VP = vclsT_ref.shape[1]
    f32 = jnp.float32
    eps = f32(1e-8)

    # ---- ONE fused MXU pass over all BB*Lp tokens (gate cols 0:3, span 3:5) ----
    xfull = outputs_ref[...]                                     # [BB, Lp, H]
    x2 = xfull.reshape(BB * Lp, H)                               # free: Lp % 8 == 0
    logits = (jnp.dot(x2, w_fused_ref[...], preferred_element_type=f32)
              + b_fused_ref[...])                                # [BB*Lp, NF] f32

    # ---- ONE value-head MXU pass over the BB stacked CLS rows ----
    cls_raw = xfull[:, 0, :]                                     # [BB, H]
    dots = jnp.dot(cls_raw, vclsT_ref[...],
                   preferred_element_type=f32)                   # [BB, VP]

    cls = cls_raw.astype(f32)
    tv = tvcls_ref[...][:, 0, :].astype(f32)                     # [BB, H]
    inv_cls = lax.rsqrt(jnp.maximum(jnp.sum(cls * cls, axis=-1, keepdims=True),
                                    eps * eps))                  # [BB, 1]
    inv_tv = lax.rsqrt(jnp.maximum(jnp.sum(tv * tv, axis=-1, keepdims=True),
                                   eps * eps))                   # [BB, 1]
    true_prob = jnp.sum(cls * tv, axis=-1, keepdims=True) * inv_cls * inv_tv
    vprob = dots * inv_cls * v_inv_ref[...]                      # [BB, VP]

    # ---- hoisted iotas / masks (shared by the per-example loop) ----
    lane = lax.broadcasted_iota(jnp.int32, (1, NF), 1)
    rowL = lax.broadcasted_iota(jnp.int32, (Lp, 1), 0)
    colV = lax.broadcasted_iota(jnp.int32, (1, VP), 1)
    gmask = lane < 3
    span_lane = (lane == 3) | (lane == 4)
    row_valid = (rowL > 0) & (rowL < l_real)                     # mask CLS + L-padding
    vprob = jnp.where(colV >= n_values, f32(-1.0), vprob)        # mask lane padding

    for i in range(bb):                                          # bb is small & static
        # ---------------- gate head (token 0, cols 0:3) ----------------
        g_lbl = gate_lbl_ref[base + i]
        grow = logits[i * Lp:i * Lp + 1, :]                      # [1, NF]
        g = jnp.where(gmask, grow, _NEG)
        m_g = jnp.max(g)
        z_g = jnp.sum(jnp.where(gmask, jnp.exp(g - m_g), 0.0))
        logZ_g = m_g + jnp.log(z_g)
        logit_y = jnp.sum(jnp.where(lane == g_lbl, grow, 0.0))
        w_y = gw_ref[g_lbl]                                      # SMEM scalar read
        loss_gate = -w_y * (logit_y - logZ_g)                    # NLL, reduction='none'

        pred = jnp.min(jnp.where(g == m_g, lane, NF))            # first-max argmax
        acc = (pred == g_lbl).astype(f32)
        # TODO(synk): original also zeroes acc when the decoded predicted value
        # tokens mismatch the belief label (tokenizer decode) — not representable.

        # ------ span head (cols 3:5, log_softmax over tokens 1..L-1) ------
        sp = logits[i * Lp:(i + 1) * Lp, :]                      # [Lp, NF]
        s = jnp.where(row_valid, sp, _NEG)
        m_s = jnp.max(s, axis=0, keepdims=True)                  # [1, NF]
        z_s = jnp.sum(jnp.where(row_valid, jnp.exp(s - m_s), 0.0),
                      axis=0, keepdims=True)
        logZ_s = m_s + jnp.log(z_s)                              # [1, NF]
        lbl_s = span_lbl_ref[base + i, 0] + 1                    # labels index 1..L-1
        lbl_e = span_lbl_ref[base + i, 1] + 1
        oh_sp = (((rowL == lbl_s) & (lane == 3)) |
                 ((rowL == lbl_e) & (lane == 4)))                # [Lp, NF]
        logit_sel = jnp.sum(jnp.where(oh_sp, sp, 0.0))
        logZ_sel = jnp.sum(jnp.where(span_lane, logZ_s, 0.0))
        loss_span = logZ_sel - logit_sel

        # ---------------- value head (cosine margin hinge) ----------------
        tvi = tvidx_ref[base + i]
        vp_i = jnp.where(colV == tvi, f32(-1.0), vprob[i:i + 1, :])
        max_vp = jnp.max(vp_i)
        tp_i = jnp.sum(true_prob[i:i + 1, :])
        loss_value = jnp.maximum(f32(0.0), margin - tp_i + max_vp)

        loss = loss_gate + loss_span + loss_value
        # Lane-dense packed output row: lane 0 = loss, lane 1 = acc.
        packed = (jnp.where(lane == 0, loss, 0.0)
                  + jnp.where(lane == 1, acc, 0.0))
        out_ref[i] = packed.astype(f32)


def dst_forward(outputs, w_gate, b_gate, w_span, b_span, gate_label, span_label,
                gate_weight, value_cls, true_value_cls, true_value_mask,
                margin, *, block_b=8, compute_dtype=jnp.bfloat16):
    f32 = jnp.float32
    B, L, H = outputs.shape
    V = value_cls.shape[0]
    VP = max(128, ((V + 127) // 128) * 128)
    Lp = ((L + 7) // 8) * 8                 # sublane-aligned token axis
    bb = max(1, min(int(block_b), B))       # examples per grid step
    Bp = ((B + bb - 1) // bb) * bb
    nblk = Bp // bb
    cdt = compute_dtype

    # ---- padded / restructured operands (wrapper-side, built once) ----
    out_pad = jnp.zeros((Bp, Lp, H), cdt).at[:B, :L, :].set(outputs.astype(cdt))

    w_fused = jnp.zeros((H, NF), cdt)
    w_fused = w_fused.at[:, 0:3].set(w_gate.astype(cdt))
    w_fused = w_fused.at[:, 3:5].set(w_span.astype(cdt))
    b_fused = jnp.zeros((1, NF), f32)
    b_fused = b_fused.at[:, 0:3].set(b_gate.astype(f32).reshape(1, 3))
    b_fused = b_fused.at[:, 3:5].set(b_span.astype(f32).reshape(1, 2))

    vclsT = jnp.zeros((H, VP), cdt).at[:, :V].set(value_cls.T.astype(cdt))
    v_norm = jnp.maximum(jnp.linalg.norm(value_cls.astype(f32), axis=1), 1e-8)
    v_inv = jnp.zeros((1, VP), f32).at[0, :V].set(1.0 / v_norm)

    tvcls = jnp.zeros((Bp, 1, H), cdt).at[:B, 0, :].set(true_value_cls.astype(cdt))

    # Per-example scalars -> SMEM scalar prefetch (no padded VMEM label tiles).
    gate_lbl = jnp.zeros((Bp,), jnp.int32).at[:B].set(
        gate_label.reshape(B).astype(jnp.int32))
    span_lbl = jnp.zeros((Bp, 2), jnp.int32).at[:B, :].set(
        span_label.astype(jnp.int32))
    has_true = jnp.any(true_value_mask != 0, axis=1)
    tv_idx_b = jnp.where(has_true, jnp.argmax(true_value_mask != 0, axis=1), -1)
    tv_idx = jnp.full((Bp,), -1, jnp.int32).at[:B].set(tv_idx_b.astype(jnp.int32))

    gate_w = gate_weight.reshape(-1).astype(f32)                 # (3,) in SMEM

    kernel = functools.partial(dst_kernel, margin=float(margin), bb=bb,
                               l_real=L, n_values=V)

    # Explicit scoped-VMEM budget (v5e default is only 16 MiB).
    dsz = jnp.dtype(cdt).itemsize
    invariant = (H * NF + H * VP) * dsz + (NF + VP) * 4
    per_step = (bb * Lp * H + bb * H) * dsz + bb * NF * 4
    vmem_limit = int(max(16 << 20,
                         min(96 << 20, 2 * invariant + 4 * per_step + (4 << 20))))

    def build_grid_spec(single_buffer):
        kw = dict(pipeline_mode=pl.Buffered(1)) if single_buffer else {}
        in_specs = [
            pl.BlockSpec((bb, Lp, H), lambda b, *_: (b, 0, 0)),        # outputs
            pl.BlockSpec((H, NF), lambda b, *_: (0, 0), **kw),         # fused W
            pl.BlockSpec((1, NF), lambda b, *_: (0, 0), **kw),         # fused bias
            pl.BlockSpec((H, VP), lambda b, *_: (0, 0), **kw),         # value_cls^T
            pl.BlockSpec((1, VP), lambda b, *_: (0, 0), **kw),         # 1/|value_cls|
            pl.BlockSpec((bb, 1, H), lambda b, *_: (b, 0, 0)),         # true-value CLS
            pl.BlockSpec(memory_space=pltpu.MemorySpace.SMEM),         # gate weights
        ]
        return pltpu.PrefetchScalarGridSpec(
            num_scalar_prefetch=3,
            grid=(nblk,),
            in_specs=in_specs,
            out_specs=pl.BlockSpec((bb, 1, NF), lambda b, *_: (b, 0, 0)))

    def run(single_buffer):
        return pl.pallas_call(
            kernel,
            out_shape=jax.ShapeDtypeStruct((Bp, 1, NF), f32),
            grid_spec=build_grid_spec(single_buffer),
            compiler_params=pltpu.CompilerParams(
                dimension_semantics=("parallel",),
                vmem_limit_bytes=vmem_limit),
        )(gate_lbl, span_lbl, tv_idx, out_pad, w_fused, b_fused,
          vclsT, v_inv, tvcls, gate_w)

    try:
        out = run(True)        # single-buffer the grid-invariant operands
    except Exception:          # fallback if Buffered(1) is rejected on this jax
        out = run(False)

    return out[:B, 0, 0], out[:B, 0, 1]


def dst_ref(outputs, w_gate, b_gate, w_span, b_span, gate_label, span_label,
            gate_weight, value_cls, true_value_cls, true_value_mask, margin):
    """Pure-JAX reference matching the PyTorch forward semantics."""
    outputs = outputs.astype(jnp.float32)
    value_cls = value_cls.astype(jnp.float32)
    true_value_cls = true_value_cls.astype(jnp.float32)
    cls = outputs[:, 0, :]
    gate_logp = jax.nn.log_softmax(cls @ w_gate + b_gate[0], axis=1)
    gl = gate_label[:, 0]
    loss_gate = -gate_weight[0][gl] * jnp.take_along_axis(
        gate_logp, gl[:, None], axis=1)[:, 0]

    span_logits = jnp.einsum('blh,hk->blk', outputs[:, 1:, :], w_span) + b_span[0]
    span_logp = jax.nn.log_softmax(span_logits, axis=1)
    loss_span = (-jnp.take_along_axis(span_logp[:, :, 0],
                                      span_label[:, 0:1], axis=1)[:, 0]
                 - jnp.take_along_axis(span_logp[:, :, 1],
                                       span_label[:, 1:2], axis=1)[:, 0])

    eps = 1e-8
    cn = jnp.maximum(jnp.linalg.norm(cls, axis=1, keepdims=True), eps)
    vn = jnp.maximum(jnp.linalg.norm(value_cls, axis=1, keepdims=True), eps)
    tn = jnp.maximum(jnp.linalg.norm(true_value_cls, axis=1, keepdims=True), eps)
    value_probs = (cls @ value_cls.T) / (cn * vn.T)
    true_value_probs = jnp.sum(cls * true_value_cls, axis=1, keepdims=True) / (cn * tn)
    value_probs = jnp.where(true_value_mask != 0, -1.0, value_probs)
    max_vp = jnp.max(value_probs, axis=1, keepdims=True)
    loss_value = jnp.maximum(0.0, margin - true_value_probs + max_vp)[:, 0]

    loss = loss_gate + loss_span + loss_value
    acc = (jnp.argmax(gate_logp, axis=1) == gl).astype(jnp.float32)
    return loss, acc


if __name__ == "__main__":
    B, L, H, V = 8, 8, 32, 5   # batch, tokens (incl. CLS), hidden, ontology size
    margin = 0.4

    key = jax.random.PRNGKey(0)
    keys = jax.random.split(key, 10)

    outputs = jax.random.normal(keys[0], (B, L, H), dtype=jnp.float32)
    w_gate = jax.random.normal(keys[1], (H, 3), dtype=jnp.float32) * 0.05
    b_gate = jax.random.normal(keys[2], (1, 3), dtype=jnp.float32) * 0.01
    w_span = jax.random.normal(keys[3], (H, 2), dtype=jnp.float32) * 0.05
    b_span = jax.random.normal(keys[4], (1, 2), dtype=jnp.float32) * 0.01
    gate_label = jax.random.randint(keys[5], (B, 1), 0, 3, dtype=jnp.int32)
    span_label = jax.random.randint(keys[6], (B, 2), 0, L - 1, dtype=jnp.int32)
    gate_weight = jnp.array([[0.5, 1.0, 1.0]], dtype=jnp.float32)
    value_cls = jax.random.normal(keys[7], (V, H), dtype=jnp.float32)
    true_value_cls = jax.random.normal(keys[8], (B, H), dtype=jnp.float32)
    tvi_demo = jax.random.randint(keys[9], (B,), 0, V, dtype=jnp.int32)
    true_value_mask = (tvi_demo[:, None] ==
                       jnp.arange(V, dtype=jnp.int32)[None, :]).astype(jnp.int32)

    args = (outputs, w_gate, b_gate, w_span, b_span, gate_label, span_label,
            gate_weight, value_cls, true_value_cls, true_value_mask, margin)

    loss_ref, acc_ref = dst_ref(*args)

    # f32 path: tight correctness check (block_b=4 -> grid of 2 blocks).
    loss32, acc32 = dst_forward(*args, block_b=4, compute_dtype=jnp.float32)
    jax.block_until_ready((loss32, acc32))
    np.testing.assert_allclose(np.asarray(loss32), np.asarray(loss_ref),
                               rtol=1e-4, atol=1e-4)
    np.testing.assert_allclose(np.asarray(acc32), np.asarray(acc_ref),
                               rtol=0, atol=0)

    # Default bf16-streaming path (halves HBM traffic): loose check.
    loss_bf, acc_bf = dst_forward(*args, block_b=4)
    jax.block_until_ready((loss_bf, acc_bf))
    assert bool(jnp.all(jnp.isfinite(loss_bf)))
    assert bool(jnp.all(jnp.isfinite(acc_bf)))
    np.testing.assert_allclose(np.asarray(loss_bf), np.asarray(loss_ref),
                               rtol=0.1, atol=0.25)

    print("KERNEL_OK")
</pallas_src>

<mosaic_0001>
module attributes {stable_mosaic.version = 11 : i64} {
  func.func @dst_kernel(%arg0: i32, %arg1: memref<8xi32, #tpu.memory_space<smem>>, %arg2: memref<8x2xi32, #tpu.memory_space<smem>>, %arg3: memref<8xi32, #tpu.memory_space<smem>>, %arg4: memref<4x8x32xf32, #tpu.memory_space<vmem>>, %arg5: memref<32x128xf32, #tpu.memory_space<vmem>>, %arg6: memref<1x128xf32, #tpu.memory_space<vmem>>, %arg7: memref<32x128xf32, #tpu.memory_space<vmem>>, %arg8: memref<1x128xf32, #tpu.memory_space<vmem>>, %arg9: memref<4x1x32xf32, #tpu.memory_space<vmem>>, %arg10: memref<3xf32, #tpu.memory_space<smem>>, %arg11: memref<4x1x128xf32, #tpu.memory_space<vmem>>) attributes {dimension_semantics = [#tpu.dimension_semantics<parallel>], iteration_bounds = array<i64: 2>, scalar_prefetch = 3 : i64, scratch_operands = 0 : i64, tpu.core_type = #tpu.core_type<tc>, window_params = [{transform_indices = @transform_0, window_bounds = array<i64: 4, 8, 32>}, {pipeline_mode = #tpu.pipeline_mode<synchronous>, transform_indices = @transform_1, window_bounds = array<i64: 32, 128>}, {pipeline_mode = #tpu.pipeline_mode<synchronous>, transform_indices = @transform_2, window_bounds = array<i64: 1, 128>}, {pipeline_mode = #tpu.pipeline_mode<synchronous>, transform_indices = @transform_3, window_bounds = array<i64: 32, 128>}, {pipeline_mode = #tpu.pipeline_mode<synchronous>, transform_indices = @transform_4, window_bounds = array<i64: 1, 128>}, {transform_indices = @transform_5, window_bounds = array<i64: 4, 1, 32>}, {transform_indices = @transform_6, window_bounds = array<i64: 3>}, {transform_indices = @transform_7, window_bounds = array<i64: 4, 1, 128>}]} {
    %c4_i32 = arith.constant 4 : i32
    %0 = arith.muli %arg0, %c4_i32 : i32
    %c0 = arith.constant 0 : index
    %c0_0 = arith.constant 0 : index
    %c0_1 = arith.constant 0 : index
    %1 = vector.load %arg4[%c0, %c0_0, %c0_1] : memref<4x8x32xf32, #tpu.memory_space<vmem>>, vector<4x8x32xf32>
    %2 = vector.shape_cast %1 : vector<4x8x32xf32> to vector<32x32xf32>
    %c0_2 = arith.constant 0 : index
    %c0_3 = arith.constant 0 : index
    %3 = vector.load %arg5[%c0_2, %c0_3] : memref<32x128xf32, #tpu.memory_space<vmem>>, vector<32x128xf32>
    %cst = arith.constant dense<0.000000e+00> : vector<32x128xf32>
    %4 = tpu.matmul %2, %3, %cst {dimension_numbers = #tpu.dot_dimension_numbers<[1], [0], [0], [1], [0, 0, 1, 1], [], []>} : vector<32x32xf32>, vector<32x128xf32>, vector<32x128xf32> -> vector<32x128xf32>
    %c0_4 = arith.constant 0 : index
    %c0_5 = arith.constant 0 : index
    %5 = vector.load %arg6[%c0_4, %c0_5] : memref<1x128xf32, #tpu.memory_space<vmem>>, vector<1x128xf32>
    %6 = vector.broadcast %5 : vector<1x128xf32> to vector<32x128xf32>
    %7 = arith.addf %4, %6 : vector<32x128xf32>
    %8 = vector.extract_strided_slice %1 {offsets = [0, 0, 0], sizes = [4, 1, 32], strides = [1, 1, 1]} : vector<4x8x32xf32> to vector<4x1x32xf32>
    %9 = vector.shape_cast %8 : vector<4x1x32xf32> to vector<4x32xf32>
    %c0_6 = arith.constant 0 : index
    %c0_7 = arith.constant 0 : index
    %10 = vector.load %arg7[%c0_6, %c0_7] : memref<32x128xf32, #tpu.memory_space<vmem>>, vector<32x128xf32>
    %cst_8 = arith.constant dense<0.000000e+00> : vector<4x128xf32>
    %11 = tpu.matmul %9, %10, %cst_8 {dimension_numbers = #tpu.dot_dimension_numbers<[1], [0], [0], [1], [0, 0, 1, 1], [], []>} : vector<4x32xf32>, vector<32x128xf32>, vector<4x128xf32> -> vector<4x128xf32>
    %c0_9 = arith.constant 0 : index
    %c0_10 = arith.constant 0 : index
    %c0_11 = arith.constant 0 : index
    %12 = vector.load %arg9[%c0_9, %c0_10, %c0_11] : memref<4x1x32xf32, #tpu.memory_space<vmem>>, vector<4x1x32xf32>
    %13 = vector.shape_cast %12 : vector<4x1x32xf32> to vector<4x32xf32>
    %14 = arith.mulf %9, %9 : vector<4x32xf32>
    %cst_12 = arith.constant dense<0.000000e+00> : vector<4xf32>
    %15 = vector.multi_reduction <add>, %14, %cst_12 [1] : vector<4x32xf32> to vector<4xf32>
    %16 = vector.shape_cast %15 : vector<4xf32> to vector<4x1xf32>
    %cst_13 = arith.constant 9.99999993E-9 : f32
    %cst_14 = arith.constant 9.99999993E-9 : f32
    %17 = arith.mulf %cst_13, %cst_14 : f32
    %18 = vector.broadcast %17 : f32 to vector<4x1xf32>
    %19 = arith.maximumf %16, %18 : vector<4x1xf32>
    %20 = math.rsqrt %19 : vector<4x1xf32>
    %21 = arith.mulf %13, %13 : vector<4x32xf32>
    %cst_15 = arith.constant dense<0.000000e+00> : vector<4xf32>
    %22 = vector.multi_reduction <add>, %21, %cst_15 [1] : vector<4x32xf32> to vector<4xf32>
    %23 = vector.shape_cast %22 : vector<4xf32> to vector<4x1xf32>
    %cst_16 = arith.constant 9.99999993E-9 : f32
    %cst_17 = arith.constant 9.99999993E-9 : f32
    %24 = arith.mulf %cst_16, %cst_17 : f32
    %25 = vector.broadcast %24 : f32 to vector<4x1xf32>
    %26 = arith.maximumf %23, %25 : vector<4x1xf32>
    %27 = math.rsqrt %26 : vector<4x1xf32>
    %28 = arith.mulf %9, %13 : vector<4x32xf32>
    %cst_18 = arith.constant dense<0.000000e+00> : vector<4xf32>
    %29 = vector.multi_reduction <add>, %28, %cst_18 [1] : vector<4x32xf32> to vector<4xf32>
    %30 = vector.shape_cast %29 : vector<4xf32> to vector<4x1xf32>
    %31 = arith.mulf %30, %20 : vector<4x1xf32>
    %32 = arith.mulf %31, %27 : vector<4x1xf32>
    %33 = vector.broadcast %20 : vector<4x1xf32> to vector<4x128xf32>
    %34 = arith.mulf %11, %33 : vector<4x128xf32>
    %c0_19 = arith.constant 0 : index
    %c0_20 = arith.constant 0 : index
    %35 = vector.load %arg8[%c0_19, %c0_20] : memref<1x128xf32, #tpu.memory_space<vmem>>, vector<1x128xf32>
    %36 = vector.broadcast %35 : vector<1x128xf32> to vector<4x128xf32>
    %37 = arith.mulf %34, %36 : vector<4x128xf32>
    %38 = tpu.iota {dimensions = array<i32: 1>} : vector<1x128xi32>
    %39 = tpu.iota {dimensions = array<i32: 0>} : vector<8x1xi32>
    %40 = tpu.iota {dimensions = array<i32: 1>} : vector<1x128xi32>
    %c3_i32 = arith.constant 3 : i32
    %41 = vector.broadcast %c3_i32 : i32 to vector<1x128xi32>
    %42 = arith.cmpi slt, %38, %41 : vector<1x128xi32>
    %c3_i32_21 = arith.constant 3 : i32
    %43 = vector.broadcast %c3_i32_21 : i32 to vector<1x128xi32>
    %44 = arith.cmpi eq, %38, %43 : vector<1x128xi32>
    %c4_i32_22 = arith.constant 4 : i32
    %45 = vector.broadcast %c4_i32_22 : i32 to vector<1x128xi32>
    %46 = arith.cmpi eq, %38, %45 : vector<1x128xi32>
    %47 = arith.ori %44, %46 : vector<1x128xi1>
    %c0_i32 = arith.constant 0 : i32
    %48 = vector.broadcast %c0_i32 : i32 to vector<8x1xi32>
    %49 = arith.cmpi sgt, %39, %48 : vector<8x1xi32>
    %c8_i32 = arith.constant 8 : i32
    %50 = vector.broadcast %c8_i32 : i32 to vector<8x1xi32>
    %51 = arith.cmpi slt, %39, %50 : vector<8x1xi32>
    %52 = arith.andi %49, %51 : vector<8x1xi1>
    %c5_i32 = arith.constant 5 : i32
    %53 = vector.broadcast %c5_i32 : i32 to vector<1x128xi32>
    %54 = arith.cmpi sge, %40, %53 : vector<1x128xi32>
    %cst_23 = arith.constant -1.000000e+00 : f32
    %55 = vector.shape_cast %54 : vector<1x128xi1> to vector<1x128xi1>
    %56 = vector.broadcast %55 : vector<1x128xi1> to vector<4x128xi1>
    %57 = vector.broadcast %cst_23 : f32 to vector<4x128xf32>
    %58 = arith.select %56, %57, %37 : vector<4x128xi1>, vector<4x128xf32>
    %c0_i32_24 = arith.constant 0 : i32
    %59 = arith.addi %0, %c0_i32_24 : i32
    %60 = arith.index_cast %59 : i32 to index
    %61 = memref.load %arg1[%60] : memref<8xi32, #tpu.memory_space<smem>>
    %62 = vector.extract_strided_slice %7 {offsets = [0, 0], sizes = [1, 128], strides = [1, 1]} : vector<32x128xf32> to vector<1x128xf32>
    %cst_25 = arith.constant -1.000000e+30 : f32
    %63 = vector.broadcast %cst_25 : f32 to vector<1x128xf32>
    %64 = arith.select %42, %62, %63 : vector<1x128xi1>, vector<1x128xf32>
    %65 = vector.shape_cast %64 : vector<1x128xf32> to vector<1x1x128xf32>
    %cst_26 = arith.constant dense<0xFF800000> : vector<1xf32>
    %66 = vector.multi_reduction <maximumf>, %65, %cst_26 [1, 2] : vector<1x1x128xf32> to vector<1xf32>
    %67 = vector.shape_cast %66 : vector<1xf32> to vector<1x1x1xf32>
    %68 = vector.extract %67[0, 0, 0] : f32 from vector<1x1x1xf32>
    %69 = vector.broadcast %68 : f32 to vector<1x128xf32>
    %70 = arith.subf %64, %69 : vector<1x128xf32>
    %71 = math.exp %70 : vector<1x128xf32>
    %cst_27 = arith.constant 0.000000e+00 : f32
    %72 = vector.broadcast %cst_27 : f32 to vector<1x128xf32>
    %73 = arith.select %42, %71, %72 : vector<1x128xi1>, vector<1x128xf32>
    %74 = vector.shape_cast %73 : vector<1x128xf32> to vector<1x1x128xf32>
    %cst_28 = arith.constant dense<0.000000e+00> : vector<1xf32>
    %75 = vector.multi_reduction <add>, %74, %cst_28 [1, 2] : vector<1x1x128xf32> to vector<1xf32>
    %76 = vector.shape_cast %75 : vector<1xf32> to vector<1x1x1xf32>
    %77 = vector.extract %76[0, 0, 0] : f32 from vector<1x1x1xf32>
    %78 = math.log %77 : f32
    %79 = arith.addf %68, %78 : f32
    %80 = vector.broadcast %61 : i32 to vector<1x128xi32>
    %81 = arith.cmpi eq, %38, %80 : vector<1x128xi32>
    %cst_29 = arith.constant 0.000000e+00 : f32
    %82 = vector.broadcast %cst_29 : f32 to vector<1x128xf32>
    %83 = arith.select %81, %62, %82 : vector<1x128xi1>, vector<1x128xf32>
    %84 = vector.shape_cast %83 : vector<1x128xf32> to vector<1x1x128xf32>
    %cst_30 = arith.constant dense<0.000000e+00> : vector<1xf32>
    %85 = vector.multi_reduction <add>, %84, %cst_30 [1, 2] : vector<1x1x128xf32> to vector<1xf32>
    %86 = vector.shape_cast %85 : vector<1xf32> to vector<1x1x1xf32>
    %87 = vector.extract %86[0, 0, 0] : f32 from vector<1x1x1xf32>
    %88 = arith.index_cast %61 : i32 to index
    %89 = memref.load %arg10[%88] : memref<3xf32, #tpu.memory_space<smem>>
    %cst_31 = arith.constant 0.000000e+00 : f32
    %90 = arith.subf %cst_31, %89 : f32
    %91 = arith.subf %87, %79 : f32
    %92 = arith.mulf %90, %91 : f32
    %93 = vector.broadcast %68 : f32 to vector<1x128xf32>
    %94 = arith.cmpf oeq, %64, %93 : vector<1x128xf32>
    %c128_i32 = arith.constant 128 : i32
    %95 = vector.broadcast %c128_i32 : i32 to vector<1x128xi32>
    %96 = arith.select %94, %38, %95 : vector<1x128xi1>, vector<1x128xi32>
    %97 = vector.shape_cast %96 : vector<1x128xi32> to vector<1x1x128xi32>
    %cst_32 = arith.constant dense<2147483647> : vector<1xi32>
    %98 = vector.multi_reduction <minsi>, %97, %cst_32 [1, 2] : vector<1x1x128xi32> to vector<1xi32>
    %99 = vector.shape_cast %98 : vector<1xi32> to vector<1x1x1xi32>
    %100 = vector.extract %99[0, 0, 0] : i32 from vector<1x1x1xi32>
    %101 = arith.cmpi eq, %100, %61 : i32
    %102 = arith.extui %101 : i1 to i32
    %103 = arith.sitofp %102 : i32 to f32
    %104 = vector.extract_strided_slice %7 {offsets = [0, 0], sizes = [8, 128], strides = [1, 1]} : vector<32x128xf32> to vector<8x128xf32>
    %cst_33 = arith.constant -1.000000e+30 : f32
    %105 = vector.shape_cast %52 : vector<8x1xi1> to vector<8x1xi1>
    %106 = vector.broadcast %105 : vector<8x1xi1> to vector<8x128xi1>
    %107 = vector.broadcast %cst_33 : f32 to vector<8x128xf32>
    %108 = arith.select %106, %104, %107 : vector<8x128xi1>, vector<8x128xf32>
    %cst_34 = arith.constant dense<0xFF800000> : vector<128xf32>
    %109 = vector.multi_reduction <maximumf>, %108, %cst_34 [0] : vector<8x128xf32> to vector<128xf32>
    %110 = vector.shape_cast %109 : vector<128xf32> to vector<1x128xf32>
    %111 = vector.broadcast %110 : vector<1x128xf32> to vector<8x128xf32>
    %112 = arith.subf %108, %111 : vector<8x128xf32>
    %113 = math.exp %112 : vector<8x128xf32>
    %cst_35 = arith.constant 0.000000e+00 : f32
    %114 = vector.shape_cast %52 : vector<8x1xi1> to vector<8x1xi1>
    %115 = vector.broadcast %114 : vector<8x1xi1> to vector<8x128xi1>
    %116 = vector.broadcast %cst_35 : f32 to vector<8x128xf32>
    %117 = arith.select %115, %113, %116 : vector<8x128xi1>, vector<8x128xf32>
    %cst_36 = arith.constant dense<0.000000e+00> : vector<128xf32>
    %118 = vector.multi_reduction <add>, %117, %cst_36 [0] : vector<8x128xf32> to vector<128xf32>
    %119 = vector.shape_cast %118 : vector<128xf32> to vector<1x128xf32>
    %120 = math.log %119 : vector<1x128xf32>
    %121 = arith.addf %110, %120 : vector<1x128xf32>
    %c0_i32_37 = arith.constant 0 : i32
    %122 = arith.addi %0, %c0_i32_37 : i32
    %123 = arith.index_cast %122 : i32 to index
    %c0_38 = arith.constant 0 : index
    %124 = memref.load %arg2[%123, %c0_38] : memref<8x2xi32, #tpu.memory_space<smem>>
    %c1_i32 = arith.constant 1 : i32
    %125 = arith.addi %124, %c1_i32 : i32
    %c0_i32_39 = arith.constant 0 : i32
    %126 = arith.addi %0, %c0_i32_39 : i32
    %127 = arith.index_cast %126 : i32 to index
    %c1 = arith.constant 1 : index
    %128 = memref.load %arg2[%127, %c1] : memref<8x2xi32, #tpu.memory_space<smem>>
    %c1_i32_40 = arith.constant 1 : i32
    %129 = arith.addi %128, %c1_i32_40 : i32
    %130 = vector.broadcast %125 : i32 to vector<8x1xi32>
    %131 = arith.cmpi eq, %39, %130 : vector<8x1xi32>
    %c3_i32_41 = arith.constant 3 : i32
    %132 = vector.broadcast %c3_i32_41 : i32 to vector<1x128xi32>
    %133 = arith.cmpi eq, %38, %132 : vector<1x128xi32>
    %134 = vector.broadcast %131 : vector<8x1xi1> to vector<8x128xi1>
    %135 = vector.broadcast %133 : vector<1x128xi1> to vector<8x128xi1>
    %136 = arith.andi %134, %135 : vector<8x128xi1>
    %137 = vector.broadcast %129 : i32 to vector<8x1xi32>
    %138 = arith.cmpi eq, %39, %137 : vector<8x1xi32>
    %c4_i32_42 = arith.constant 4 : i32
    %139 = vector.broadcast %c4_i32_42 : i32 to vector<1x128xi32>
    %140 = arith.cmpi eq, %38, %139 : vector<1x128xi32>
    %141 = vector.broadcast %138 : vector<8x1xi1> to vector<8x128xi1>
    %142 = vector.broadcast %140 : vector<1x128xi1> to vector<8x128xi1>
    %143 = arith.andi %141, %142 : vector<8x128xi1>
    %144 = arith.ori %136, %143 : vector<8x128xi1>
    %cst_43 = arith.constant 0.000000e+00 : f32
    %145 = vector.broadcast %cst_43 : f32 to vector<8x128xf32>
    %146 = arith.select %144, %104, %145 : vector<8x128xi1>, vector<8x128xf32>
    %147 = vector.shape_cast %146 : vector<8x128xf32> to vector<1x8x128xf32>
    %cst_44 = arith.constant dense<0.000000e+00> : vector<1xf32>
    %148 = vector.multi_reduction <add>, %147, %cst_44 [1, 2] : vector<1x8x128xf32> to vector<1xf32>
    %149 = vector.shape_cast %148 : vector<1xf32> to vector<1x1x1xf32>
    %150 = vector.extract %149[0, 0, 0] : f32 from vector<1x1x1xf32>
    %cst_45 = arith.constant 0.000000e+00 : f32
    %151 = vector.broadcast %cst_45 : f32 to vector<1x128xf32>
    %152 = arith.select %47, %121, %151 : vector<1x128xi1>, vector<1x128xf32>
    %153 = vector.shape_cast %152 : vector<1x128xf32> to vector<1x1x128xf32>
    %cst_46 = arith.constant dense<0.000000e+00> : vector<1xf32>
    %154 = vector.multi_reduction <add>, %153, %cst_46 [1, 2] : vector<1x1x128xf32> to vector<1xf32>
    %155 = vector.shape_cast %154 : vector<1xf32> to vector<1x1x1xf32>
    %156 = vector.extract %155[0, 0, 0] : f32 from vector<1x1x1xf32>
    %157 = arith.subf %156, %150 : f32
    %c0_i32_47 = arith.constant 0 : i32
    %158 = arith.addi %0, %c0_i32_47 : i32
    %159 = arith.index_cast %158 : i32 to index
    %160 = memref.load %arg3[%159] : memref<8xi32, #tpu.memory_space<smem>>
    %161 = vector.broadcast %160 : i32 to vector<1x128xi32>
    %162 = arith.cmpi eq, %40, %161 : vector<1x128xi32>
    %163 = vector.extract_strided_slice %58 {offsets = [0, 0], sizes = [1, 128], strides = [1, 1]} : vector<4x128xf32> to vector<1x128xf32>
    %cst_48 = arith.constant -1.000000e+00 : f32
    %164 = vector.broadcast %cst_48 : f32 to vector<1x128xf32>
    %165 = arith.select %162, %164, %163 : vector<1x128xi1>, vector<1x128xf32>
    %166 = vector.shape_cast %165 : vector<1x128xf32> to vector<1x1x128xf32>
    %cst_49 = arith.constant dense<0xFF800000> : vector<1xf32>
    %167 = vector.multi_reduction <maximumf>, %166, %cst_49 [1, 2] : vector<1x1x128xf32> to vector<1xf32>
    %168 = vector.shape_cast %167 : vector<1xf32> to vector<1x1x1xf32>
    %169 = vector.extract %168[0, 0, 0] : f32 from vector<1x1x1xf32>
    %170 = vector.extract_strided_slice %32 {offsets = [0, 0], sizes = [1, 1], strides = [1, 1]} : vector<4x1xf32> to vector<1x1xf32>
    %171 = vector.shape_cast %170 : vector<1x1xf32> to vector<1x1x1xf32>
    %cst_50 = arith.constant dense<0.000000e+00> : vector<1xf32>
    %172 = vector.multi_reduction <add>, %171, %cst_50 [1, 2] : vector<1x1x1xf32> to vector<1xf32>
    %173 = vector.shape_cast %172 : vector<1xf32> to vector<1x1x1xf32>
    %174 = vector.extract %173[0, 0, 0] : f32 from vector<1x1x1xf32>
    %cst_51 = arith.constant 4.000000e-01 : f32
    %175 = arith.subf %cst_51, %174 : f32
    %176 = arith.addf %175, %169 : f32
    %cst_52 = arith.constant 0.000000e+00 : f32
    %177 = arith.maximumf %cst_52, %176 : f32
    %178 = arith.addf %92, %157 : f32
    %179 = arith.addf %178, %177 : f32
    %c0_i32_53 = arith.constant 0 : i32
    %180 = vector.broadcast %c0_i32_53 : i32 to vector<1x128xi32>
    %181 = arith.cmpi eq, %38, %180 : vector<1x128xi32>
    %cst_54 = arith.constant 0.000000e+00 : f32
    %182 = vector.broadcast %179 : f32 to vector<1x128xf32>
    %183 = vector.broadcast %cst_54 : f32 to vector<1x128xf32>
    %184 = arith.select %181, %182, %183 : vector<1x128xi1>, vector<1x128xf32>
    %c1_i32_55 = arith.constant 1 : i32
    %185 = vector.broadcast %c1_i32_55 : i32 to vector<1x128xi32>
    %186 = arith.cmpi eq, %38, %185 : vector<1x128xi32>
    %cst_56 = arith.constant 0.000000e+00 : f32
    %187 = vector.broadcast %103 : f32 to vector<1x128xf32>
    %188 = vector.broadcast %cst_56 : f32 to vector<1x128xf32>
    %189 = arith.select %186, %187, %188 : vector<1x128xi1>, vector<1x128xf32>
    %190 = arith.addf %184, %189 : vector<1x128xf32>
    %c0_57 = arith.constant 0 : index
    %c0_58 = arith.constant 0 : index
    %c0_59 = arith.constant 0 : index
    %191 = vector.load %arg11[%c0_57, %c0_58, %c0_59] : memref<4x1x128xf32, #tpu.memory_space<vmem>>, vector<1x1x128xf32>
    %192 = vector.shape_cast %191 : vector<1x1x128xf32> to vector<1x128xf32>
    %193 = vector.shape_cast %190 : vector<1x128xf32> to vector<1x1x128xf32>
    tpu.vector_store %arg11[%c0_57, %c0_58, %c0_59], %193 {strides = array<i32>} : memref<4x1x128xf32, #tpu.memory_space<vmem>>, vector<1x1x128xf32>,
    %c1_i32_60 = arith.constant 1 : i32
    %194 = arith.addi %0, %c1_i32_60 : i32
    %195 = arith.index_cast %194 : i32 to index
    %196 = memref.load %arg1[%195] : memref<8xi32, #tpu.memory_space<smem>>
    %197 = vector.extract_strided_slice %7 {offsets = [8, 0], sizes = [1, 128], strides = [1, 1]} : vector<32x128xf32> to vector<1x128xf32>
    %cst_61 = arith.constant -1.000000e+30 : f32
    %198 = vector.broadcast %cst_61 : f32 to vector<1x128xf32>
    %199 = arith.select %42, %197, %198 : vector<1x128xi1>, vector<1x128xf32>
    %200 = vector.shape_cast %199 : vector<1x128xf32> to vector<1x1x128xf32>
    %cst_62 = arith.constant dense<0xFF800000> : vector<1xf32>
    %201 = vector.multi_reduction <maximumf>, %200, %cst_62 [1, 2] : vector<1x1x128xf32> to vector<1xf32>
    %202 = vector.shape_cast %201 : vector<1xf32> to vector<1x1x1xf32>
    %203 = vector.extract %202[0, 0, 0] : f32 from vector<1x1x1xf32>
    %204 = vector.broadcast %203 : f32 to vector<1x128xf32>
    %205 = arith.subf %199, %204 : vector<1x128xf32>
    %206 = math.exp %205 : vector<1x128xf32>
    %cst_63 = arith.constant 0.000000e+00 : f32
    %207 = vector.broadcast %cst_63 : f32 to vector<1x128xf32>
    %208 = arith.select %42, %206, %207 : vector<1x128xi1>, vector<1x128xf32>
    %209 = vector.shape_cast %208 : vector<1x128xf32> to vector<1x1x128xf32>
    %cst_64 = arith.constant dense<0.000000e+00> : vector<1xf32>
    %210 = vector.multi_reduction <add>, %209, %cst_64 [1, 2] : vector<1x1x128xf32> to vector<1xf32>
    %211 = vector.shape_cast %210 : vector<1xf32> to vector<1x1x1xf32>
    %212 = vector.extract %211[0, 0, 0] : f32 from vector<1x1x1xf32>
    %213 = math.log %212 : f32
    %214 = arith.addf %203, %213 : f32
    %215 = vector.broadcast %196 : i32 to vector<1x128xi32>
    %216 = arith.cmpi eq, %38, %215 : vector<1x128xi32>
    %cst_65 = arith.constant 0.000000e+00 : f32
    %217 = vector.broadcast %cst_65 : f32 to vector<1x128xf32>
    %218 = arith.select %216, %197, %217 : vector<1x128xi1>, vector<1x128xf32>
    %219 = vector.shape_cast %218 : vector<1x128xf32> to vector<1x1x128xf32>
    %cst_66 = arith.constant dense<0.000000e+00> : vector<1xf32>
    %220 = vector.multi_reduction <add>, %219, %cst_66 [1, 2] : vector<1x1x128xf32> to vector<1xf32>
    %221 = vector.shape_cast %220 : vector<1xf32> to vector<1x1x1xf32>
    %222 = vector.extract %221[0, 0, 0] : f32 from vector<1x1x1xf32>
    %223 = arith.index_cast %196 : i32 to index
    %224 = memref.load %arg10[%223] : memref<3xf32, #tpu.memory_space<smem>>
    %cst_67 = arith.constant 0.000000e+00 : f32
    %225 = arith.subf %cst_67, %224 : f32
    %226 = arith.subf %222, %214 : f32
    %227 = arith.mulf %225, %226 : f32
    %228 = vector.broadcast %203 : f32 to vector<1x128xf32>
    %229 = arith.cmpf oeq, %199, %228 : vector<1x128xf32>
    %c128_i32_68 = arith.constant 128 : i32
    %230 = vector.broadcast %c128_i32_68 : i32 to vector<1x128xi32>
    %231 = arith.select %229, %38, %230 : vector<1x128xi1>, vector<1x128xi32>
    %232 = vector.shape_cast %231 : vector<1x128xi32> to vector<1x1x128xi32>
    %cst_69 = arith.constant dense<2147483647> : vector<1xi32>
    %233 = vector.multi_reduction <minsi>, %232, %cst_69 [1, 2] : vector<1x1x128xi32> to vector<1xi32>
    %234 = vector.shape_cast %233 : vector<1xi32> to vector<1x1x1xi32>
    %235 = vector.extract %234[0, 0, 0] : i32 from vector<1x1x1xi32>
    %236 = arith.cmpi eq, %235, %196 : i32
    %237 = arith.extui %236 : i1 to i32
    %238 = arith.sitofp %237 : i32 to f32
    %239 = vector.extract_strided_slice %7 {offsets = [8, 0], sizes = [8, 128], strides = [1, 1]} : vector<32x128xf32> to vector<8x128xf32>
    %cst_70 = arith.constant -1.000000e+30 : f32
    %240 = vector.shape_cast %52 : vector<8x1xi1> to vector<8x1xi1>
    %241 = vector.broadcast %240 : vector<8x1xi1> to vector<8x128xi1>
    %242 = vector.broadcast %cst_70 : f32 to vector<8x128xf32>
    %243 = arith.select %241, %239, %242 : vector<8x128xi1>, vector<8x128xf32>
    %cst_71 = arith.constant dense<0xFF800000> : vector<128xf32>
    %244 = vector.multi_reduction <maximumf>, %243, %cst_71 [0] : vector<8x128xf32> to vector<128xf32>
    %245 = vector.shape_cast %244 : vector<128xf32> to vector<1x128xf32>
    %246 = vector.broadcast %245 : vector<1x128xf32> to vector<8x128xf32>
    %247 = arith.subf %243, %246 : vector<8x128xf32>
    %248 = math.exp %247 : vector<8x128xf32>
    %cst_72 = arith.constant 0.000000e+00 : f32
    %249 = vector.shape_cast %52 : vector<8x1xi1> to vector<8x1xi1>
    %250 = vector.broadcast %249 : vector<8x1xi1> to vector<8x128xi1>
    %251 = vector.broadcast %cst_72 : f32 to vector<8x128xf32>
    %252 = arith.select %250, %248, %251 : vector<8x128xi1>, vector<8x128xf32>
    %cst_73 = arith.constant dense<0.000000e+00> : vector<128xf32>
    %253 = vector.multi_reduction <add>, %252, %cst_73 [0] : vector<8x128xf32> to vector<128xf32>
    %254 = vector.shape_cast %253 : vector<128xf32> to vector<1x128xf32>
    %255 = math.log %254 : vector<1x128xf32>
    %256 = arith.addf %245, %255 : vector<1x128xf32>
    %c1_i32_74 = arith.constant 1 : i32
    %257 = arith.addi %0, %c1_i32_74 : i32
    %258 = arith.index_cast %257 : i32 to index
    %c0_75 = arith.constant 0 : index
    %259 = memref.load %arg2[%258, %c0_75] : memref<8x2xi32, #tpu.memory_space<smem>>
    %c1_i32_76 = arith.constant 1 : i32
    %260 = arith.addi %259, %c1_i32_76 : i32
    %c1_i32_77 = arith.constant 1 : i32
    %261 = arith.addi %0, %c1_i32_77 : i32
    %262 = arith.index_cast %261 : i32 to index
    %c1_78 = arith.constant 1 : index
    %263 = memref.load %arg2[%262, %c1_78] : memref<8x2xi32, #tpu.memory_space<smem>>
    %c1_i32_79 = arith.constant 1 : i32
    %264 = arith.addi %263, %c1_i32_79 : i32
    %265 = vector.broadcast %260 : i32 to vector<8x1xi32>
    %266 = arith.cmpi eq, %39, %265 : vector<8x1xi32>
    %c3_i32_80 = arith.constant 3 : i32
    %267 = vector.broadcast %c3_i32_80 : i32 to vector<1x128xi32>
    %268 = arith.cmpi eq, %38, %267 : vector<1x128xi32>
    %269 = vector.broadcast %266 : vector<8x1xi1> to vector<8x128xi1>
    %270 = vector.broadcast %268 : vector<1x128xi1> to vector<8x128xi1>
    %271 = arith.andi %269, %270 : vector<8x128xi1>
    %272 = vector.broadcast %264 : i32 to vector<8x1xi32>
    %273 = arith.cmpi eq, %39, %272 : vector<8x1xi32>
    %c4_i32_81 = arith.constant 4 : i32
    %274 = vector.broadcast %c4_i32_81 : i32 to vector<1x128xi32>
    %275 = arith.cmpi eq, %38, %274 : vector<1x128xi32>
    %276 = vector.broadcast %273 : vector<8x1xi1> to vector<8x128xi1>
    %277 = vector.broadcast %275 : vector<1x128xi1> to vector<8x128xi1>
    %278 = arith.andi %276, %277 : vector<8x128xi1>
    %279 = arith.ori %271, %278 : vector<8x128xi1>
    %cst_82 = arith.constant 0.000000e+00 : f32
    %280 = vector.broadcast %cst_82 : f32 to vector<8x128xf32>
    %281 = arith.select %279, %239, %280 : vector<8x128xi1>, vector<8x128xf32>
    %282 = vector.shape_cast %281 : vector<8x128xf32> to vector<1x8x128xf32>
    %cst_83 = arith.constant dense<0.000000e+00> : vector<1xf32>
    %283 = vector.multi_reduction <add>, %282, %cst_83 [1, 2] : vector<1x8x128xf32> to vector<1xf32>
    %284 = vector.shape_cast %283 : vector<1xf32> to vector<1x1x1xf32>
    %285 = vector.extract %284[0, 0, 0] : f32 from vector<1x1x1xf32>
    %cst_84 = arith.constant 0.000000e+00 : f32
    %286 = vector.broadcast %cst_84 : f32 to vector<1x128xf32>
    %287 = arith.select %47, %256, %286 : vector<1x128xi1>, vector<1x128xf32>
    %288 = vector.shape_cast %287 : vector<1x128xf32> to vector<1x1x128xf32>
    %cst_85 = arith.constant dense<0.000000e+00> : vector<1xf32>
    %289 = vector.multi_reduction <add>, %288, %cst_85 [1, 2] : vector<1x1x128xf32> to vector<1xf32>
    %290 = vector.shape_cast %289 : vector<1xf32> to vector<1x1x1xf32>
    %291 = vector.extract %290[0, 0, 0] : f32 from vector<1x1x1xf32>
    %292 = arith.subf %291, %285 : f32
    %c1_i32_86 = arith.constant 1 : i32
    %293 = arith.addi %0, %c1_i32_86 : i32
    %294 = arith.index_cast %293 : i32 to index
    %295 = memref.load %arg3[%294] : memref<8xi32, #tpu.memory_space<smem>>
    %296 = vector.broadcast %295 : i32 to vector<1x128xi32>
    %297 = arith.cmpi eq, %40, %296 : vector<1x128xi32>
    %298 = vector.extract_strided_slice %58 {offsets = [1, 0], sizes = [1, 128], strides = [1, 1]} : vector<4x128xf32> to vector<1x128xf32>
    %cst_87 = arith.constant -1.000000e+00 : f32
    %299 = vector.broadcast %cst_87 : f32 to vector<1x128xf32>
    %300 = arith.select %297, %299, %298 : vector<1x128xi1>, vector<1x128xf32>
    %301 = vector.shape_cast %300 : vector<1x128xf32> to vector<1x1x128xf32>
    %cst_88 = arith.constant dense<0xFF800000> : vector<1xf32>
    %302 = vector.multi_reduction <maximumf>, %301, %cst_88 [1, 2] : vector<1x1x128xf32> to vector<1xf32>
    %303 = vector.shape_cast %302 : vector<1xf32> to vector<1x1x1xf32>
    %304 = vector.extract %303[0, 0, 0] : f32 from vector<1x1x1xf32>
    %305 = vector.extract_strided_slice %32 {offsets = [1, 0], sizes = [1, 1], strides = [1, 1]} : vector<4x1xf32> to vector<1x1xf32>
    %306 = vector.shape_cast %305 : vector<1x1xf32> to vector<1x1x1xf32>
    %cst_89 = arith.constant dense<0.000000e+00> : vector<1xf32>
    %307 = vector.multi_reduction <add>, %306, %cst_89 [1, 2] : vector<1x1x1xf32> to vector<1xf32>
    %308 = vector.shape_cast %307 : vector<1xf32> to vector<1x1x1xf32>
    %309 = vector.extract %308[0, 0, 0] : f32 from vector<1x1x1xf32>
    %cst_90 = arith.constant 4.000000e-01 : f32
    %310 = arith.subf %cst_90, %309 : f32
    %311 = arith.addf %310, %304 : f32
    %cst_91 = arith.constant 0.000000e+00 : f32
    %312 = arith.maximumf %cst_91, %311 : f32
    %313 = arith.addf %227, %292 : f32
    %314 = arith.addf %313, %312 : f32
    %c0_i32_92 = arith.constant 0 : i32
    %315 = vector.broadcast %c0_i32_92 : i32 to vector<1x128xi32>
    %316 = arith.cmpi eq, %38, %315 : vector<1x128xi32>
    %cst_93 = arith.constant 0.000000e+00 : f32
    %317 = vector.broadcast %314 : f32 to vector<1x128xf32>
    %318 = vector.broadcast %cst_93 : f32 to vector<1x128xf32>
    %319 = arith.select %316, %317, %318 : vector<1x128xi1>, vector<1x128xf32>
    %c1_i32_94 = arith.constant 1 : i32
    %320 = vector.broadcast %c1_i32_94 : i32 to vector<1x128xi32>
    %321 = arith.cmpi eq, %38, %320 : vector<1x128xi32>
    %cst_95 = arith.constant 0.000000e+00 : f32
    %322 = vector.broadcast %238 : f32 to vector<1x128xf32>
    %323 = vector.broadcast %cst_95 : f32 to vector<1x128xf32>
    %324 = arith.select %321, %322, %323 : vector<1x128xi1>, vector<1x128xf32>
    %325 = arith.addf %319, %324 : vector<1x128xf32>
    %c1_96 = arith.constant 1 : index
    %c0_97 = arith.constant 0 : index
    %c0_98 = arith.constant 0 : index
    %326 = vector.load %arg11[%c1_96, %c0_97, %c0_98] : memref<4x1x128xf32, #tpu.memory_space<vmem>>, vector<1x1x128xf32>
    %327 = vector.shape_cast %326 : vector<1x1x128xf32> to vector<1x128xf32>
    %328 = vector.shape_cast %325 : vector<1x128xf32> to vector<1x1x128xf32>
    tpu.vector_store %arg11[%c1_96, %c0_97, %c0_98], %328 {strides = array<i32>} : memref<4x1x128xf32, #tpu.memory_space<vmem>>, vector<1x1x128xf32>,
    %c2_i32 = arith.constant 2 : i32
    %329 = arith.addi %0, %c2_i32 : i32
    %330 = arith.index_cast %329 : i32 to index
    %331 = memref.load %arg1[%330] : memref<8xi32, #tpu.memory_space<smem>>
    %332 = vector.extract_strided_slice %7 {offsets = [16, 0], sizes = [1, 128], strides = [1, 1]} : vector<32x128xf32> to vector<1x128xf32>
    %cst_99 = arith.constant -1.000000e+30 : f32
    %333 = vector.broadcast %cst_99 : f32 to vector<1x128xf32>
    %334 = arith.select %42, %332, %333 : vector<1x128xi1>, vector<1x128xf32>
    %335 = vector.shape_cast %334 : vector<1x128xf32> to vector<1x1x128xf32>
    %cst_100 = arith.constant dense<0xFF800000> : vector<1xf32>
    %336 = vector.multi_reduction <maximumf>, %335, %cst_100 [1, 2] : vector<1x1x128xf32> to vector<1xf32>
    %337 = vector.shape_cast %336 : vector<1xf32> to vector<1x1x1xf32>
    %338 = vector.extract %337[0, 0, 0] : f32 from vector<1x1x1xf32>
    %339 = vector.broadcast %338 : f32 to vector<1x128xf32>
    %340 = arith.subf %334, %339 : vector<1x128xf32>
    %341 = math.exp %340 : vector<1x128xf32>
    %cst_101 = arith.constant 0.000000e+00 : f32
    %342 = vector.broadcast %cst_101 : f32 to vector<1x128xf32>
    %343 = arith.select %42, %341, %342 : vector<1x128xi1>, vector<1x128xf32>
    %344 = vector.shape_cast %343 : vector<1x128xf32> to vector<1x1x128xf32>
    %cst_102 = arith.constant dense<0.000000e+00> : vector<1xf32>
    %345 = vector.multi_reduction <add>, %344, %cst_102 [1, 2] : vector<1x1x128xf32> to vector<1xf32>
    %346 = vector.shape_cast %345 : vector<1xf32> to vector<1x1x1xf32>
    %347 = vector.extract %346[0, 0, 0] : f32 from vector<1x1x1xf32>
    %348 = math.log %347 : f32
    %349 = arith.addf %338, %348 : f32
    %350 = vector.broadcast %331 : i32 to vector<1x128xi32>
    %351 = arith.cmpi eq, %38, %350 : vector<1x128xi32>
    %cst_103 = arith.constant 0.000000e+00 : f32
    %352 = vector.broadcast %cst_103 : f32 to vector<1x128xf32>
    %353 = arith.select %351, %332, %352 : vector<1x128xi1>, vector<1x128xf32>
    %354 = vector.shape_cast %353 : vector<1x128xf32> to vector<1x1x128xf32>
    %cst_104 = arith.constant dense<0.000000e+00> : vector<1xf32>
    %355 = vector.multi_reduction <add>, %354, %cst_104 [1, 2] : vector<1x1x128xf32> to vector<1xf32>
    %356 = vector.shape_cast %355 : vector<1xf32> to vector<1x1x1xf32>
    %357 = vector.extract %356[0, 0, 0] : f32 from vector<1x1x1xf32>
    %358 = arith.index_cast %331 : i32 to index
    %359 = memref.load %arg10[%358] : memref<3xf32, #tpu.memory_space<smem>>
    %cst_105 = arith.constant 0.000000e+00 : f32
    %360 = arith.subf %cst_105, %359 : f32
    %361 = arith.subf %357, %349 : f32
    %362 = arith.mulf %360, %361 : f32
    %363 = vector.broadcast %338 : f32 to vector<1x128xf32>
    %364 = arith.cmpf oeq, %334, %363 : vector<1x128xf32>
    %c128_i32_106 = arith.constant 128 : i32
    %365 = vector.broadcast %c128_i32_106 : i32 to vector<1x128xi32>
    %366 = arith.select %364, %38, %365 : vector<1x128xi1>, vector<1x128xi32>
    %367 = vector.shape_cast %366 : vector<1x128xi32> to vector<1x1x128xi32>
    %cst_107 = arith.constant dense<2147483647> : vector<1xi32>
    %368 = vector.multi_reduction <minsi>, %367, %cst_107 [1, 2] : vector<1x1x128xi32> to vector<1xi32>
    %369 = vector.shape_cast %368 : vector<1xi32> to vector<1x1x1xi32>
    %370 = vector.extract %369[0, 0, 0] : i32 from vector<1x1x1xi32>
    %371 = arith.cmpi eq, %370, %331 : i32
    %372 = arith.extui %371 : i1 to i32
    %373 = arith.sitofp %372 : i32 to f32
    %374 = vector.extract_strided_slice %7 {offsets = [16, 0], sizes = [8, 128], strides = [1, 1]} : vector<32x128xf32> to vector<8x128xf32>
    %cst_108 = arith.constant -1.000000e+30 : f32
    %375 = vector.shape_cast %52 : vector<8x1xi1> to vector<8x1xi1>
    %376 = vector.broadcast %375 : vector<8x1xi1> to vector<8x128xi1>
    %377 = vector.broadcast %cst_108 : f32 to vector<8x128xf32>
    %378 = arith.select %376, %374, %377 : vector<8x128xi1>, vector<8x128xf32>
    %cst_109 = arith.constant dense<0xFF800000> : vector<128xf32>
    %379 = vector.multi_reduction <maximumf>, %378, %cst_109 [0] : vector<8x128xf32> to vector<128xf32>
    %380 = vector.shape_cast %379 : vector<128xf32> to vector<1x128xf32>
    %381 = vector.broadcast %380 : vector<1x128xf32> to vector<8x128xf32>
    %382 = arith.subf %378, %381 : vector<8x128xf32>
    %383 = math.exp %382 : vector<8x128xf32>
    %cst_110 = arith.constant 0.000000e+00 : f32
    %384 = vector.shape_cast %52 : vector<8x1xi1> to vector<8x1xi1>
    %385 = vector.broadcast %384 : vector<8x1xi1> to vector<8x128xi1>
    %386 = vector.broadcast %cst_110 : f32 to vector<8x128xf32>
    %387 = arith.select %385, %383, %386 : vector<8x128xi1>, vector<8x128xf32>
    %cst_111 = arith.constant dense<0.000000e+00> : vector<128xf32>
    %388 = vector.multi_reduction <add>, %387, %cst_111 [0] : vector<8x128xf32> to vector<128xf32>
    %389 = vector.shape_cast %388 : vector<128xf32> to vector<1x128xf32>
    %390 = math.log %389 : vector<1x128xf32>
    %391 = arith.addf %380, %390 : vector<1x128xf32>
    %c2_i32_112 = arith.constant 2 : i32
    %392 = arith.addi %0, %c2_i32_112 : i32
    %393 = arith.index_cast %392 : i32 to index
    %c0_113 = arith.constant 0 : index
    %394 = memref.load %arg2[%393, %c0_113] : memref<8x2xi32, #tpu.memory_space<smem>>
    %c1_i32_114 = arith.constant 1 : i32
    %395 = arith.addi %394, %c1_i32_114 : i32
    %c2_i32_115 = arith.constant 2 : i32
    %396 = arith.addi %0, %c2_i32_115 : i32
    %397 = arith.index_cast %396 : i32 to index
    %c1_116 = arith.constant 1 : index
    %398 = memref.load %arg2[%397, %c1_116] : memref<8x2xi32, #tpu.memory_space<smem>>
    %c1_i32_117 = arith.constant 1 : i32
    %399 = arith.addi %398, %c1_i32_117 : i32
    %400 = vector.broadcast %395 : i32 to vector<8x1xi32>
    %401 = arith.cmpi eq, %39, %400 : vector<8x1xi32>
    %c3_i32_118 = arith.constant 3 : i32
    %402 = vector.broadcast %c3_i32_118 : i32 to vector<1x128xi32>
    %403 = arith.cmpi eq, %38, %402 : vector<1x128xi32>
    %404 = vector.broadcast %401 : vector<8x1xi1> to vector<8x128xi1>
    %405 = vector.broadcast %403 : vector<1x128xi1> to vector<8x128xi1>
    %406 = arith.andi %404, %405 : vector<8x128xi1>
    %407 = vector.broadcast %399 : i32 to vector<8x1xi32>
    %408 = arith.cmpi eq, %39, %407 : vector<8x1xi32>
    %c4_i32_119 = arith.constant 4 : i32
    %409 = vector.broadcast %c4_i32_119 : i32 to vector<1x128xi32>
    %410 = arith.cmpi eq, %38, %409 : vector<1x128xi32>
    %411 = vector.broadcast %408 : vector<8x1xi1> to vector<8x128xi1>
    %412 = vector.broadcast %410 : vector<1x128xi1> to vector<8x128xi1>
    %413 = arith.andi %411, %412 : vector<8x128xi1>
    %414 = arith.ori %406, %413 : vector<8x128xi1>
    %cst_120 = arith.constant 0.000000e+00 : f32
    %415 = vector.broadcast %cst_120 : f32 to vector<8x128xf32>
    %416 = arith.select %414, %374, %415 : vector<8x128xi1>, vector<8x128xf32>
    %417 = vector.shape_cast %416 : vector<8x128xf32> to vector<1x8x128xf32>
    %cst_121 = arith.constant dense<0.000000e+00> : vector<1xf32>
    %418 = vector.multi_reduction <add>, %417, %cst_121 [1, 2] : vector<1x8x128xf32> to vector<1xf32>
    %419 = vector.shape_cast %418 : vector<1xf32> to vector<1x1x1xf32>
    %420 = vector.extract %419[0, 0, 0] : f32 from vector<1x1x1xf32>
    %cst_122 = arith.constant 0.000000e+00 : f32
    %421 = vector.broadcast %cst_122 : f32 to vector<1x128xf32>
    %422 = arith.select %47, %391, %421 : vector<1x128xi1>, vector<1x128xf32>
    %423 = vector.shape_cast %422 : vector<1x128xf32> to vector<1x1x128xf32>
    %cst_123 = arith.constant dense<0.000000e+00> : vector<1xf32>
    %424 = vector.multi_reduction <add>, %423, %cst_123 [1, 2] : vector<1x1x128xf32> to vector<1xf32>
    %425 = vector.shape_cast %424 : vector<1xf32> to vector<1x1x1xf32>
    %426 = vector.extract %425[0, 0, 0] : f32 from vector<1x1x1xf32>
    %427 = arith.subf %426, %420 : f32
    %c2_i32_124 = arith.constant 2 : i32
    %428 = arith.addi %0, %c2_i32_124 : i32
    %429 = arith.index_cast %428 : i32 to index
    %430 = memref.load %arg3[%429] : memref<8xi32, #tpu.memory_space<smem>>
    %431 = vector.broadcast %430 : i32 to vector<1x128xi32>
    %432 = arith.cmpi eq, %40, %431 : vector<1x128xi32>
    %433 = vector.extract_strided_slice %58 {offsets = [2, 0], sizes = [1, 128], strides = [1, 1]} : vector<4x128xf32> to vector<1x128xf32>
    %cst_125 = arith.constant -1.000000e+00 : f32
    %434 = vector.broadcast %cst_125 : f32 to vector<1x128xf32>
    %435 = arith.select %432, %434, %433 : vector<1x128xi1>, vector<1x128xf32>
    %436 = vector.shape_cast %435 : vector<1x128xf32> to vector<1x1x128xf32>
    %cst_126 = arith.constant dense<0xFF800000> : vector<1xf32>
    %437 = vector.multi_reduction <maximumf>, %436, %cst_126 [1, 2] : vector<1x1x128xf32> to vector<1xf32>
    %438 = vector.shape_cast %437 : vector<1xf32> to vector<1x1x1xf32>
    %439 = vector.extract %438[0, 0, 0] : f32 from vector<1x1x1xf32>
    %440 = vector.extract_strided_slice %32 {offsets = [2, 0], sizes = [1, 1], strides = [1, 1]} : vector<4x1xf32> to vector<1x1xf32>
    %441 = vector.shape_cast %440 : vector<1x1xf32> to vector<1x1x1xf32>
    %cst_127 = arith.constant dense<0.000000e+00> : vector<1xf32>
    %442 = vector.multi_reduction <add>, %441, %cst_127 [1, 2] : vector<1x1x1xf32> to vector<1xf32>
    %443 = vector.shape_cast %442 : vector<1xf32> to vector<1x1x1xf32>
    %444 = vector.extract %443[0, 0, 0] : f32 from vector<1x1x1xf32>
    %cst_128 = arith.constant 4.000000e-01 : f32
    %445 = arith.subf %cst_128, %444 : f32
    %446 = arith.addf %445, %439 : f32
    %cst_129 = arith.constant 0.000000e+00 : f32
    %447 = arith.maximumf %cst_129, %446 : f32
    %448 = arith.addf %362, %427 : f32
    %449 = arith.addf %448, %447 : f32
    %c0_i32_130 = arith.constant 0 : i32
    %450 = vector.broadcast %c0_i32_130 : i32 to vector<1x128xi32>
    %451 = arith.cmpi eq, %38, %450 : vector<1x128xi32>
    %cst_131 = arith.constant 0.000000e+00 : f32
    %452 = vector.broadcast %449 : f32 to vector<1x128xf32>
    %453 = vector.broadcast %cst_131 : f32 to vector<1x128xf32>
    %454 = arith.select %451, %452, %453 : vector<1x128xi1>, vector<1x128xf32>
    %c1_i32_132 = arith.constant 1 : i32
    %455 = vector.broadcast %c1_i32_132 : i32 to vector<1x128xi32>
    %456 = arith.cmpi eq, %38, %455 : vector<1x128xi32>
    %cst_133 = arith.constant 0.000000e+00 : f32
    %457 = vector.broadcast %373 : f32 to vector<1x128xf32>
    %458 = vector.broadcast %cst_133 : f32 to vector<1x128xf32>
    %459 = arith.select %456, %457, %458 : vector<1x128xi1>, vector<1x128xf32>
    %460 = arith.addf %454, %459 : vector<1x128xf32>
    %c2 = arith.constant 2 : index
    %c0_134 = arith.constant 0 : index
    %c0_135 = arith.constant 0 : index
    %461 = vector.load %arg11[%c2, %c0_134, %c0_135] : memref<4x1x128xf32, #tpu.memory_space<vmem>>, vector<1x1x128xf32>
    %462 = vector.shape_cast %461 : vector<1x1x128xf32> to vector<1x128xf32>
    %463 = vector.shape_cast %460 : vector<1x128xf32> to vector<1x1x128xf32>
    tpu.vector_store %arg11[%c2, %c0_134, %c0_135], %463 {strides = array<i32>} : memref<4x1x128xf32, #tpu.memory_space<vmem>>, vector<1x1x128xf32>,
    %c3_i32_136 = arith.constant 3 : i32
    %464 = arith.addi %0, %c3_i32_136 : i32
    %465 = arith.index_cast %464 : i32 to index
    %466 = memref.load %arg1[%465] : memref<8xi32, #tpu.memory_space<smem>>
    %467 = vector.extract_strided_slice %7 {offsets = [24, 0], sizes = [1, 128], strides = [1, 1]} : vector<32x128xf32> to vector<1x128xf32>
    %cst_137 = arith.constant -1.000000e+30 : f32
    %468 = vector.broadcast %cst_137 : f32 to vector<1x128xf32>
    %469 = arith.select %42, %467, %468 : vector<1x128xi1>, vector<1x128xf32>
    %470 = vector.shape_cast %469 : vector<1x128xf32> to vector<1x1x128xf32>
    %cst_138 = arith.constant dense<0xFF800000> : vector<1xf32>
    %471 = vector.multi_reduction <maximumf>, %470, %cst_138 [1, 2] : vector<1x1x128xf32> to vector<1xf32>
    %472 = vector.shape_cast %471 : vector<1xf32> to vector<1x1x1xf32>
    %473 = vector.extract %472[0, 0, 0] : f32 from vector<1x1x1xf32>
    %474 = vector.broadcast %473 : f32 to vector<1x128xf32>
    %475 = arith.subf %469, %474 : vector<1x128xf32>
    %476 = math.exp %475 : vector<1x128xf32>
    %cst_139 = arith.constant 0.000000e+00 : f32
    %477 = vector.broadcast %cst_139 : f32 to vector<1x128xf32>
    %478 = arith.select %42, %476, %477 : vector<1x128xi1>, vector<1x128xf32>
    %479 = vector.shape_cast %478 : vector<1x128xf32> to vector<1x1x128xf32>
    %cst_140 = arith.constant dense<0.000000e+00> : vector<1xf32>
    %480 = vector.multi_reduction <add>, %479, %cst_140 [1, 2] : vector<1x1x128xf32> to vector<1xf32>
    %481 = vector.shape_cast %480 : vector<1xf32> to vector<1x1x1xf32>
    %482 = vector.extract %481[0, 0, 0] : f32 from vector<1x1x1xf32>
    %483 = math.log %482 : f32
    %484 = arith.addf %473, %483 : f32
    %485 = vector.broadcast %466 : i32 to vector<1x128xi32>
    %486 = arith.cmpi eq, %38, %485 : vector<1x128xi32>
    %cst_141 = arith.constant 0.000000e+00 : f32
    %487 = vector.broadcast %cst_141 : f32 to vector<1x128xf32>
    %488 = arith.select %486, %467, %487 : vector<1x128xi1>, vector<1x128xf32>
    %489 = vector.shape_cast %488 : vector<1x128xf32> to vector<1x1x128xf32>
    %cst_142 = arith.constant dense<0.000000e+00> : vector<1xf32>
    %490 = vector.multi_reduction <add>, %489, %cst_142 [1, 2] : vector<1x1x128xf32> to vector<1xf32>
    %491 = vector.shape_cast %490 : vector<1xf32> to vector<1x1x1xf32>
    %492 = vector.extract %491[0, 0, 0] : f32 from vector<1x1x1xf32>
    %493 = arith.index_cast %466 : i32 to index
    %494 = memref.load %arg10[%493] : memref<3xf32, #tpu.memory_space<smem>>
    %cst_143 = arith.constant 0.000000e+00 : f32
    %495 = arith.subf %cst_143, %494 : f32
    %496 = arith.subf %492, %484 : f32
    %497 = arith.mulf %495, %496 : f32
    %498 = vector.broadcast %473 : f32 to vector<1x128xf32>
    %499 = arith.cmpf oeq, %469, %498 : vector<1x128xf32>
    %c128_i32_144 = arith.constant 128 : i32
    %500 = vector.broadcast %c128_i32_144 : i32 to vector<1x128xi32>
    %501 = arith.select %499, %38, %500 : vector<1x128xi1>, vector<1x128xi32>
    %502 = vector.shape_cast %501 : vector<1x128xi32> to vector<1x1x128xi32>
    %cst_145 = arith.constant dense<2147483647> : vector<1xi32>
    %503 = vector.multi_reduction <minsi>, %502, %cst_145 [1, 2] : vector<1x1x128xi32> to vector<1xi32>
    %504 = vector.shape_cast %503 : vector<1xi32> to vector<1x1x1xi32>
    %505 = vector.extract %504[0, 0, 0] : i32 from vector<1x1x1xi32>
    %506 = arith.cmpi eq, %505, %466 : i32
    %507 = arith.extui %506 : i1 to i32
    %508 = arith.sitofp %507 : i32 to f32
    %509 = vector.extract_strided_slice %7 {offsets = [24, 0], sizes = [8, 128], strides = [1, 1]} : vector<32x128xf32> to vector<8x128xf32>
    %cst_146 = arith.constant -1.000000e+30 : f32
    %510 = vector.shape_cast %52 : vector<8x1xi1> to vector<8x1xi1>
    %511 = vector.broadcast %510 : vector<8x1xi1> to vector<8x128xi1>
    %512 = vector.broadcast %cst_146 : f32 to vector<8x128xf32>
    %513 = arith.select %511, %509, %512 : vector<8x128xi1>, vector<8x128xf32>
    %cst_147 = arith.constant dense<0xFF800000> : vector<128xf32>
    %514 = vector.multi_reduction <maximumf>, %513, %cst_147 [0] : vector<8x128xf32> to vector<128xf32>
    %515 = vector.shape_cast %514 : vector<128xf32> to vector<1x128xf32>
    %516 = vector.broadcast %515 : vector<1x128xf32> to vector<8x128xf32>
    %517 = arith.subf %513, %516 : vector<8x128xf32>
    %518 = math.exp %517 : vector<8x128xf32>
    %cst_148 = arith.constant 0.000000e+00 : f32
    %519 = vector.shape_cast %52 : vector<8x1xi1> to vector<8x1xi1>
    %520 = vector.broadcast %519 : vector<8x1xi1> to vector<8x128xi1>
    %521 = vector.broadcast %cst_148 : f32 to vector<8x128xf32>
    %522 = arith.select %520, %518, %521 : vector<8x128xi1>, vector<8x128xf32>
    %cst_149 = arith.constant dense<0.000000e+00> : vector<128xf32>
    %523 = vector.multi_reduction <add>, %522, %cst_149 [0] : vector<8x128xf32> to vector<128xf32>
    %524 = vector.shape_cast %523 : vector<128xf32> to vector<1x128xf32>
    %525 = math.log %524 : vector<1x128xf32>
    %526 = arith.addf %515, %525 : vector<1x128xf32>
    %c3_i32_150 = arith.constant 3 : i32
    %527 = arith.addi %0, %c3_i32_150 : i32
    %528 = arith.index_cast %527 : i32 to index
    %c0_151 = arith.constant 0 : index
    %529 = memref.load %arg2[%528, %c0_151] : memref<8x2xi32, #tpu.memory_space<smem>>
    %c1_i32_152 = arith.constant 1 : i32
    %530 = arith.addi %529, %c1_i32_152 : i32
    %c3_i32_153 = arith.constant 3 : i32
    %531 = arith.addi %0, %c3_i32_153 : i32
    %532 = arith.index_cast %531 : i32 to index
    %c1_154 = arith.constant 1 : index
    %533 = memref.load %arg2[%532, %c1_154] : memref<8x2xi32, #tpu.memory_space<smem>>
    %c1_i32_155 = arith.constant 1 : i32
    %534 = arith.addi %533, %c1_i32_155 : i32
    %535 = vector.broadcast %530 : i32 to vector<8x1xi32>
    %536 = arith.cmpi eq, %39, %535 : vector<8x1xi32>
    %c3_i32_156 = arith.constant 3 : i32
    %537 = vector.broadcast %c3_i32_156 : i32 to vector<1x128xi32>
    %538 = arith.cmpi eq, %38, %537 : vector<1x128xi32>
    %539 = vector.broadcast %536 : vector<8x1xi1> to vector<8x128xi1>
    %540 = vector.broadcast %538 : vector<1x128xi1> to vector<8x128xi1>
    %541 = arith.andi %539, %540 : vector<8x128xi1>
    %542 = vector.broadcast %534 : i32 to vector<8x1xi32>
    %543 = arith.cmpi eq, %39, %542 : vector<8x1xi32>
    %c4_i32_157 = arith.constant 4 : i32
    %544 = vector.broadcast %c4_i32_157 : i32 to vector<1x128xi32>
    %545 = arith.cmpi eq, %38, %544 : vector<1x128xi32>
    %546 = vector.broadcast %543 : vector<8x1xi1> to vector<8x128xi1>
    %547 = vector.broadcast %545 : vector<1x128xi1> to vector<8x128xi1>
    %548 = arith.andi %546, %547 : vector<8x128xi1>
    %549 = arith.ori %541, %548 : vector<8x128xi1>
    %cst_158 = arith.constant 0.000000e+00 : f32
    %550 = vector.broadcast %cst_158 : f32 to vector<8x128xf32>
    %551 = arith.select %549, %509, %550 : vector<8x128xi1>, vector<8x128xf32>
    %552 = vector.shape_cast %551 : vector<8x128xf32> to vector<1x8x128xf32>
    %cst_159 = arith.constant dense<0.000000e+00> : vector<1xf32>
    %553 = vector.multi_reduction <add>, %552, %cst_159 [1, 2] : vector<1x8x128xf32> to vector<1xf32>
    %554 = vector.shape_cast %553 : vector<1xf32> to vector<1x1x1xf32>
    %555 = vector.extract %554[0, 0, 0] : f32 from vector<1x1x1xf32>
    %cst_160 = arith.constant 0.000000e+00 : f32
    %556 = vector.broadcast %cst_160 : f32 to vector<1x128xf32>
    %557 = arith.select %47, %526, %556 : vector<1x128xi1>, vector<1x128xf32>
    %558 = vector.shape_cast %557 : vector<1x128xf32> to vector<1x1x128xf32>
    %cst_161 = arith.constant dense<0.000000e+00> : vector<1xf32>
    %559 = vector.multi_reduction <add>, %558, %cst_161 [1, 2] : vector<1x1x128xf32> to vector<1xf32>
    %560 = vector.shape_cast %559 : vector<1xf32> to vector<1x1x1xf32>
    %561 = vector.extract %560[0, 0, 0] : f32 from vector<1x1x1xf32>
    %562 = arith.subf %561, %555 : f32
    %c3_i32_162 = arith.constant 3 : i32
    %563 = arith.addi %0, %c3_i32_162 : i32
    %564 = arith.index_cast %563 : i32 to index
    %565 = memref.load %arg3[%564] : memref<8xi32, #tpu.memory_space<smem>>
    %566 = vector.broadcast %565 : i32 to vector<1x128xi32>
    %567 = arith.cmpi eq, %40, %566 : vector<1x128xi32>
    %568 = vector.extract_strided_slice %58 {offsets = [3, 0], sizes = [1, 128], strides = [1, 1]} : vector<4x128xf32> to vector<1x128xf32>
    %cst_163 = arith.constant -1.000000e+00 : f32
    %569 = vector.broadcast %cst_163 : f32 to vector<1x128xf32>
    %570 = arith.select %567, %569, %568 : vector<1x128xi1>, vector<1x128xf32>
    %571 = vector.shape_cast %570 : vector<1x128xf32> to vector<1x1x128xf32>
    %cst_164 = arith.constant dense<0xFF800000> : vector<1xf32>
    %572 = vector.multi_reduction <maximumf>, %571, %cst_164 [1, 2] : vector<1x1x128xf32> to vector<1xf32>
    %573 = vector.shape_cast %572 : vector<1xf32> to vector<1x1x1xf32>
    %574 = vector.extract %573[0, 0, 0] : f32 from vector<1x1x1xf32>
    %575 = vector.extract_strided_slice %32 {offsets = [3, 0], sizes = [1, 1], strides = [1, 1]} : vector<4x1xf32> to vector<1x1xf32>
    %576 = vector.shape_cast %575 : vector<1x1xf32> to vector<1x1x1xf32>
    %cst_165 = arith.constant dense<0.000000e+00> : vector<1xf32>
    %577 = vector.multi_reduction <add>, %576, %cst_165 [1, 2] : vector<1x1x1xf32> to vector<1xf32>
    %578 = vector.shape_cast %577 : vector<1xf32> to vector<1x1x1xf32>
    %579 = vector.extract %578[0, 0, 0] : f32 from vector<1x1x1xf32>
    %cst_166 = arith.constant 4.000000e-01 : f32
    %580 = arith.subf %cst_166, %579 : f32
    %581 = arith.addf %580, %574 : f32
    %cst_167 = arith.constant 0.000000e+00 : f32
    %582 = arith.maximumf %cst_167, %581 : f32
    %583 = arith.addf %497, %562 : f32
    %584 = arith.addf %583, %582 : f32
    %c0_i32_168 = arith.constant 0 : i32
    %585 = vector.broadcast %c0_i32_168 : i32 to vector<1x128xi32>
    %586 = arith.cmpi eq, %38, %585 : vector<1x128xi32>
    %cst_169 = arith.constant 0.000000e+00 : f32
    %587 = vector.broadcast %584 : f32 to vector<1x128xf32>
    %588 = vector.broadcast %cst_169 : f32 to vector<1x128xf32>
    %589 = arith.select %586, %587, %588 : vector<1x128xi1>, vector<1x128xf32>
    %c1_i32_170 = arith.constant 1 : i32
    %590 = vector.broadcast %c1_i32_170 : i32 to vector<1x128xi32>
    %591 = arith.cmpi eq, %38, %590 : vector<1x128xi32>
    %cst_171 = arith.constant 0.000000e+00 : f32
    %592 = vector.broadcast %508 : f32 to vector<1x128xf32>
    %593 = vector.broadcast %cst_171 : f32 to vector<1x128xf32>
    %594 = arith.select %591, %592, %593 : vector<1x128xi1>, vector<1x128xf32>
    %595 = arith.addf %589, %594 : vector<1x128xf32>
    %c3 = arith.constant 3 : index
    %c0_172 = arith.constant 0 : index
    %c0_173 = arith.constant 0 : index
    %596 = vector.load %arg11[%c3, %c0_172, %c0_173] : memref<4x1x128xf32, #tpu.memory_space<vmem>>, vector<1x1x128xf32>
    %597 = vector.shape_cast %596 : vector<1x1x128xf32> to vector<1x128xf32>
    %598 = vector.shape_cast %595 : vector<1x128xf32> to vector<1x1x128xf32>
    tpu.vector_store %arg11[%c3, %c0_172, %c0_173], %598 {strides = array<i32>} : memref<4x1x128xf32, #tpu.memory_space<vmem>>, vector<1x1x128xf32>,
    return
  }
  func.func @transform_0(%arg0: i32, %arg1: memref<8xi32, #tpu.memory_space<smem>>, %arg2: memref<8x2xi32, #tpu.memory_space<smem>>, %arg3: memref<8xi32, #tpu.memory_space<smem>>) -> (i32, i32, i32) {
    %c0_i32 = arith.constant 0 : i32
    %c0_i32_0 = arith.constant 0 : i32
    %c0_i32_1 = arith.constant 0 : i32
    return %arg0, %c0_i32, %c0_i32_0 : i32, i32, i32
  }
  func.func @transform_1(%arg0: i32, %arg1: memref<8xi32, #tpu.memory_space<smem>>, %arg2: memref<8x2xi32, #tpu.memory_space<smem>>, %arg3: memref<8xi32, #tpu.memory_space<smem>>) -> (i32, i32) {
    %c0_i32 = arith.constant 0 : i32
    %c0_i32_0 = arith.constant 0 : i32
    %c0_i32_1 = arith.constant 0 : i32
    return %c0_i32, %c0_i32_0 : i32, i32
  }
  func.func @transform_2(%arg0: i32, %arg1: memref<8xi32, #tpu.memory_space<smem>>, %arg2: memref<8x2xi32, #tpu.memory_space<smem>>, %arg3: memref<8xi32, #tpu.memory_space<smem>>) -> (i32, i32) {
    %c0_i32 = arith.constant 0 : i32
    %c0_i32_0 = arith.constant 0 : i32
    %c0_i32_1 = arith.constant 0 : i32
    return %c0_i32, %c0_i32_0 : i32, i32
  }
  func.func @transform_3(%arg0: i32, %arg1: memref<8xi32, #tpu.memory_space<smem>>, %arg2: memref<8x2xi32, #tpu.memory_space<smem>>, %arg3: memref<8xi32, #tpu.memory_space<smem>>) -> (i32, i32) {
    %c0_i32 = arith.constant 0 : i32
    %c0_i32_0 = arith.constant 0 : i32
    %c0_i32_1 = arith.constant 0 : i32
    return %c0_i32, %c0_i32_0 : i32, i32
  }
  func.func @transform_4(%arg0: i32, %arg1: memref<8xi32, #tpu.memory_space<smem>>, %arg2: memref<8x2xi32, #tpu.memory_space<smem>>, %arg3: memref<8xi32, #tpu.memory_space<smem>>) -> (i32, i32) {
    %c0_i32 = arith.constant 0 : i32
    %c0_i32_0 = arith.constant 0 : i32
    %c0_i32_1 = arith.constant 0 : i32
    return %c0_i32, %c0_i32_0 : i32, i32
  }
  func.func @transform_5(%arg0: i32, %arg1: memref<8xi32, #tpu.memory_space<smem>>, %arg2: memref<8x2xi32, #tpu.memory_space<smem>>, %arg3: memref<8xi32, #tpu.memory_space<smem>>) -> (i32, i32, i32) {
    %c0_i32 = arith.constant 0 : i32
    %c0_i32_0 = arith.constant 0 : i32
    %c0_i32_1 = arith.constant 0 : i32
    return %arg0, %c0_i32, %c0_i32_0 : i32, i32, i32
  }
  func.func @transform_6(%arg0: i32, %arg1: memref<8xi32, #tpu.memory_space<smem>>, %arg2: memref<8x2xi32, #tpu.memory_space<smem>>, %arg3: memref<8xi32, #tpu.memory_space<smem>>) -> i32 {
    %c0_i32 = arith.constant 0 : i32
    %c0_i32_0 = arith.constant 0 : i32
    return %c0_i32 : i32
  }
  func.func @transform_7(%arg0: i32, %arg1: memref<8xi32, #tpu.memory_space<smem>>, %arg2: memref<8x2xi32, #tpu.memory_space<smem>>, %arg3: memref<8xi32, #tpu.memory_space<smem>>) -> (i32, i32, i32) {
    %c0_i32 = arith.constant 0 : i32
    %c0_i32_0 = arith.constant 0 : i32
    %c0_i32_1 = arith.constant 0 : i32
    return %arg0, %c0_i32, %c0_i32_0 : i32, i32, i32
  }
}

module attributes {stable_mosaic.version = 11 : i64} {
  func.func @dst_kernel(%arg0: i32, %arg1: memref<8xi32, #tpu.memory_space<smem>>, %arg2: memref<8x2xi32, #tpu.memory_space<smem>>, %arg3: memref<8xi32, #tpu.memory_space<smem>>, %arg4: memref<4x8x32xf32, #tpu.memory_space<vmem>>, %arg5: memref<32x128xf32, #tpu.memory_space<vmem>>, %arg6: memref<1x128xf32, #tpu.memory_space<vmem>>, %arg7: memref<32x128xf32, #tpu.memory_space<vmem>>, %arg8: memref<1x128xf32, #tpu.memory_space<vmem>>, %arg9: memref<4x1x32xf32, #tpu.memory_space<vmem>>, %arg10: memref<3xf32, #tpu.memory_space<smem>>, %arg11: memref<4x1x128xf32, #tpu.memory_space<vmem>>) attributes {dimension_semantics = [#tpu.dimension_semantics<parallel>], iteration_bounds = array<i64: 2>, scalar_prefetch = 3 : i64, scratch_operands = 0 : i64, tpu.core_type = #tpu.core_type<tc>, window_params = [{transform_indices = @transform_0, window_bounds = array<i64: 4, 8, 32>}, {pipeline_mode = #tpu.pipeline_mode<synchronous>, transform_indices = @transform_1, window_bounds = array<i64: 32, 128>}, {pipeline_mode = #tpu.pipeline_mode<synchronous>, transform_indices = @transform_2, window_bounds = array<i64: 1, 128>}, {pipeline_mode = #tpu.pipeline_mode<synchronous>, transform_indices = @transform_3, window_bounds = array<i64: 32, 128>}, {pipeline_mode = #tpu.pipeline_mode<synchronous>, transform_indices = @transform_4, window_bounds = array<i64: 1, 128>}, {transform_indices = @transform_5, window_bounds = array<i64: 4, 1, 32>}, {transform_indices = @transform_6, window_bounds = array<i64: 3>}, {transform_indices = @transform_7, window_bounds = array<i64: 4, 1, 128>}]} {
    %c4_i32 = arith.constant 4 : i32
    %0 = arith.muli %arg0, %c4_i32 : i32
    %c0 = arith.constant 0 : index
    %c0_0 = arith.constant 0 : index
    %c0_1 = arith.constant 0 : index
    %1 = vector.load %arg4[%c0, %c0_0, %c0_1] : memref<4x8x32xf32, #tpu.memory_space<vmem>>, vector<4x8x32xf32>
    %2 = vector.shape_cast %1 : vector<4x8x32xf32> to vector<32x32xf32>
    %c0_2 = arith.constant 0 : index
    %c0_3 = arith.constant 0 : index
    %3 = vector.load %arg5[%c0_2, %c0_3] : memref<32x128xf32, #tpu.memory_space<vmem>>, vector<32x128xf32>
    %cst = arith.constant dense<0.000000e+00> : vector<32x128xf32>
    %4 = tpu.matmul %2, %3, %cst {dimension_numbers = #tpu.dot_dimension_numbers<[1], [0], [0], [1], [0, 0, 1, 1], [], []>} : vector<32x32xf32>, vector<32x128xf32>, vector<32x128xf32> -> vector<32x128xf32>
    %c0_4 = arith.constant 0 : index
    %c0_5 = arith.constant 0 : index
    %5 = vector.load %arg6[%c0_4, %c0_5] : memref<1x128xf32, #tpu.memory_space<vmem>>, vector<1x128xf32>
    %6 = vector.broadcast %5 : vector<1x128xf32> to vector<32x128xf32>
    %7 = arith.addf %4, %6 : vector<32x128xf32>
    %8 = vector.extract_strided_slice %1 {offsets = [0, 0, 0], sizes = [4, 1, 32], strides = [1, 1, 1]} : vector<4x8x32xf32> to vector<4x1x32xf32>
    %9 = vector.shape_cast %8 : vector<4x1x32xf32> to vector<4x32xf32>
    %c0_6 = arith.constant 0 : index
    %c0_7 = arith.constant 0 : index
    %10 = vector.load %arg7[%c0_6, %c0_7] : memref<32x128xf32, #tpu.memory_space<vmem>>, vector<32x128xf32>
    %cst_8 = arith.constant dense<0.000000e+00> : vector<4x128xf32>
    %11 = tpu.matmul %9, %10, %cst_8 {dimension_numbers = #tpu.dot_dimension_numbers<[1], [0], [0], [1], [0, 0, 1, 1], [], []>} : vector<4x32xf32>, vector<32x128xf32>, vector<4x128xf32> -> vector<4x128xf32>
    %c0_9 = arith.constant 0 : index
    %c0_10 = arith.constant 0 : index
    %c0_11 = arith.constant 0 : index
    %12 = vector.load %arg9[%c0_9, %c0_10, %c0_11] : memref<4x1x32xf32, #tpu.memory_space<vmem>>, vector<4x1x32xf32>
    %13 = vector.shape_cast %12 : vector<4x1x32xf32> to vector<4x32xf32>
    %14 = arith.mulf %9, %9 : vector<4x32xf32>
    %cst_12 = arith.constant dense<0.000000e+00> : vector<4xf32>
    %15 = vector.multi_reduction <add>, %14, %cst_12 [1] : vector<4x32xf32> to vector<4xf32>
    %16 = vector.shape_cast %15 : vector<4xf32> to vector<4x1xf32>
    %cst_13 = arith.constant 9.99999993E-9 : f32
    %cst_14 = arith.constant 9.99999993E-9 : f32
    %17 = arith.mulf %cst_13, %cst_14 : f32
    %18 = vector.broadcast %17 : f32 to vector<4x1xf32>
    %19 = arith.maximumf %16, %18 : vector<4x1xf32>
    %20 = math.rsqrt %19 : vector<4x1xf32>
    %21 = arith.mulf %13, %13 : vector<4x32xf32>
    %cst_15 = arith.constant dense<0.000000e+00> : vector<4xf32>
    %22 = vector.multi_reduction <add>, %21, %cst_15 [1] : vector<4x32xf32> to vector<4xf32>
    %23 = vector.shape_cast %22 : vector<4xf32> to vector<4x1xf32>
    %cst_16 = arith.constant 9.99999993E-9 : f32
    %cst_17 = arith.constant 9.99999993E-9 : f32
    %24 = arith.mulf %cst_16, %cst_17 : f32
    %25 = vector.broadcast %24 : f32 to vector<4x1xf32>
    %26 = arith.maximumf %23, %25 : vector<4x1xf32>
    %27 = math.rsqrt %26 : vector<4x1xf32>
    %28 = arith.mulf %9, %13 : vector<4x32xf32>
    %cst_18 = arith.constant dense<0.000000e+00> : vector<4xf32>
    %29 = vector.multi_reduction <add>, %28, %cst_18 [1] : vector<4x32xf32> to vector<4xf32>
    %30 = vector.shape_cast %29 : vector<4xf32> to vector<4x1xf32>
    %31 = arith.mulf %30, %20 : vector<4x1xf32>
    %32 = arith.mulf %31, %27 : vector<4x1xf32>
    %33 = vector.broadcast %20 : vector<4x1xf32> to vector<4x128xf32>
    %34 = arith.mulf %11, %33 : vector<4x128xf32>
    %c0_19 = arith.constant 0 : index
    %c0_20 = arith.constant 0 : index
    %35 = vector.load %arg8[%c0_19, %c0_20] : memref<1x128xf32, #tpu.memory_space<vmem>>, vector<1x128xf32>
    %36 = vector.broadcast %35 : vector<1x128xf32> to vector<4x128xf32>
    %37 = arith.mulf %34, %36 : vector<4x128xf32>
    %38 = tpu.iota {dimensions = array<i32: 1>} : vector<1x128xi32>
    %39 = tpu.iota {dimensions = array<i32: 0>} : vector<8x1xi32>
    %40 = tpu.iota {dimensions = array<i32: 1>} : vector<1x128xi32>
    %c3_i32 = arith.constant 3 : i32
    %41 = vector.broadcast %c3_i32 : i32 to vector<1x128xi32>
    %42 = arith.cmpi slt, %38, %41 : vector<1x128xi32>
    %c3_i32_21 = arith.constant 3 : i32
    %43 = vector.broadcast %c3_i32_21 : i32 to vector<1x128xi32>
    %44 = arith.cmpi eq, %38, %43 : vector<1x128xi32>
    %c4_i32_22 = arith.constant 4 : i32
    %45 = vector.broadcast %c4_i32_22 : i32 to vector<1x128xi32>
    %46 = arith.cmpi eq, %38, %45 : vector<1x128xi32>
    %47 = arith.ori %44, %46 : vector<1x128xi1>
    %c0_i32 = arith.constant 0 : i32
    %48 = vector.broadcast %c0_i32 : i32 to vector<8x1xi32>
    %49 = arith.cmpi sgt, %39, %48 : vector<8x1xi32>
    %c8_i32 = arith.constant 8 : i32
    %50 = vector.broadcast %c8_i32 : i32 to vector<8x1xi32>
    %51 = arith.cmpi slt, %39, %50 : vector<8x1xi32>
    %52 = arith.andi %49, %51 : vector<8x1xi1>
    %c5_i32 = arith.constant 5 : i32
    %53 = vector.broadcast %c5_i32 : i32 to vector<1x128xi32>
    %54 = arith.cmpi sge, %40, %53 : vector<1x128xi32>
    %cst_23 = arith.constant -1.000000e+00 : f32
    %55 = vector.shape_cast %54 : vector<1x128xi1> to vector<1x128xi1>
    %56 = vector.broadcast %55 : vector<1x128xi1> to vector<4x128xi1>
    %57 = vector.broadcast %cst_23 : f32 to vector<4x128xf32>
    %58 = arith.select %56, %57, %37 : vector<4x128xi1>, vector<4x128xf32>
    %c0_i32_24 = arith.constant 0 : i32
    %59 = arith.addi %0, %c0_i32_24 : i32
    %60 = arith.index_cast %59 : i32 to index
    %61 = memref.load %arg1[%60] : memref<8xi32, #tpu.memory_space<smem>>
    %62 = vector.extract_strided_slice %7 {offsets = [0, 0], sizes = [1, 128], strides = [1, 1]} : vector<32x128xf32> to vector<1x128xf32>
    %cst_25 = arith.constant -1.000000e+30 : f32
    %63 = vector.broadcast %cst_25 : f32 to vector<1x128xf32>
    %64 = arith.select %42, %62, %63 : vector<1x128xi1>, vector<1x128xf32>
    %65 = vector.shape_cast %64 : vector<1x128xf32> to vector<1x1x128xf32>
    %cst_26 = arith.constant dense<0xFF800000> : vector<1xf32>
    %66 = vector.multi_reduction <maximumf>, %65, %cst_26 [1, 2] : vector<1x1x128xf32> to vector<1xf32>
    %67 = vector.shape_cast %66 : vector<1xf32> to vector<1x1x1xf32>
    %68 = vector.extract %67[0, 0, 0] : f32 from vector<1x1x1xf32>
    %69 = vector.broadcast %68 : f32 to vector<1x128xf32>
    %70 = arith.subf %64, %69 : vector<1x128xf32>
    %71 = math.exp %70 : vector<1x128xf32>
    %cst_27 = arith.constant 0.000000e+00 : f32
    %72 = vector.broadcast %cst_27 : f32 to vector<1x128xf32>
    %73 = arith.select %42, %71, %72 : vector<1x128xi1>, vector<1x128xf32>
    %74 = vector.shape_cast %73 : vector<1x128xf32> to vector<1x1x128xf32>
    %cst_28 = arith.constant dense<0.000000e+00> : vector<1xf32>
    %75 = vector.multi_reduction <add>, %74, %cst_28 [1, 2] : vector<1x1x128xf32> to vector<1xf32>
    %76 = vector.shape_cast %75 : vector<1xf32> to vector<1x1x1xf32>
    %77 = vector.extract %76[0, 0, 0] : f32 from vector<1x1x1xf32>
    %78 = math.log %77 : f32
    %79 = arith.addf %68, %78 : f32
    %80 = vector.broadcast %61 : i32 to vector<1x128xi32>
    %81 = arith.cmpi eq, %38, %80 : vector<1x128xi32>
    %cst_29 = arith.constant 0.000000e+00 : f32
    %82 = vector.broadcast %cst_29 : f32 to vector<1x128xf32>
    %83 = arith.select %81, %62, %82 : vector<1x128xi1>, vector<1x128xf32>
    %84 = vector.shape_cast %83 : vector<1x128xf32> to vector<1x1x128xf32>
    %cst_30 = arith.constant dense<0.000000e+00> : vector<1xf32>
    %85 = vector.multi_reduction <add>, %84, %cst_30 [1, 2] : vector<1x1x128xf32> to vector<1xf32>
    %86 = vector.shape_cast %85 : vector<1xf32> to vector<1x1x1xf32>
    %87 = vector.extract %86[0, 0, 0] : f32 from vector<1x1x1xf32>
    %88 = arith.index_cast %61 : i32 to index
    %89 = memref.load %arg10[%88] : memref<3xf32, #tpu.memory_space<smem>>
    %cst_31 = arith.constant 0.000000e+00 : f32
    %90 = arith.subf %cst_31, %89 : f32
    %91 = arith.subf %87, %79 : f32
    %92 = arith.mulf %90, %91 : f32
    %93 = vector.broadcast %68 : f32 to vector<1x128xf32>
    %94 = arith.cmpf oeq, %64, %93 : vector<1x128xf32>
    %c128_i32 = arith.constant 128 : i32
    %95 = vector.broadcast %c128_i32 : i32 to vector<1x128xi32>
    %96 = arith.select %94, %38, %95 : vector<1x128xi1>, vector<1x128xi32>
    %97 = vector.shape_cast %96 : vector<1x128xi32> to vector<1x1x128xi32>
    %cst_32 = arith.constant dense<2147483647> : vector<1xi32>
    %98 = vector.multi_reduction <minsi>, %97, %cst_32 [1, 2] : vector<1x1x128xi32> to vector<1xi32>
    %99 = vector.shape_cast %98 : vector<1xi32> to vector<1x1x1xi32>
    %100 = vector.extract %99[0, 0, 0] : i32 from vector<1x1x1xi32>
    %101 = arith.cmpi eq, %100, %61 : i32
    %102 = arith.extui %101 : i1 to i32
    %103 = arith.sitofp %102 : i32 to f32
    %104 = vector.extract_strided_slice %7 {offsets = [0, 0], sizes = [8, 128], strides = [1, 1]} : vector<32x128xf32> to vector<8x128xf32>
    %cst_33 = arith.constant -1.000000e+30 : f32
    %105 = vector.shape_cast %52 : vector<8x1xi1> to vector<8x1xi1>
    %106 = vector.broadcast %105 : vector<8x1xi1> to vector<8x128xi1>
    %107 = vector.broadcast %cst_33 : f32 to vector<8x128xf32>
    %108 = arith.select %106, %104, %107 : vector<8x128xi1>, vector<8x128xf32>
    %cst_34 = arith.constant dense<0xFF800000> : vector<128xf32>
    %109 = vector.multi_reduction <maximumf>, %108, %cst_34 [0] : vector<8x128xf32> to vector<128xf32>
    %110 = vector.shape_cast %109 : vector<128xf32> to vector<1x128xf32>
    %111 = vector.broadcast %110 : vector<1x128xf32> to vector<8x128xf32>
    %112 = arith.subf %108, %111 : vector<8x128xf32>
    %113 = math.exp %112 : vector<8x128xf32>
    %cst_35 = arith.constant 0.000000e+00 : f32
    %114 = vector.shape_cast %52 : vector<8x1xi1> to vector<8x1xi1>
    %115 = vector.broadcast %114 : vector<8x1xi1> to vector<8x128xi1>
    %116 = vector.broadcast %cst_35 : f32 to vector<8x128xf32>
    %117 = arith.select %115, %113, %116 : vector<8x128xi1>, vector<8x128xf32>
    %cst_36 = arith.constant dense<0.000000e+00> : vector<128xf32>
    %118 = vector.multi_reduction <add>, %117, %cst_36 [0] : vector<8x128xf32> to vector<128xf32>
    %119 = vector.shape_cast %118 : vector<128xf32> to vector<1x128xf32>
    %120 = math.log %119 : vector<1x128xf32>
    %121 = arith.addf %110, %120 : vector<1x128xf32>
    %c0_i32_37 = arith.constant 0 : i32
    %122 = arith.addi %0, %c0_i32_37 : i32
    %123 = arith.index_cast %122 : i32 to index
    %c0_38 = arith.constant 0 : index
    %124 = memref.load %arg2[%123, %c0_38] : memref<8x2xi32, #tpu.memory_space<smem>>
    %c1_i32 = arith.constant 1 : i32
    %125 = arith.addi %124, %c1_i32 : i32
    %c0_i32_39 = arith.constant 0 : i32
    %126 = arith.addi %0, %c0_i32_39 : i32
    %127 = arith.index_cast %126 : i32 to index
    %c1 = arith.constant 1 : index
    %128 = memref.load %arg2[%127, %c1] : memref<8x2xi32, #tpu.memory_space<smem>>
    %c1_i32_40 = arith.constant 1 : i32
    %129 = arith.addi %128, %c1_i32_40 : i32
    %130 = vector.broadcast %125 : i32 to vector<8x1xi32>
    %131 = arith.cmpi eq, %39, %130 : vector<8x1xi32>
    %c3_i32_41 = arith.constant 3 : i32
    %132 = vector.broadcast %c3_i32_41 : i32 to vector<1x128xi32>
    %133 = arith.cmpi eq, %38, %132 : vector<1x128xi32>
    %134 = vector.broadcast %131 : vector<8x1xi1> to vector<8x128xi1>
    %135 = vector.broadcast %133 : vector<1x128xi1> to vector<8x128xi1>
    %136 = arith.andi %134, %135 : vector<8x128xi1>
    %137 = vector.broadcast %129 : i32 to vector<8x1xi32>
    %138 = arith.cmpi eq, %39, %137 : vector<8x1xi32>
    %c4_i32_42 = arith.constant 4 : i32
    %139 = vector.broadcast %c4_i32_42 : i32 to vector<1x128xi32>
    %140 = arith.cmpi eq, %38, %139 : vector<1x128xi32>
    %141 = vector.broadcast %138 : vector<8x1xi1> to vector<8x128xi1>
    %142 = vector.broadcast %140 : vector<1x128xi1> to vector<8x128xi1>
    %143 = arith.andi %141, %142 : vector<8x128xi1>
    %144 = arith.ori %136, %143 : vector<8x128xi1>
    %cst_43 = arith.constant 0.000000e+00 : f32
    %145 = vector.broadcast %cst_43 : f32 to vector<8x128xf32>
    %146 = arith.select %144, %104, %145 : vector<8x128xi1>, vector<8x128xf32>
    %147 = vector.shape_cast %146 : vector<8x128xf32> to vector<1x8x128xf32>
    %cst_44 = arith.constant dense<0.000000e+00> : vector<1xf32>
    %148 = vector.multi_reduction <add>, %147, %cst_44 [1, 2] : vector<1x8x128xf32> to vector<1xf32>
    %149 = vector.shape_cast %148 : vector<1xf32> to vector<1x1x1xf32>
    %150 = vector.extract %149[0, 0, 0] : f32 from vector<1x1x1xf32>
    %cst_45 = arith.constant 0.000000e+00 : f32
    %151 = vector.broadcast %cst_45 : f32 to vector<1x128xf32>
    %152 = arith.select %47, %121, %151 : vector<1x128xi1>, vector<1x128xf32>
    %153 = vector.shape_cast %152 : vector<1x128xf32> to vector<1x1x128xf32>
    %cst_46 = arith.constant dense<0.000000e+00> : vector<1xf32>
    %154 = vector.multi_reduction <add>, %153, %cst_46 [1, 2] : vector<1x1x128xf32> to vector<1xf32>
    %155 = vector.shape_cast %154 : vector<1xf32> to vector<1x1x1xf32>
    %156 = vector.extract %155[0, 0, 0] : f32 from vector<1x1x1xf32>
    %157 = arith.subf %156, %150 : f32
    %c0_i32_47 = arith.constant 0 : i32
    %158 = arith.addi %0, %c0_i32_47 : i32
    %159 = arith.index_cast %158 : i32 to index
    %160 = memref.load %arg3[%159] : memref<8xi32, #tpu.memory_space<smem>>
    %161 = vector.broadcast %160 : i32 to vector<1x128xi32>
    %162 = arith.cmpi eq, %40, %161 : vector<1x128xi32>
    %163 = vector.extract_strided_slice %58 {offsets = [0, 0], sizes = [1, 128], strides = [1, 1]} : vector<4x128xf32> to vector<1x128xf32>
    %cst_48 = arith.constant -1.000000e+00 : f32
    %164 = vector.broadcast %cst_48 : f32 to vector<1x128xf32>
    %165 = arith.select %162, %164, %163 : vector<1x128xi1>, vector<1x128xf32>
    %166 = vector.shape_cast %165 : vector<1x128xf32> to vector<1x1x128xf32>
    %cst_49 = arith.constant dense<0xFF800000> : vector<1xf32>
    %167 = vector.multi_reduction <maximumf>, %166, %cst_49 [1, 2] : vector<1x1x128xf32> to vector<1xf32>
    %168 = vector.shape_cast %167 : vector<1xf32> to vector<1x1x1xf32>
    %169 = vector.extract %168[0, 0, 0] : f32 from vector<1x1x1xf32>
    %170 = vector.extract_strided_slice %32 {offsets = [0, 0], sizes = [1, 1], strides = [1, 1]} : vector<4x1xf32> to vector<1x1xf32>
    %171 = vector.shape_cast %170 : vector<1x1xf32> to vector<1x1x1xf32>
    %cst_50 = arith.constant dense<0.000000e+00> : vector<1xf32>
    %172 = vector.multi_reduction <add>, %171, %cst_50 [1, 2] : vector<1x1x1xf32> to vector<1xf32>
    %173 = vector.shape_cast %172 : vector<1xf32> to vector<1x1x1xf32>
    %174 = vector.extract %173[0, 0, 0] : f32 from vector<1x1x1xf32>
    %cst_51 = arith.constant 4.000000e-01 : f32
    %175 = arith.subf %cst_51, %174 : f32
    %176 = arith.addf %175, %169 : f32
    %cst_52 = arith.constant 0.000000e+00 : f32
    %177 = arith.maximumf %cst_52, %176 : f32
    %178 = arith.addf %92, %157 : f32
    %179 = arith.addf %178, %177 : f32
    %c0_i32_53 = arith.constant 0 : i32
    %180 = vector.broadcast %c0_i32_53 : i32 to vector<1x128xi32>
    %181 = arith.cmpi eq, %38, %180 : vector<1x128xi32>
    %cst_54 = arith.constant 0.000000e+00 : f32
    %182 = vector.broadcast %179 : f32 to vector<1x128xf32>
    %183 = vector.broadcast %cst_54 : f32 to vector<1x128xf32>
    %184 = arith.select %181, %182, %183 : vector<1x128xi1>, vector<1x128xf32>
    %c1_i32_55 = arith.constant 1 : i32
    %185 = vector.broadcast %c1_i32_55 : i32 to vector<1x128xi32>
    %186 = arith.cmpi eq, %38, %185 : vector<1x128xi32>
    %cst_56 = arith.constant 0.000000e+00 : f32
    %187 = vector.broadcast %103 : f32 to vector<1x128xf32>
    %188 = vector.broadcast %cst_56 : f32 to vector<1x128xf32>
    %189 = arith.select %186, %187, %188 : vector<1x128xi1>, vector<1x128xf32>
    %190 = arith.addf %184, %189 : vector<1x128xf32>
    %c0_57 = arith.constant 0 : index
    %c0_58 = arith.constant 0 : index
    %c0_59 = arith.constant 0 : index
    %191 = vector.load %arg11[%c0_57, %c0_58, %c0_59] : memref<4x1x128xf32, #tpu.memory_space<vmem>>, vector<1x1x128xf32>
    %192 = vector.shape_cast %191 : vector<1x1x128xf32> to vector<1x128xf32>
    %193 = vector.shape_cast %190 : vector<1x128xf32> to vector<1x1x128xf32>
    tpu.vector_store %arg11[%c0_57, %c0_58, %c0_59], %193 {strides = array<i32>} : memref<4x1x128xf32, #tpu.memory_space<vmem>>, vector<1x1x128xf32>,
    %c1_i32_60 = arith.constant 1 : i32
    %194 = arith.addi %0, %c1_i32_60 : i32
    %195 = arith.index_cast %194 : i32 to index
    %196 = memref.load %arg1[%195] : memref<8xi32, #tpu.memory_space<smem>>
    %197 = vector.extract_strided_slice %7 {offsets = [8, 0], sizes = [1, 128], strides = [1, 1]} : vector<32x128xf32> to vector<1x128xf32>
    %cst_61 = arith.constant -1.000000e+30 : f32
    %198 = vector.broadcast %cst_61 : f32 to vector<1x128xf32>
    %199 = arith.select %42, %197, %198 : vector<1x128xi1>, vector<1x128xf32>
    %200 = vector.shape_cast %199 : vector<1x128xf32> to vector<1x1x128xf32>
    %cst_62 = arith.constant dense<0xFF800000> : vector<1xf32>
    %201 = vector.multi_reduction <maximumf>, %200, %cst_62 [1, 2] : vector<1x1x128xf32> to vector<1xf32>
    %202 = vector.shape_cast %201 : vector<1xf32> to vector<1x1x1xf32>
    %203 = vector.extract %202[0, 0, 0] : f32 from vector<1x1x1xf32>
    %204 = vector.broadcast %203 : f32 to vector<1x128xf32>
    %205 = arith.subf %199, %204 : vector<1x128xf32>
    %206 = math.exp %205 : vector<1x128xf32>
    %cst_63 = arith.constant 0.000000e+00 : f32
    %207 = vector.broadcast %cst_63 : f32 to vector<1x128xf32>
    %208 = arith.select %42, %206, %207 : vector<1x128xi1>, vector<1x128xf32>
    %209 = vector.shape_cast %208 : vector<1x128xf32> to vector<1x1x128xf32>
    %cst_64 = arith.constant dense<0.000000e+00> : vector<1xf32>
    %210 = vector.multi_reduction <add>, %209, %cst_64 [1, 2] : vector<1x1x128xf32> to vector<1xf32>
    %211 = vector.shape_cast %210 : vector<1xf32> to vector<1x1x1xf32>
    %212 = vector.extract %211[0, 0, 0] : f32 from vector<1x1x1xf32>
    %213 = math.log %212 : f32
    %214 = arith.addf %203, %213 : f32
    %215 = vector.broadcast %196 : i32 to vector<1x128xi32>
    %216 = arith.cmpi eq, %38, %215 : vector<1x128xi32>
    %cst_65 = arith.constant 0.000000e+00 : f32
    %217 = vector.broadcast %cst_65 : f32 to vector<1x128xf32>
    %218 = arith.select %216, %197, %217 : vector<1x128xi1>, vector<1x128xf32>
    %219 = vector.shape_cast %218 : vector<1x128xf32> to vector<1x1x128xf32>
    %cst_66 = arith.constant dense<0.000000e+00> : vector<1xf32>
    %220 = vector.multi_reduction <add>, %219, %cst_66 [1, 2] : vector<1x1x128xf32> to vector<1xf32>
    %221 = vector.shape_cast %220 : vector<1xf32> to vector<1x1x1xf32>
    %222 = vector.extract %221[0, 0, 0] : f32 from vector<1x1x1xf32>
    %223 = arith.index_cast %196 : i32 to index
    %224 = memref.load %arg10[%223] : memref<3xf32, #tpu.memory_space<smem>>
    %cst_67 = arith.constant 0.000000e+00 : f32
    %225 = arith.subf %cst_67, %224 : f32
    %226 = arith.subf %222, %214 : f32
    %227 = arith.mulf %225, %226 : f32
    %228 = vector.broadcast %203 : f32 to vector<1x128xf32>
    %229 = arith.cmpf oeq, %199, %228 : vector<1x128xf32>
    %c128_i32_68 = arith.constant 128 : i32
    %230 = vector.broadcast %c128_i32_68 : i32 to vector<1x128xi32>
    %231 = arith.select %229, %38, %230 : vector<1x128xi1>, vector<1x128xi32>
    %232 = vector.shape_cast %231 : vector<1x128xi32> to vector<1x1x128xi32>
    %cst_69 = arith.constant dense<2147483647> : vector<1xi32>
    %233 = vector.multi_reduction <minsi>, %232, %cst_69 [1, 2] : vector<1x1x128xi32> to vector<1xi32>
    %234 = vector.shape_cast %233 : vector<1xi32> to vector<1x1x1xi32>
    %235 = vector.extract %234[0, 0, 0] : i32 from vector<1x1x1xi32>
    %236 = arith.cmpi eq, %235, %196 : i32
    %237 = arith.extui %236 : i1 to i32
    %238 = arith.sitofp %237 : i32 to f32
    %239 = vector.extract_strided_slice %7 {offsets = [8, 0], sizes = [8, 128], strides = [1, 1]} : vector<32x128xf32> to vector<8x128xf32>
    %cst_70 = arith.constant -1.000000e+30 : f32
    %240 = vector.shape_cast %52 : vector<8x1xi1> to vector<8x1xi1>
    %241 = vector.broadcast %240 : vector<8x1xi1> to vector<8x128xi1>
    %242 = vector.broadcast %cst_70 : f32 to vector<8x128xf32>
    %243 = arith.select %241, %239, %242 : vector<8x128xi1>, vector<8x128xf32>
    %cst_71 = arith.constant dense<0xFF800000> : vector<128xf32>
    %244 = vector.multi_reduction <maximumf>, %243, %cst_71 [0] : vector<8x128xf32> to vector<128xf32>
    %245 = vector.shape_cast %244 : vector<128xf32> to vector<1x128xf32>
    %246 = vector.broadcast %245 : vector<1x128xf32> to vector<8x128xf32>
    %247 = arith.subf %243, %246 : vector<8x128xf32>
    %248 = math.exp %247 : vector<8x128xf32>
    %cst_72 = arith.constant 0.000000e+00 : f32
    %249 = vector.shape_cast %52 : vector<8x1xi1> to vector<8x1xi1>
    %250 = vector.broadcast %249 : vector<8x1xi1> to vector<8x128xi1>
    %251 = vector.broadcast %cst_72 : f32 to vector<8x128xf32>
    %252 = arith.select %250, %248, %251 : vector<8x128xi1>, vector<8x128xf32>
    %cst_73 = arith.constant dense<0.000000e+00> : vector<128xf32>
    %253 = vector.multi_reduction <add>, %252, %cst_73 [0] : vector<8x128xf32> to vector<128xf32>
    %254 = vector.shape_cast %253 : vector<128xf32> to vector<1x128xf32>
    %255 = math.log %254 : vector<1x128xf32>
    %256 = arith.addf %245, %255 : vector<1x128xf32>
    %c1_i32_74 = arith.constant 1 : i32
    %257 = arith.addi %0, %c1_i32_74 : i32
    %258 = arith.index_cast %257 : i32 to index
    %c0_75 = arith.constant 0 : index
    %259 = memref.load %arg2[%258, %c0_75] : memref<8x2xi32, #tpu.memory_space<smem>>
    %c1_i32_76 = arith.constant 1 : i32
    %260 = arith.addi %259, %c1_i32_76 : i32
    %c1_i32_77 = arith.constant 1 : i32
    %261 = arith.addi %0, %c1_i32_77 : i32
    %262 = arith.index_cast %261 : i32 to index
    %c1_78 = arith.constant 1 : index
    %263 = memref.load %arg2[%262, %c1_78] : memref<8x2xi32, #tpu.memory_space<smem>>
    %c1_i32_79 = arith.constant 1 : i32
    %264 = arith.addi %263, %c1_i32_79 : i32
    %265 = vector.broadcast %260 : i32 to vector<8x1xi32>
    %266 = arith.cmpi eq, %39, %265 : vector<8x1xi32>
    %c3_i32_80 = arith.constant 3 : i32
    %267 = vector.broadcast %c3_i32_80 : i32 to vector<1x128xi32>
    %268 = arith.cmpi eq, %38, %267 : vector<1x128xi32>
    %269 = vector.broadcast %266 : vector<8x1xi1> to vector<8x128xi1>
    %270 = vector.broadcast %268 : vector<1x128xi1> to vector<8x128xi1>
    %271 = arith.andi %269, %270 : vector<8x128xi1>
    %272 = vector.broadcast %264 : i32 to vector<8x1xi32>
    %273 = arith.cmpi eq, %39, %272 : vector<8x1xi32>
    %c4_i32_81 = arith.constant 4 : i32
    %274 = vector.broadcast %c4_i32_81 : i32 to vector<1x128xi32>
    %275 = arith.cmpi eq, %38, %274 : vector<1x128xi32>
    %276 = vector.broadcast %273 : vector<8x1xi1> to vector<8x128xi1>
    %277 = vector.broadcast %275 : vector<1x128xi1> to vector<8x128xi1>
    %278 = arith.andi %276, %277 : vector<8x128xi1>
    %279 = arith.ori %271, %278 : vector<8x128xi1>
    %cst_82 = arith.constant 0.000000e+00 : f32
    %280 = vector.broadcast %cst_82 : f32 to vector<8x128xf32>
    %281 = arith.select %279, %239, %280 : vector<8x128xi1>, vector<8x128xf32>
    %282 = vector.shape_cast %281 : vector<8x128xf32> to vector<1x8x128xf32>
    %cst_83 = arith.constant dense<0.000000e+00> : vector<1xf32>
    %283 = vector.multi_reduction <add>, %282, %cst_83 [1, 2] : vector<1x8x128xf32> to vector<1xf32>
    %284 = vector.shape_cast %283 : vector<1xf32> to vector<1x1x1xf32>
    %285 = vector.extract %284[0, 0, 0] : f32 from vector<1x1x1xf32>
    %cst_84 = arith.constant 0.000000e+00 : f32
    %286 = vector.broadcast %cst_84 : f32 to vector<1x128xf32>
    %287 = arith.select %47, %256, %286 : vector<1x128xi1>, vector<1x128xf32>
    %288 = vector.shape_cast %287 : vector<1x128xf32> to vector<1x1x128xf32>
    %cst_85 = arith.constant dense<0.000000e+00> : vector<1xf32>
    %289 = vector.multi_reduction <add>, %288, %cst_85 [1, 2] : vector<1x1x128xf32> to vector<1xf32>
    %290 = vector.shape_cast %289 : vector<1xf32> to vector<1x1x1xf32>
    %291 = vector.extract %290[0, 0, 0] : f32 from vector<1x1x1xf32>
    %292 = arith.subf %291, %285 : f32
    %c1_i32_86 = arith.constant 1 : i32
    %293 = arith.addi %0, %c1_i32_86 : i32
    %294 = arith.index_cast %293 : i32 to index
    %295 = memref.load %arg3[%294] : memref<8xi32, #tpu.memory_space<smem>>
    %296 = vector.broadcast %295 : i32 to vector<1x128xi32>
    %297 = arith.cmpi eq, %40, %296 : vector<1x128xi32>
    %298 = vector.extract_strided_slice %58 {offsets = [1, 0], sizes = [1, 128], strides = [1, 1]} : vector<4x128xf32> to vector<1x128xf32>
    %cst_87 = arith.constant -1.000000e+00 : f32
    %299 = vector.broadcast %cst_87 : f32 to vector<1x128xf32>
    %300 = arith.select %297, %299, %298 : vector<1x128xi1>, vector<1x128xf32>
    %301 = vector.shape_cast %300 : vector<1x128xf32> to vector<1x1x128xf32>
    %cst_88 = arith.constant dense<0xFF800000> : vector<1xf32>
    %302 = vector.multi_reduction <maximumf>, %301, %cst_88 [1, 2] : vector<1x1x128xf32> to vector<1xf32>
    %303 = vector.shape_cast %302 : vector<1xf32> to vector<1x1x1xf32>
    %304 = vector.extract %303[0, 0, 0] : f32 from vector<1x1x1xf32>
    %305 = vector.extract_strided_slice %32 {offsets = [1, 0], sizes = [1, 1], strides = [1, 1]} : vector<4x1xf32> to vector<1x1xf32>
    %306 = vector.shape_cast %305 : vector<1x1xf32> to vector<1x1x1xf32>
    %cst_89 = arith.constant dense<0.000000e+00> : vector<1xf32>
    %307 = vector.multi_reduction <add>, %306, %cst_89 [1, 2] : vector<1x1x1xf32> to vector<1xf32>
    %308 = vector.shape_cast %307 : vector<1xf32> to vector<1x1x1xf32>
    %309 = vector.extract %308[0, 0, 0] : f32 from vector<1x1x1xf32>
    %cst_90 = arith.constant 4.000000e-01 : f32
    %310 = arith.subf %cst_90, %309 : f32
    %311 = arith.addf %310, %304 : f32
    %cst_91 = arith.constant 0.000000e+00 : f32
    %312 = arith.maximumf %cst_91, %311 : f32
    %313 = arith.addf %227, %292 : f32
    %314 = arith.addf %313, %312 : f32
    %c0_i32_92 = arith.constant 0 : i32
    %315 = vector.broadcast %c0_i32_92 : i32 to vector<1x128xi32>
    %316 = arith.cmpi eq, %38, %315 : vector<1x128xi32>
    %cst_93 = arith.constant 0.000000e+00 : f32
    %317 = vector.broadcast %314 : f32 to vector<1x128xf32>
    %318 = vector.broadcast %cst_93 : f32 to vector<1x128xf32>
    %319 = arith.select %316, %317, %318 : vector<1x128xi1>, vector<1x128xf32>
    %c1_i32_94 = arith.constant 1 : i32
    %320 = vector.broadcast %c1_i32_94 : i32 to vector<1x128xi32>
    %321 = arith.cmpi eq, %38, %320 : vector<1x128xi32>
    %cst_95 = arith.constant 0.000000e+00 : f32
    %322 = vector.broadcast %238 : f32 to vector<1x128xf32>
    %323 = vector.broadcast %cst_95 : f32 to vector<1x128xf32>
    %324 = arith.select %321, %322, %323 : vector<1x128xi1>, vector<1x128xf32>
    %325 = arith.addf %319, %324 : vector<1x128xf32>
    %c1_96 = arith.constant 1 : index
    %c0_97 = arith.constant 0 : index
    %c0_98 = arith.constant 0 : index
    %326 = vector.load %arg11[%c1_96, %c0_97, %c0_98] : memref<4x1x128xf32, #tpu.memory_space<vmem>>, vector<1x1x128xf32>
    %327 = vector.shape_cast %326 : vector<1x1x128xf32> to vector<1x128xf32>
    %328 = vector.shape_cast %325 : vector<1x128xf32> to vector<1x1x128xf32>
    tpu.vector_store %arg11[%c1_96, %c0_97, %c0_98], %328 {strides = array<i32>} : memref<4x1x128xf32, #tpu.memory_space<vmem>>, vector<1x1x128xf32>,
    %c2_i32 = arith.constant 2 : i32
    %329 = arith.addi %0, %c2_i32 : i32
    %330 = arith.index_cast %329 : i32 to index
    %331 = memref.load %arg1[%330] : memref<8xi32, #tpu.memory_space<smem>>
    %332 = vector.extract_strided_slice %7 {offsets = [16, 0], sizes = [1, 128], strides = [1, 1]} : vector<32x128xf32> to vector<1x128xf32>
    %cst_99 = arith.constant -1.000000e+30 : f32
    %333 = vector.broadcast %cst_99 : f32 to vector<1x128xf32>
    %334 = arith.select %42, %332, %333 : vector<1x128xi1>, vector<1x128xf32>
    %335 = vector.shape_cast %334 : vector<1x128xf32> to vector<1x1x128xf32>
    %cst_100 = arith.constant dense<0xFF800000> : vector<1xf32>
    %336 = vector.multi_reduction <maximumf>, %335, %cst_100 [1, 2] : vector<1x1x128xf32> to vector<1xf32>
    %337 = vector.shape_cast %336 : vector<1xf32> to vector<1x1x1xf32>
    %338 = vector.extract %337[0, 0, 0] : f32 from vector<1x1x1xf32>
    %339 = vector.broadcast %338 : f32 to vector<1x128xf32>
    %340 = arith.subf %334, %339 : vector<1x128xf32>
    %341 = math.exp %340 : vector<1x128xf32>
    %cst_101 = arith.constant 0.000000e+00 : f32
    %342 = vector.broadcast %cst_101 : f32 to vector<1x128xf32>
    %343 = arith.select %42, %341, %342 : vector<1x128xi1>, vector<1x128xf32>
    %344 = vector.shape_cast %343 : vector<1x128xf32> to vector<1x1x128xf32>
    %cst_102 = arith.constant dense<0.000000e+00> : vector<1xf32>
    %345 = vector.multi_reduction <add>, %344, %cst_102 [1, 2] : vector<1x1x128xf32> to vector<1xf32>
    %346 = vector.shape_cast %345 : vector<1xf32> to vector<1x1x1xf32>
    %347 = vector.extract %346[0, 0, 0] : f32 from vector<1x1x1xf32>
    %348 = math.log %347 : f32
    %349 = arith.addf %338, %348 : f32
    %350 = vector.broadcast %331 : i32 to vector<1x128xi32>
    %351 = arith.cmpi eq, %38, %350 : vector<1x128xi32>
    %cst_103 = arith.constant 0.000000e+00 : f32
    %352 = vector.broadcast %cst_103 : f32 to vector<1x128xf32>
    %353 = arith.select %351, %332, %352 : vector<1x128xi1>, vector<1x128xf32>
    %354 = vector.shape_cast %353 : vector<1x128xf32> to vector<1x1x128xf32>
    %cst_104 = arith.constant dense<0.000000e+00> : vector<1xf32>
    %355 = vector.multi_reduction <add>, %354, %cst_104 [1, 2] : vector<1x1x128xf32> to vector<1xf32>
    %356 = vector.shape_cast %355 : vector<1xf32> to vector<1x1x1xf32>
    %357 = vector.extract %356[0, 0, 0] : f32 from vector<1x1x1xf32>
    %358 = arith.index_cast %331 : i32 to index
    %359 = memref.load %arg10[%358] : memref<3xf32, #tpu.memory_space<smem>>
    %cst_105 = arith.constant 0.000000e+00 : f32
    %360 = arith.subf %cst_105, %359 : f32
    %361 = arith.subf %357, %349 : f32
    %362 = arith.mulf %360, %361 : f32
    %363 = vector.broadcast %338 : f32 to vector<1x128xf32>
    %364 = arith.cmpf oeq, %334, %363 : vector<1x128xf32>
    %c128_i32_106 = arith.constant 128 : i32
    %365 = vector.broadcast %c128_i32_106 : i32 to vector<1x128xi32>
    %366 = arith.select %364, %38, %365 : vector<1x128xi1>, vector<1x128xi32>
    %367 = vector.shape_cast %366 : vector<1x128xi32> to vector<1x1x128xi32>
    %cst_107 = arith.constant dense<2147483647> : vector<1xi32>
    %368 = vector.multi_reduction <minsi>, %367, %cst_107 [1, 2] : vector<1x1x128xi32> to vector<1xi32>
    %369 = vector.shape_cast %368 : vector<1xi32> to vector<1x1x1xi32>
    %370 = vector.extract %369[0, 0, 0] : i32 from vector<1x1x1xi32>
    %371 = arith.cmpi eq, %370, %331 : i32
    %372 = arith.extui %371 : i1 to i32
    %373 = arith.sitofp %372 : i32 to f32
    %374 = vector.extract_strided_slice %7 {offsets = [16, 0], sizes = [8, 128], strides = [1, 1]} : vector<32x128xf32> to vector<8x128xf32>
    %cst_108 = arith.constant -1.000000e+30 : f32
    %375 = vector.shape_cast %52 : vector<8x1xi1> to vector<8x1xi1>
    %376 = vector.broadcast %375 : vector<8x1xi1> to vector<8x128xi1>
    %377 = vector.broadcast %cst_108 : f32 to vector<8x128xf32>
    %378 = arith.select %376, %374, %377 : vector<8x128xi1>, vector<8x128xf32>
    %cst_109 = arith.constant dense<0xFF800000> : vector<128xf32>
    %379 = vector.multi_reduction <maximumf>, %378, %cst_109 [0] : vector<8x128xf32> to vector<128xf32>
    %380 = vector.shape_cast %379 : vector<128xf32> to vector<1x128xf32>
    %381 = vector.broadcast %380 : vector<1x128xf32> to vector<8x128xf32>
    %382 = arith.subf %378, %381 : vector<8x128xf32>
    %383 = math.exp %382 : vector<8x128xf32>
    %cst_110 = arith.constant 0.000000e+00 : f32
    %384 = vector.shape_cast %52 : vector<8x1xi1> to vector<8x1xi1>
    %385 = vector.broadcast %384 : vector<8x1xi1> to vector<8x128xi1>
    %386 = vector.broadcast %cst_110 : f32 to vector<8x128xf32>
    %387 = arith.select %385, %383, %386 : vector<8x128xi1>, vector<8x128xf32>
    %cst_111 = arith.constant dense<0.000000e+00> : vector<128xf32>
    %388 = vector.multi_reduction <add>, %387, %cst_111 [0] : vector<8x128xf32> to vector<128xf32>
    %389 = vector.shape_cast %388 : vector<128xf32> to vector<1x128xf32>
    %390 = math.log %389 : vector<1x128xf32>
    %391 = arith.addf %380, %390 : vector<1x128xf32>
    %c2_i32_112 = arith.constant 2 : i32
    %392 = arith.addi %0, %c2_i32_112 : i32
    %393 = arith.index_cast %392 : i32 to index
    %c0_113 = arith.constant 0 : index
    %394 = memref.load %arg2[%393, %c0_113] : memref<8x2xi32, #tpu.memory_space<smem>>
    %c1_i32_114 = arith.constant 1 : i32
    %395 = arith.addi %394, %c1_i32_114 : i32
    %c2_i32_115 = arith.constant 2 : i32
    %396 = arith.addi %0, %c2_i32_115 : i32
    %397 = arith.index_cast %396 : i32 to index
    %c1_116 = arith.constant 1 : index
    %398 = memref.load %arg2[%397, %c1_116] : memref<8x2xi32, #tpu.memory_space<smem>>
    %c1_i32_117 = arith.constant 1 : i32
    %399 = arith.addi %398, %c1_i32_117 : i32
    %400 = vector.broadcast %395 : i32 to vector<8x1xi32>
    %401 = arith.cmpi eq, %39, %400 : vector<8x1xi32>
    %c3_i32_118 = arith.constant 3 : i32
    %402 = vector.broadcast %c3_i32_118 : i32 to vector<1x128xi32>
    %403 = arith.cmpi eq, %38, %402 : vector<1x128xi32>
    %404 = vector.broadcast %401 : vector<8x1xi1> to vector<8x128xi1>
    %405 = vector.broadcast %403 : vector<1x128xi1> to vector<8x128xi1>
    %406 = arith.andi %404, %405 : vector<8x128xi1>
    %407 = vector.broadcast %399 : i32 to vector<8x1xi32>
    %408 = arith.cmpi eq, %39, %407 : vector<8x1xi32>
    %c4_i32_119 = arith.constant 4 : i32
    %409 = vector.broadcast %c4_i32_119 : i32 to vector<1x128xi32>
    %410 = arith.cmpi eq, %38, %409 : vector<1x128xi32>
    %411 = vector.broadcast %408 : vector<8x1xi1> to vector<8x128xi1>
    %412 = vector.broadcast %410 : vector<1x128xi1> to vector<8x128xi1>
    %413 = arith.andi %411, %412 : vector<8x128xi1>
    %414 = arith.ori %406, %413 : vector<8x128xi1>
    %cst_120 = arith.constant 0.000000e+00 : f32
    %415 = vector.broadcast %cst_120 : f32 to vector<8x128xf32>
    %416 = arith.select %414, %374, %415 : vector<8x128xi1>, vector<8x128xf32>
    %417 = vector.shape_cast %416 : vector<8x128xf32> to vector<1x8x128xf32>
    %cst_121 = arith.constant dense<0.000000e+00> : vector<1xf32>
    %418 = vector.multi_reduction <add>, %417, %cst_121 [1, 2] : vector<1x8x128xf32> to vector<1xf32>
    %419 = vector.shape_cast %418 : vector<1xf32> to vector<1x1x1xf32>
    %420 = vector.extract %419[0, 0, 0] : f32 from vector<1x1x1xf32>
    %cst_122 = arith.constant 0.000000e+00 : f32
    %421 = vector.broadcast %cst_122 : f32 to vector<1x128xf32>
    %422 = arith.select %47, %391, %421 : vector<1x128xi1>, vector<1x128xf32>
    %423 = vector.shape_cast %422 : vector<1x128xf32> to vector<1x1x128xf32>
    %cst_123 = arith.constant dense<0.000000e+00> : vector<1xf32>
    %424 = vector.multi_reduction <add>, %423, %cst_123 [1, 2] : vector<1x1x128xf32> to vector<1xf32>
    %425 = vector.shape_cast %424 : vector<1xf32> to vector<1x1x1xf32>
    %426 = vector.extract %425[0, 0, 0] : f32 from vector<1x1x1xf32>
    %427 = arith.subf %426, %420 : f32
    %c2_i32_124 = arith.constant 2 : i32
    %428 = arith.addi %0, %c2_i32_124 : i32
    %429 = arith.index_cast %428 : i32 to index
    %430 = memref.load %arg3[%429] : memref<8xi32, #tpu.memory_space<smem>>
    %431 = vector.broadcast %430 : i32 to vector<1x128xi32>
    %432 = arith.cmpi eq, %40, %431 : vector<1x128xi32>
    %433 = vector.extract_strided_slice %58 {offsets = [2, 0], sizes = [1, 128], strides = [1, 1]} : vector<4x128xf32> to vector<1x128xf32>
    %cst_125 = arith.constant -1.000000e+00 : f32
    %434 = vector.broadcast %cst_125 : f32 to vector<1x128xf32>
    %435 = arith.select %432, %434, %433 : vector<1x128xi1>, vector<1x128xf32>
    %436 = vector.shape_cast %435 : vector<1x128xf32> to vector<1x1x128xf32>
    %cst_126 = arith.constant dense<0xFF800000> : vector<1xf32>
    %437 = vector.multi_reduction <maximumf>, %436, %cst_126 [1, 2] : vector<1x1x128xf32> to vector<1xf32>
    %438 = vector.shape_cast %437 : vector<1xf32> to vector<1x1x1xf32>
    %439 = vector.extract %438[0, 0, 0] : f32 from vector<1x1x1xf32>
    %440 = vector.extract_strided_slice %32 {offsets = [2, 0], sizes = [1, 1], strides = [1, 1]} : vector<4x1xf32> to vector<1x1xf32>
    %441 = vector.shape_cast %440 : vector<1x1xf32> to vector<1x1x1xf32>
    %cst_127 = arith.constant dense<0.000000e+00> : vector<1xf32>
    %442 = vector.multi_reduction <add>, %441, %cst_127 [1, 2] : vector<1x1x1xf32> to vector<1xf32>
    %443 = vector.shape_cast %442 : vector<1xf32> to vector<1x1x1xf32>
    %444 = vector.extract %443[0, 0, 0] : f32 from vector<1x1x1xf32>
    %cst_128 = arith.constant 4.000000e-01 : f32
    %445 = arith.subf %cst_128, %444 : f32
    %446 = arith.addf %445, %439 : f32
    %cst_129 = arith.constant 0.000000e+00 : f32
    %447 = arith.maximumf %cst_129, %446 : f32
    %448 = arith.addf %362, %427 : f32
    %449 = arith.addf %448, %447 : f32
    %c0_i32_130 = arith.constant 0 : i32
    %450 = vector.broadcast %c0_i32_130 : i32 to vector<1x128xi32>
    %451 = arith.cmpi eq, %38, %450 : vector<1x128xi32>
    %cst_131 = arith.constant 0.000000e+00 : f32
    %452 = vector.broadcast %449 : f32 to vector<1x128xf32>
    %453 = vector.broadcast %cst_131 : f32 to vector<1x128xf32>
    %454 = arith.select %451, %452, %453 : vector<1x128xi1>, vector<1x128xf32>
    %c1_i32_132 = arith.constant 1 : i32
    %455 = vector.broadcast %c1_i32_132 : i32 to vector<1x128xi32>
    %456 = arith.cmpi eq, %38, %455 : vector<1x128xi32>
    %cst_133 = arith.constant 0.000000e+00 : f32
    %457 = vector.broadcast %373 : f32 to vector<1x128xf32>
    %458 = vector.broadcast %cst_133 : f32 to vector<1x128xf32>
    %459 = arith.select %456, %457, %458 : vector<1x128xi1>, vector<1x128xf32>
    %460 = arith.addf %454, %459 : vector<1x128xf32>
    %c2 = arith.constant 2 : index
    %c0_134 = arith.constant 0 : index
    %c0_135 = arith.constant 0 : index
    %461 = vector.load %arg11[%c2, %c0_134, %c0_135] : memref<4x1x128xf32, #tpu.memory_space<vmem>>, vector<1x1x128xf32>
    %462 = vector.shape_cast %461 : vector<1x1x128xf32> to vector<1x128xf32>
    %463 = vector.shape_cast %460 : vector<1x128xf32> to vector<1x1x128xf32>
    tpu.vector_store %arg11[%c2, %c0_134, %c0_135], %463 {strides = array<i32>} : memref<4x1x128xf32, #tpu.memory_space<vmem>>, vector<1x1x128xf32>,
    %c3_i32_136 = arith.constant 3 : i32
    %464 = arith.addi %0, %c3_i32_136 : i32
    %465 = arith.index_cast %464 : i32 to index
    %466 = memref.load %arg1[%465] : memref<8xi32, #tpu.memory_space<smem>>
    %467 = vector.extract_strided_slice %7 {offsets = [24, 0], sizes = [1, 128], strides = [1, 1]} : vector<32x128xf32> to vector<1x128xf32>
    %cst_137 = arith.constant -1.000000e+30 : f32
    %468 = vector.broadcast %cst_137 : f32 to vector<1x128xf32>
    %469 = arith.select %42, %467, %468 : vector<1x128xi1>, vector<1x128xf32>
    %470 = vector.shape_cast %469 : vector<1x128xf32> to vector<1x1x128xf32>
    %cst_138 = arith.constant dense<0xFF800000> : vector<1xf32>
    %471 = vector.multi_reduction <maximumf>, %470, %cst_138 [1, 2] : vector<1x1x128xf32> to vector<1xf32>
    %472 = vector.shape_cast %471 : vector<1xf32> to vector<1x1x1xf32>
    %473 = vector.extract %472[0, 0, 0] : f32 from vector<1x1x1xf32>
    %474 = vector.broadcast %473 : f32 to vector<1x128xf32>
    %475 = arith.subf %469, %474 : vector<1x128xf32>
    %476 = math.exp %475 : vector<1x128xf32>
    %cst_139 = arith.constant 0.000000e+00 : f32
    %477 = vector.broadcast %cst_139 : f32 to vector<1x128xf32>
    %478 = arith.select %42, %476, %477 : vector<1x128xi1>, vector<1x128xf32>
    %479 = vector.shape_cast %478 : vector<1x128xf32> to vector<1x1x128xf32>
    %cst_140 = arith.constant dense<0.000000e+00> : vector<1xf32>
    %480 = vector.multi_reduction <add>, %479, %cst_140 [1, 2] : vector<1x1x128xf32> to vector<1xf32>
    %481 = vector.shape_cast %480 : vector<1xf32> to vector<1x1x1xf32>
    %482 = vector.extract %481[0, 0, 0] : f32 from vector<1x1x1xf32>
    %483 = math.log %482 : f32
    %484 = arith.addf %473, %483 : f32
    %485 = vector.broadcast %466 : i32 to vector<1x128xi32>
    %486 = arith.cmpi eq, %38, %485 : vector<1x128xi32>
    %cst_141 = arith.constant 0.000000e+00 : f32
    %487 = vector.broadcast %cst_141 : f32 to vector<1x128xf32>
    %488 = arith.select %486, %467, %487 : vector<1x128xi1>, vector<1x128xf32>
    %489 = vector.shape_cast %488 : vector<1x128xf32> to vector<1x1x128xf32>
    %cst_142 = arith.constant dense<0.000000e+00> : vector<1xf32>
    %490 = vector.multi_reduction <add>, %489, %cst_142 [1, 2] : vector<1x1x128xf32> to vector<1xf32>
    %491 = vector.shape_cast %490 : vector<1xf32> to vector<1x1x1xf32>
    %492 = vector.extract %491[0, 0, 0] : f32 from vector<1x1x1xf32>
    %493 = arith.index_cast %466 : i32 to index
    %494 = memref.load %arg10[%493] : memref<3xf32, #tpu.memory_space<smem>>
    %cst_143 = arith.constant 0.000000e+00 : f32
    %495 = arith.subf %cst_143, %494 : f32
    %496 = arith.subf %492, %484 : f32
    %497 = arith.mulf %495, %496 : f32
    %498 = vector.broadcast %473 : f32 to vector<1x128xf32>
    %499 = arith.cmpf oeq, %469, %498 : vector<1x128xf32>
    %c128_i32_144 = arith.constant 128 : i32
    %500 = vector.broadcast %c128_i32_144 : i32 to vector<1x128xi32>
    %501 = arith.select %499, %38, %500 : vector<1x128xi1>, vector<1x128xi32>
    %502 = vector.shape_cast %501 : vector<1x128xi32> to vector<1x1x128xi32>
    %cst_145 = arith.constant dense<2147483647> : vector<1xi32>
    %503 = vector.multi_reduction <minsi>, %502, %cst_145 [1, 2] : vector<1x1x128xi32> to vector<1xi32>
    %504 = vector.shape_cast %503 : vector<1xi32> to vector<1x1x1xi32>
    %505 = vector.extract %504[0, 0, 0] : i32 from vector<1x1x1xi32>
    %506 = arith.cmpi eq, %505, %466 : i32
    %507 = arith.extui %506 : i1 to i32
    %508 = arith.sitofp %507 : i32 to f32
    %509 = vector.extract_strided_slice %7 {offsets = [24, 0], sizes = [8, 128], strides = [1, 1]} : vector<32x128xf32> to vector<8x128xf32>
    %cst_146 = arith.constant -1.000000e+30 : f32
    %510 = vector.shape_cast %52 : vector<8x1xi1> to vector<8x1xi1>
    %511 = vector.broadcast %510 : vector<8x1xi1> to vector<8x128xi1>
    %512 = vector.broadcast %cst_146 : f32 to vector<8x128xf32>
    %513 = arith.select %511, %509, %512 : vector<8x128xi1>, vector<8x128xf32>
    %cst_147 = arith.constant dense<0xFF800000> : vector<128xf32>
    %514 = vector.multi_reduction <maximumf>, %513, %cst_147 [0] : vector<8x128xf32> to vector<128xf32>
    %515 = vector.shape_cast %514 : vector<128xf32> to vector<1x128xf32>
    %516 = vector.broadcast %515 : vector<1x128xf32> to vector<8x128xf32>
    %517 = arith.subf %513, %516 : vector<8x128xf32>
    %518 = math.exp %517 : vector<8x128xf32>
    %cst_148 = arith.constant 0.000000e+00 : f32
    %519 = vector.shape_cast %52 : vector<8x1xi1> to vector<8x1xi1>
    %520 = vector.broadcast %519 : vector<8x1xi1> to vector<8x128xi1>
    %521 = vector.broadcast %cst_148 : f32 to vector<8x128xf32>
    %522 = arith.select %520, %518, %521 : vector<8x128xi1>, vector<8x128xf32>
    %cst_149 = arith.constant dense<0.000000e+00> : vector<128xf32>
    %523 = vector.multi_reduction <add>, %522, %cst_149 [0] : vector<8x128xf32> to vector<128xf32>
    %524 = vector.shape_cast %523 : vector<128xf32> to vector<1x128xf32>
    %525 = math.log %524 : vector<1x128xf32>
    %526 = arith.addf %515, %525 : vector<1x128xf32>
    %c3_i32_150 = arith.constant 3 : i32
    %527 = arith.addi %0, %c3_i32_150 : i32
    %528 = arith.index_cast %527 : i32 to index
    %c0_151 = arith.constant 0 : index
    %529 = memref.load %arg2[%528, %c0_151] : memref<8x2xi32, #tpu.memory_space<smem>>
    %c1_i32_152 = arith.constant 1 : i32
    %530 = arith.addi %529, %c1_i32_152 : i32
    %c3_i32_153 = arith.constant 3 : i32
    %531 = arith.addi %0, %c3_i32_153 : i32
    %532 = arith.index_cast %531 : i32 to index
    %c1_154 = arith.constant 1 : index
    %533 = memref.load %arg2[%532, %c1_154] : memref<8x2xi32, #tpu.memory_space<smem>>
    %c1_i32_155 = arith.constant 1 : i32
    %534 = arith.addi %533, %c1_i32_155 : i32
    %535 = vector.broadcast %530 : i32 to vector<8x1xi32>
    %536 = arith.cmpi eq, %39, %535 : vector<8x1xi32>
    %c3_i32_156 = arith.constant 3 : i32
    %537 = vector.broadcast %c3_i32_156 : i32 to vector<1x128xi32>
    %538 = arith.cmpi eq, %38, %537 : vector<1x128xi32>
    %539 = vector.broadcast %536 : vector<8x1xi1> to vector<8x128xi1>
    %540 = vector.broadcast %538 : vector<1x128xi1> to vector<8x128xi1>
    %541 = arith.andi %539, %540 : vector<8x128xi1>
    %542 = vector.broadcast %534 : i32 to vector<8x1xi32>
    %543 = arith.cmpi eq, %39, %542 : vector<8x1xi32>
    %c4_i32_157 = arith.constant 4 : i32
    %544 = vector.broadcast %c4_i32_157 : i32 to vector<1x128xi32>
    %545 = arith.cmpi eq, %38, %544 : vector<1x128xi32>
    %546 = vector.broadcast %543 : vector<8x1xi1> to vector<8x128xi1>
    %547 = vector.broadcast %545 : vector<1x128xi1> to vector<8x128xi1>
    %548 = arith.andi %546, %547 : vector<8x128xi1>
    %549 = arith.ori %541, %548 : vector<8x128xi1>
    %cst_158 = arith.constant 0.000000e+00 : f32
    %550 = vector.broadcast %cst_158 : f32 to vector<8x128xf32>
    %551 = arith.select %549, %509, %550 : vector<8x128xi1>, vector<8x128xf32>
    %552 = vector.shape_cast %551 : vector<8x128xf32> to vector<1x8x128xf32>
    %cst_159 = arith.constant dense<0.000000e+00> : vector<1xf32>
    %553 = vector.multi_reduction <add>, %552, %cst_159 [1, 2] : vector<1x8x128xf32> to vector<1xf32>
    %554 = vector.shape_cast %553 : vector<1xf32> to vector<1x1x1xf32>
    %555 = vector.extract %554[0, 0, 0] : f32 from vector<1x1x1xf32>
    %cst_160 = arith.constant 0.000000e+00 : f32
    %556 = vector.broadcast %cst_160 : f32 to vector<1x128xf32>
    %557 = arith.select %47, %526, %556 : vector<1x128xi1>, vector<1x128xf32>
    %558 = vector.shape_cast %557 : vector<1x128xf32> to vector<1x1x128xf32>
    %cst_161 = arith.constant dense<0.000000e+00> : vector<1xf32>
    %559 = vector.multi_reduction <add>, %558, %cst_161 [1, 2] : vector<1x1x128xf32> to vector<1xf32>
    %560 = vector.shape_cast %559 : vector<1xf32> to vector<1x1x1xf32>
    %561 = vector.extract %560[0, 0, 0] : f32 from vector<1x1x1xf32>
    %562 = arith.subf %561, %555 : f32
    %c3_i32_162 = arith.constant 3 : i32
    %563 = arith.addi %0, %c3_i32_162 : i32
    %564 = arith.index_cast %563 : i32 to index
    %565 = memref.load %arg3[%564] : memref<8xi32, #tpu.memory_space<smem>>
    %566 = vector.broadcast %565 : i32 to vector<1x128xi32>
    %567 = arith.cmpi eq, %40, %566 : vector<1x128xi32>
    %568 = vector.extract_strided_slice %58 {offsets = [3, 0], sizes = [1, 128], strides = [1, 1]} : vector<4x128xf32> to vector<1x128xf32>
    %cst_163 = arith.constant -1.000000e+00 : f32
    %569 = vector.broadcast %cst_163 : f32 to vector<1x128xf32>
    %570 = arith.select %567, %569, %568 : vector<1x128xi1>, vector<1x128xf32>
    %571 = vector.shape_cast %570 : vector<1x128xf32> to vector<1x1x128xf32>
    %cst_164 = arith.constant dense<0xFF800000> : vector<1xf32>
    %572 = vector.multi_reduction <maximumf>, %571, %cst_164 [1, 2] : vector<1x1x128xf32> to vector<1xf32>
    %573 = vector.shape_cast %572 : vector<1xf32> to vector<1x1x1xf32>
    %574 = vector.extract %573[0, 0, 0] : f32 from vector<1x1x1xf32>
    %575 = vector.extract_strided_slice %32 {offsets = [3, 0], sizes = [1, 1], strides = [1, 1]} : vector<4x1xf32> to vector<1x1xf32>
    %576 = vector.shape_cast %575 : vector<1x1xf32> to vector<1x1x1xf32>
    %cst_165 = arith.constant dense<0.000000e+00> : vector<1xf32>
    %577 = vector.multi_reduction <add>, %576, %cst_165 [1, 2] : vector<1x1x1xf32> to vector<1xf32>
    %578 = vector.shape_cast %577 : vector<1xf32> to vector<1x1x1xf32>
    %579 = vector.extract %578[0, 0, 0] : f32 from vector<1x1x1xf32>
    %cst_166 = arith.constant 4.000000e-01 : f32
    %580 = arith.subf %cst_166, %579 : f32
    %581 = arith.addf %580, %574 : f32
    %cst_167 = arith.constant 0.000000e+00 : f32
    %582 = arith.maximumf %cst_167, %581 : f32
    %583 = arith.addf %497, %562 : f32
    %584 = arith.addf %583, %582 : f32
    %c0_i32_168 = arith.constant 0 : i32
    %585 = vector.broadcast %c0_i32_168 : i32 to vector<1x128xi32>
    %586 = arith.cmpi eq, %38, %585 : vector<1x128xi32>
    %cst_169 = arith.constant 0.000000e+00 : f32
    %587 = vector.broadcast %584 : f32 to vector<1x128xf32>
    %588 = vector.broadcast %cst_169 : f32 to vector<1x128xf32>
    %589 = arith.select %586, %587, %588 : vector<1x128xi1>, vector<1x128xf32>
    %c1_i32_170 = arith.constant 1 : i32
    %590 = vector.broadcast %c1_i32_170 : i32 to vector<1x128xi32>
    %591 = arith.cmpi eq, %38, %590 : vector<1x128xi32>
    %cst_171 = arith.constant 0.000000e+00 : f32
    %592 = vector.broadcast %508 : f32 to vector<1x128xf32>
    %593 = vector.broadcast %cst_171 : f32 to vector<1x128xf32>
    %594 = arith.select %591, %592, %593 : vector<1x128xi1>, vector<1x128xf32>
    %595 = arith.addf %589, %594 : vector<1x128xf32>
    %c3 = arith.constant 3 : index
    %c0_172 = arith.constant 0 : index
    %c0_173 = arith.constant 0 : index
    %596 = vector.load %arg11[%c3, %c0_172, %c0_173] : memref<4x1x128xf32, #tpu.memory_space<vmem>>, vector<1x1x128xf32>
    %597 = vector.shape_cast %596 : vector<1x1x128xf32> to vector<1x128xf32>
    %598 = vector.shape_cast %595 : vector<1x128xf32> to vector<1x1x128xf32>
    tpu.vector_store %arg11[%c3, %c0_172, %c0_173], %598 {strides = array<i32>} : memref<4x1x128xf32, #tpu.memory_space<vmem>>, vector<1x1x128xf32>,
    return
  }
  func.func @transform_0(%arg0: i32, %arg1: memref<8xi32, #tpu.memory_space<smem>>, %arg2: memref<8x2xi32, #tpu.memory_space<smem>>, %arg3: memref<8xi32, #tpu.memory_space<smem>>) -> (i32, i32, i32) {
    %c0_i32 = arith.constant 0 : i32
    %c0_i32_0 = arith.constant 0 : i32
    %c0_i32_1 = arith.constant 0 : i32
    return %arg0, %c0_i32, %c0_i32_0 : i32, i32, i32
  }
  func.func @transform_1(%arg0: i32, %arg1: memref<8xi32, #tpu.memory_space<smem>>, %arg2: memref<8x2xi32, #tpu.memory_space<smem>>, %arg3: memref<8xi32, #tpu.memory_space<smem>>) -> (i32, i32) {
    %c0_i32 = arith.constant 0 : i32
    %c0_i32_0 = arith.constant 0 : i32
    %c0_i32_1 = arith.constant 0 : i32
    return %c0_i32, %c0_i32_0 : i32, i32
  }
  func.func @transform_2(%arg0: i32, %arg1: memref<8xi32, #tpu.memory_space<smem>>, %arg2: memref<8x2xi32, #tpu.memory_space<smem>>, %arg3: memref<8xi32, #tpu.memory_space<smem>>) -> (i32, i32) {
    %c0_i32 = arith.constant 0 : i32
    %c0_i32_0 = arith.constant 0 : i32
    %c0_i32_1 = arith.constant 0 : i32
    return %c0_i32, %c0_i32_0 : i32, i32
  }
  func.func @transform_3(%arg0: i32, %arg1: memref<8xi32, #tpu.memory_space<smem>>, %arg2: memref<8x2xi32, #tpu.memory_space<smem>>, %arg3: memref<8xi32, #tpu.memory_space<smem>>) -> (i32, i32) {
    %c0_i32 = arith.constant 0 : i32
    %c0_i32_0 = arith.constant 0 : i32
    %c0_i32_1 = arith.constant 0 : i32
    return %c0_i32, %c0_i32_0 : i32, i32
  }
  func.func @transform_4(%arg0: i32, %arg1: memref<8xi32, #tpu.memory_space<smem>>, %arg2: memref<8x2xi32, #tpu.memory_space<smem>>, %arg3: memref<8xi32, #tpu.memory_space<smem>>) -> (i32, i32) {
    %c0_i32 = arith.constant 0 : i32
    %c0_i32_0 = arith.constant 0 : i32
    %c0_i32_1 = arith.constant 0 : i32
    return %c0_i32, %c0_i32_0 : i32, i32
  }
  func.func @transform_5(%arg0: i32, %arg1: memref<8xi32, #tpu.memory_space<smem>>, %arg2: memref<8x2xi32, #tpu.memory_space<smem>>, %arg3: memref<8xi32, #tpu.memory_space<smem>>) -> (i32, i32, i32) {
    %c0_i32 = arith.constant 0 : i32
    %c0_i32_0 = arith.constant 0 : i32
    %c0_i32_1 = arith.constant 0 : i32
    return %arg0, %c0_i32, %c0_i32_0 : i32, i32, i32
  }
  func.func @transform_6(%arg0: i32, %arg1: memref<8xi32, #tpu.memory_space<smem>>, %arg2: memref<8x2xi32, #tpu.memory_space<smem>>, %arg3: memref<8xi32, #tpu.memory_space<smem>>) -> i32 {
    %c0_i32 = arith.constant 0 : i32
    %c0_i32_0 = arith.constant 0 : i32
    return %c0_i32 : i32
  }
  func.func @transform_7(%arg0: i32, %arg1: memref<8xi32, #tpu.memory_space<smem>>, %arg2: memref<8x2xi32, #tpu.memory_space<smem>>, %arg3: memref<8xi32, #tpu.memory_space<smem>>) -> (i32, i32, i32) {
    %c0_i32 = arith.constant 0 : i32
    %c0_i32_0 = arith.constant 0 : i32
    %c0_i32_1 = arith.constant 0 : i32
    return %arg0, %c0_i32, %c0_i32_0 : i32, i32, i32
  }
}

</mosaic_0001>

<llo_original>
// kernel: tpu_custom_call.1
$region0: #{tpu_custom_call.1}
  #allocation0 [shape = 'u32[]', space=smem, size = 0x4, offset = 0x4, fixed_abs, tag = 'smem constant byte address 0x4 - core index']
  #allocation1 [shape = 'u32[144,128]{1,0:T(1,128)}', space=vmem, size = 0x12000, scoped, tag = 'internal scratch']
  #allocation2 [shape = 's32[1]{0}', space=sflag, size = 0x4, scoped, tag = 'scoped memory for tpu_custom_call.1']
  #allocation3 [shape = 'u8[512]{0}', space=smem, size = 0x200, scoped, tag = 'prefetched SMEM operand 0']
  #allocation4 [shape = 'u8[4096]{0}', space=smem, size = 0x1000, scoped, tag = 'prefetched SMEM operand 1']
  #allocation5 [shape = 'u8[512]{0}', space=smem, size = 0x200, scoped, tag = 'prefetched SMEM operand 2']
  %s0 = inlined_call_operand.hbm [shape: s32[8], index: 0, kind: input, shape index: {}]
  %s1 = inlined_call_operand.vmem [shape: s32[8,2], index: 1, kind: input, shape index: {}]
  %s2 = inlined_call_operand.hbm [shape: s32[8], index: 2, kind: input, shape index: {}]
  %s3 = inlined_call_operand.hbm [shape: f32[8,8,32], index: 3, kind: input, shape index: {}]
  %s4 = inlined_call_operand.hbm [shape: f32[32,128], index: 4, kind: input, shape index: {}]
  %s5 = inlined_call_operand.hbm [shape: f32[1,128], index: 5, kind: input, shape index: {}]
  %s6 = inlined_call_operand.vmem [shape: f32[32,128], index: 6, kind: input, shape index: {}]
  %s7 = inlined_call_operand.hbm [shape: f32[1,128], index: 7, kind: input, shape index: {}]
  %s8 = inlined_call_operand.vmem [shape: f32[8,1,32], index: 8, kind: input, shape index: {}]
  %s9 = inlined_call_operand.vmem [shape: f32[3], index: 9, kind: input, shape index: {}]
  %s10 = inlined_call_operand.hbm [shape: f32[8,1,128], index: 10, kind: output, shape index: {}]
  %s11 = sld [smem:[#allocation0]]
  $region81: #{tpu_custom_call.1} parent=0
    _
  %s13 = ssub.s32 1, %s11
  %s14 = scalar_select 0, %s13, %s11
  %16 = dma.hbm_to_smem %s0, 16, [#allocation3], [#allocation2]
  %s17 = sshll.u32 %s1, 4
  %s18 = int_to_ptr.vmem [resolvable:$true] %s17
  %20 = dma.vmem_to_smem %s18, 128, [#allocation4], [#allocation2]
  %22 = dma.hbm_to_smem %s2, 16, [#allocation5], [#allocation2]
  %23 = dma.done [#allocation2], 160
  %24 = sfence
  $region1: #{tpu_custom_call.1} parent=0
    #allocation6 [shape = 'u8[32768]{0}', space=vmem, size = 0x8000, scoped, tag = 'input window, operand 3']
    #allocation7 [shape = 's32[2]{0}', space=sflag, size = 0x8, scoped, tag = 'scoped memory for tpu_custom_call.1']
    #allocation8 [shape = 's32[2]{0}', space=sflag, size = 0x8, scoped, tag = 'scoped memory for tpu_custom_call.1']
    #allocation9 [shape = 's32[2]{0}', space=sflag, size = 0x8, scoped, tag = 'scoped memory for tpu_custom_call.1']
    #allocation10 [shape = 'u8[16384]{0}', space=vmem, size = 0x4000, scoped, tag = 'input window, operand 4, single buffered']
    #allocation11 [shape = 's32[1]{0}', space=sflag, size = 0x4, scoped, tag = 'scoped memory for tpu_custom_call.1']
    #allocation12 [shape = 'u8[512]{0}', space=vmem, size = 0x400, scoped, tag = 'input window, operand 5, single buffered']
    #allocation13 [shape = 'u8[512]{0}', space=vmem, size = 0x400, scoped, tag = 'input window, operand 7, single buffered']
    #allocation14 [shape = 's32[1]{0}', space=sflag, size = 0x4, scoped, tag = 'scoped memory for tpu_custom_call.1']
    #allocation15 [shape = 'u8[512]{0}', space=smem, size = 0x200, scoped, tag = 'input window, operand 9, single buffered']
    #allocation16 [shape = 'u8[4096]{0}', space=vmem, size = 0x1000, scoped, tag = 'output window, operand 0']
    %25 = vsyncpa [#allocation7], 0
    %s26 = scalar_lea.sflag [#allocation7], 1
    %27 = vsyncpa %s26, 0
    %28 = vsyncpa [#allocation11], 0
    %29 = vsyncpa [#allocation14], 0
    %30 = vsyncpa [#allocation9], 0
    %31 = vsyncpa [#allocation8], 0
    %s32 = scalar_lea.sflag [#allocation8], 1
    %33 = vsyncpa %s32, 0
    loop: start=0, step=1, limit=4
    $region2: #{tpu_custom_call.1} parent=1 // loop_pre_header
      _
    $region3: #{tpu_custom_call.1} parent=1 // loop_header
      %s35 = sphi 0, %s39
      %p36 = scmp.ge.s32.totalorder %s35, 4
      %s45 = sphi 0, %s47
      %s48 = sphi 0, %s45
      %s49 = sphi 0, %s48
      %s65 = sphi 0, %s49
      %s69 = sphi 0, %s69
      %s71 = sphi 0, %s69
      %s72 = sphi 0, %s71
      %s86 = sphi 0, %s72
      %s90 = sphi 0, %s90
      %s92 = sphi 0, %s90
      %s93 = sphi 0, %s92
      %s107 = sphi 0, %s93
      %s111 = sphi 0, %s111
      %s113 = sphi 0, %s111
      %s114 = sphi 0, %s113
      %s128 = sphi 0, %s114
      %s132 = sphi 0, %s132
      %s134 = sphi 0, %s132
      %s135 = sphi 0, %s134
      %s149 = sphi 0, %s135
      %s155 = sphi 0, %s157
      %s158 = sphi 0, %s155
      %s159 = sphi 0, %s158
      %s175 = sphi 0, %s159
      %s179 = sphi 0, %s179
      %s181 = sphi 0, %s179
      %s182 = sphi 0, %s181
      %s196 = sphi 0, %s182
      %s202 = sphi 0, %s204
      %s205 = sphi 0, %s202
      %s206 = sphi 0, %s205
      %s222 = sphi 0, %s206
    $region4: #{tpu_custom_call.1} parent=1 // loop_header_branch
      %38 = sbr.rel (%p36) target = $region8
    $region5: #{tpu_custom_call.1} parent=1 // loop_body
      %s40 = ssub.s32 %s35, 1
      %s41 = ssub.s32 %s35, 2
      %s42 = sadd.s32 %s35, 1
      %s43 = ssub.s32 %s35, %s42
      %p44 = scmp.eq.s32.totalorder %s43, 0
      %s46 = sadd.s32 %s45, 1
      %s47 = scalar_select %p44, %s45, %s46
      %p50 = pneg %p44
      %p51 = scmp.eq.s32.totalorder %s35, 1
      %p52 = por %p50, %p51
      %p53 = scmp.ne.s32.totalorder %s45, %s48
      %p54 = scmp.eq.s32.totalorder %s35, 0
      %p55 = por %p53, %p54
      %p56 = scmp.ne.s32.totalorder %s45, %s48
      %p57 = scmp.eq.s32.totalorder %s40, 1
      %p58 = por %p56, %p57
      %p59 = scmp.ne.s32.totalorder %s48, %s49
      %p60 = scmp.eq.s32.totalorder %s40, 0
      %p61 = por %p59, %p60
      %p62 = scmp.ne.s32.totalorder %s48, %s49
      %p63 = scmp.eq.s32.totalorder %s41, 1
      %p64 = por %p62, %p63
      %p66 = scmp.ne.s32.totalorder %s49, %s65
      %p67 = scmp.eq.s32.totalorder %s41, 0
      %p68 = por %p66, %p67
      %s70 = sadd.s32 %s69, 1
      %p73 = scmp.eq.s32.totalorder %s35, 1
      %p74 = scmp.ne.s32.totalorder %s69, %s71
      %p75 = scmp.eq.s32.totalorder %s35, 0
      %p76 = por %p74, %p75
      %p77 = scmp.ne.s32.totalorder %s69, %s71
      %p78 = scmp.eq.s32.totalorder %s40, 1
      %p79 = por %p77, %p78
      %p80 = scmp.ne.s32.totalorder %s71, %s72
      %p81 = scmp.eq.s32.totalorder %s40, 0
      %p82 = por %p80, %p81
      %p83 = scmp.ne.s32.totalorder %s71, %s72
      %p84 = scmp.eq.s32.totalorder %s41, 1
      %p85 = por %p83, %p84
      %p87 = scmp.ne.s32.totalorder %s72, %s86
      %p88 = scmp.eq.s32.totalorder %s41, 0
      %p89 = por %p87, %p88
      %s91 = sadd.s32 %s90, 1
      %p94 = scmp.eq.s32.totalorder %s35, 1
      %p95 = scmp.ne.s32.totalorder %s90, %s92
      %p96 = scmp.eq.s32.totalorder %s35, 0
      %p97 = por %p95, %p96
      %p98 = scmp.ne.s32.totalorder %s90, %s92
      %p99 = scmp.eq.s32.totalorder %s40, 1
      %p100 = por %p98, %p99
      %p101 = scmp.ne.s32.totalorder %s92, %s93
      %p102 = scmp.eq.s32.totalorder %s40, 0
      %p103 = por %p101, %p102
      %p104 = scmp.ne.s32.totalorder %s92, %s93
      %p105 = scmp.eq.s32.totalorder %s41, 1
      %p106 = por %p104, %p105
      %p108 = scmp.ne.s32.totalorder %s93, %s107
      %p109 = scmp.eq.s32.totalorder %s41, 0
      %p110 = por %p108, %p109
      %s112 = sadd.s32 %s111, 1
      %p115 = scmp.eq.s32.totalorder %s35, 1
      %p116 = scmp.ne.s32.totalorder %s111, %s113
      %p117 = scmp.eq.s32.totalorder %s35, 0
      %p118 = por %p116, %p117
      %p119 = scmp.ne.s32.totalorder %s111, %s113
      %p120 = scmp.eq.s32.totalorder %s40, 1
      %p121 = por %p119, %p120
      %p122 = scmp.ne.s32.totalorder %s113, %s114
      %p123 = scmp.eq.s32.totalorder %s40, 0
      %p124 = por %p122, %p123
      %p125 = scmp.ne.s32.totalorder %s113, %s114
      %p126 = scmp.eq.s32.totalorder %s41, 1
      %p127 = por %p125, %p126
      %p129 = scmp.ne.s32.totalorder %s114, %s128
      %p130 = scmp.eq.s32.totalorder %s41, 0
      %p131 = por %p129, %p130
      %s133 = sadd.s32 %s132, 1
      %p136 = scmp.eq.s32.totalorder %s35, 1
      %p137 = scmp.ne.s32.totalorder %s132, %s134
      %p138 = scmp.eq.s32.totalorder %s35, 0
      %p139 = por %p137, %p138
      %p140 = scmp.ne.s32.totalorder %s132, %s134
      %p141 = scmp.eq.s32.totalorder %s40, 1
      %p142 = por %p140, %p141
      %p143 = scmp.ne.s32.totalorder %s134, %s135
      %p144 = scmp.eq.s32.totalorder %s40, 0
      %p145 = por %p143, %p144
      %p146 = scmp.ne.s32.totalorder %s134, %s135
      %p147 = scmp.eq.s32.totalorder %s41, 1
      %p148 = por %p146, %p147
      %p150 = scmp.ne.s32.totalorder %s135, %s149
      %p151 = scmp.eq.s32.totalorder %s41, 0
      %p152 = por %p150, %p151
      %s153 = ssub.s32 %s35, %s42
      %p154 = scmp.eq.s32.totalorder %s153, 0
      %s156 = sadd.s32 %s155, 1
      %s157 = scalar_select %p154, %s155, %s156
      %p160 = pneg %p154
      %p161 = scmp.eq.s32.totalorder %s35, 1
      %p162 = por %p160, %p161
      %p163 = scmp.ne.s32.totalorder %s155, %s158
      %p164 = scmp.eq.s32.totalorder %s35, 0
      %p165 = por %p163, %p164
      %p166 = scmp.ne.s32.totalorder %s155, %s158
      %p167 = scmp.eq.s32.totalorder %s40, 1
      %p168 = por %p166, %p167
      %p169 = scmp.ne.s32.totalorder %s158, %s159
      %p170 = scmp.eq.s32.totalorder %s40, 0
      %p171 = por %p169, %p170
      %p172 = scmp.ne.s32.totalorder %s158, %s159
      %p173 = scmp.eq.s32.totalorder %s41, 1
      %p174 = por %p172, %p173
      %p176 = scmp.ne.s32.totalorder %s159, %s175
      %p177 = scmp.eq.s32.totalorder %s41, 0
      %p178 = por %p176, %p177
      %s180 = sadd.s32 %s179, 1
      %p183 = scmp.eq.s32.totalorder %s35, 1
      %p184 = scmp.ne.s32.totalorder %s179, %s181
      %p185 = scmp.eq.s32.totalorder %s35, 0
      %p186 = por %p184, %p185
      %p187 = scmp.ne.s32.totalorder %s179, %s181
      %p188 = scmp.eq.s32.totalorder %s40, 1
      %p189 = por %p187, %p188
      %p190 = scmp.ne.s32.totalorder %s181, %s182
      %p191 = scmp.eq.s32.totalorder %s40, 0
      %p192 = por %p190, %p191
      %p193 = scmp.ne.s32.totalorder %s181, %s182
      %p194 = scmp.eq.s32.totalorder %s41, 1
      %p195 = por %p193, %p194
      %p197 = scmp.ne.s32.totalorder %s182, %s196
      %p198 = scmp.eq.s32.totalorder %s41, 0
      %p199 = por %p197, %p198
      %s200 = ssub.s32 %s35, %s42
      %p201 = scmp.eq.s32.totalorder %s200, 0
      %s203 = sadd.s32 %s202, 1
      %s204 = scalar_select %p201, %s202, %s203
      %p207 = pneg %p201
      %p208 = scmp.eq.s32.totalorder %s35, 1
      %p209 = por %p207, %p208
      %p210 = scmp.ne.s32.totalorder %s202, %s205
      %p211 = scmp.eq.s32.totalorder %s35, 0
      %p212 = por %p210, %p211
      %p213 = scmp.ne.s32.totalorder %s202, %s205
      %p214 = scmp.eq.s32.totalorder %s40, 1
      %p215 = por %p213, %p214
      %p216 = scmp.ne.s32.totalorder %s205, %s206
      %p217 = scmp.eq.s32.totalorder %s40, 0
      %p218 = por %p216, %p217
      %p219 = scmp.ne.s32.totalorder %s205, %s206
      %p220 = scmp.eq.s32.totalorder %s41, 1
      %p221 = por %p219, %p220
      %p223 = scmp.ne.s32.totalorder %s206, %s222
      %p224 = scmp.eq.s32.totalorder %s41, 0
      %p225 = por %p223, %p224
      %p226 = scmp.le.s32.totalorder 1, %s35
      %p227 = scmp.lt.s32.totalorder %s35, 3
      %p228 = pnand %p226, %p227
      %p229 = pneg %p228
      // Predicated region
      $region9: #{tpu_custom_call.1} parent=5 // pred_check
        _
      $region10: #{tpu_custom_call.1} parent=5 // pred_check_branch
        %231 = sbr.rel (%p228) target = $region12
      $region11: #{tpu_custom_call.1} parent=5 // pred_region
        %s232 = ssub.s32 %s35, 1
        // Predicated region
        $region13: #{tpu_custom_call.1} parent=11 // pred_check
          %p233 = pneg %p82
        $region14: #{tpu_custom_call.1} parent=11 // pred_check_branch
          %235 = sbr.rel (%p233) target = $region16
        $region15: #{tpu_custom_call.1} parent=11 // pred_region
          %s237 = ssub.s32 512, 512
          %238 = vsyncadd [#allocation11], %s237
          %s239 = sshll.u32 [#allocation10], 4
          %s240 = int_to_ptr.vmem [resolvable:$true] %s239
          %245 = dma.hbm_to_vmem [thread:$0]  %s4, 512, %s240, [#allocation11], 128, 128, 8
        $region16: #{tpu_custom_call.1} parent=11 // pred_fallthru
          _
        // Predicated region
        $region17: #{tpu_custom_call.1} parent=11 // pred_check
          %p246 = pneg %p103
        $region18: #{tpu_custom_call.1} parent=11 // pred_check_branch
          %248 = sbr.rel (%p246) target = $region20
        $region19: #{tpu_custom_call.1} parent=11 // pred_region
          %s250 = ssub.s32 16, 16
          %251 = vsyncadd [#allocation11], %s250
          %s253 = sshll.u32 [#allocation12], 4
          %s254 = int_to_ptr.vmem [resolvable:$true] %s253
          %256 = dma.hbm_to_vmem [thread:$0]  %s5, 16, %s254, [#allocation11]
        $region20: #{tpu_custom_call.1} parent=11 // pred_fallthru
          _
        // Predicated region
        $region21: #{tpu_custom_call.1} parent=11 // pred_check
          %p257 = pneg %p124
        $region22: #{tpu_custom_call.1} parent=11 // pred_check_branch
          %259 = sbr.rel (%p257) target = $region24
        $region23: #{tpu_custom_call.1} parent=11 // pred_region
          _
        $region24: #{tpu_custom_call.1} parent=11 // pred_fallthru
          _
        // Predicated region
        $region25: #{tpu_custom_call.1} parent=11 // pred_check
          %p260 = pneg %p145
        $region26: #{tpu_custom_call.1} parent=11 // pred_check_branch
          %262 = sbr.rel (%p260) target = $region28
        $region27: #{tpu_custom_call.1} parent=11 // pred_region
          %s264 = ssub.s32 16, 16
          %265 = vsyncadd [#allocation14], %s264
          %s267 = sshll.u32 [#allocation13], 4
          %s268 = int_to_ptr.vmem [resolvable:$true] %s267
          %270 = dma.hbm_to_vmem [thread:$0]  %s7, 16, %s268, [#allocation14]
        $region28: #{tpu_custom_call.1} parent=11 // pred_fallthru
          _
        // Predicated region
        $region29: #{tpu_custom_call.1} parent=11 // pred_check
          %p271 = pneg %p192
        $region30: #{tpu_custom_call.1} parent=11 // pred_check_branch
          %273 = sbr.rel (%p271) target = $region32
        $region31: #{tpu_custom_call.1} parent=11 // pred_region
          %s275 = ssub.s32 16, 16
          %276 = vsyncadd [#allocation9], %s275
          %s278 = sshll.u32 %s9, 4
          %s279 = int_to_ptr.vmem [resolvable:$true] %s278
          %281 = dma.vmem_to_smem %s279, 16, [#allocation15], [#allocation9]
        $region32: #{tpu_custom_call.1} parent=11 // pred_fallthru
          _
      $region12: #{tpu_custom_call.1} parent=5 // pred_fallthru
        _
      %p282 = scmp.lt.s32.totalorder %s35, 2
      // Predicated region
      $region33: #{tpu_custom_call.1} parent=5 // pred_check
        %p283 = pneg %p282
      $region34: #{tpu_custom_call.1} parent=5 // pred_check_branch
        %285 = sbr.rel (%p283) target = $region36
      $region35: #{tpu_custom_call.1} parent=5 // pred_region
        // Predicated region
        $region37: #{tpu_custom_call.1} parent=35 // pred_check
          %p286 = pneg %p55
        $region38: #{tpu_custom_call.1} parent=35 // pred_check_branch
          %288 = sbr.rel (%p286) target = $region40
        $region39: #{tpu_custom_call.1} parent=35 // pred_region
          %s289 = sand.u32 %s45, 1
          %s290 = scalar_lea.sflag [#allocation7], %s289
          %s291 = sand.u32 %s45, 1
          %s292 = smul.addr %s291, 32
          %s293 = scalar_lea.vmem [#allocation6], %s292
          %s294 = smul.u32 4, %s35
          %s296 = ssub.s32 512, 512
          %297 = vsyncadd %s290, %s296
          %s298 = smul.addr %s294, 128
          %s299 = scalar_lea.hbm %s3, %s298
          %s300 = sshll.u32 %s293, 4
          %s301 = int_to_ptr.vmem [resolvable:$true] %s300
          %306 = dma.hbm_to_vmem [thread:$0]  %s299, 512, %s301, %s290, 128, 128, 8
        $region40: #{tpu_custom_call.1} parent=35 // pred_fallthru
          _
        // Predicated region
        $region41: #{tpu_custom_call.1} parent=35 // pred_check
          %p307 = pneg %p165
        $region42: #{tpu_custom_call.1} parent=35 // pred_check_branch
          %309 = sbr.rel (%p307) target = $region44
        $region43: #{tpu_custom_call.1} parent=35 // pred_region
          %s310 = smul.u32 4, %s35
          %p311 = scmp.lt.s32.totalorder %s310, 7
          %s312 = scalar_select %p311, %s310, 7
          %s313 = scalar_lea.vmem %s8, %s312
          %s314 = smul.u32 4, %s35
        $region44: #{tpu_custom_call.1} parent=35 // pred_fallthru
          _
      $region36: #{tpu_custom_call.1} parent=5 // pred_fallthru
        _
      %p315 = scmp.le.s32.totalorder 1, %s35
      %p316 = scmp.lt.s32.totalorder %s35, 3
      %p317 = pnand %p315, %p316
      %p318 = pneg %p317
      // Predicated region
      $region45: #{tpu_custom_call.1} parent=5 // pred_check
        _
      $region46: #{tpu_custom_call.1} parent=5 // pred_check_branch
        %320 = sbr.rel (%p317) target = $region48
      $region47: #{tpu_custom_call.1} parent=5 // pred_region
        %s321 = ssub.s32 %s35, 1
        %s322 = sand.u32 %s48, 1
        %s323 = scalar_lea.sflag [#allocation7], %s322
        %s324 = sand.u32 %s48, 1
        %s325 = smul.addr %s324, 32
        %s326 = scalar_lea.vmem [#allocation6], %s325
        // Predicated region
        $region49: #{tpu_custom_call.1} parent=47 // pred_check
          %p327 = pneg %p61
        $region50: #{tpu_custom_call.1} parent=47 // pred_check_branch
          %329 = sbr.rel (%p327) target = $region52
        $region51: #{tpu_custom_call.1} parent=47 // pred_region
          %330 = dma.done %s323, 512
        $region52: #{tpu_custom_call.1} parent=47 // pred_fallthru
          _
        // Predicated region
        $region53: #{tpu_custom_call.1} parent=47 // pred_check
          %p331 = pneg %p82
        $region54: #{tpu_custom_call.1} parent=47 // pred_check_branch
          %333 = sbr.rel (%p331) target = $region56
        $region55: #{tpu_custom_call.1} parent=47 // pred_region
          %334 = dma.done [#allocation11], 512
        $region56: #{tpu_custom_call.1} parent=47 // pred_fallthru
          _
        // Predicated region
        $region57: #{tpu_custom_call.1} parent=47 // pred_check
          %p335 = pneg %p103
        $region58: #{tpu_custom_call.1} parent=47 // pred_check_branch
          %337 = sbr.rel (%p335) target = $region60
        $region59: #{tpu_custom_call.1} parent=47 // pred_region
          %338 = dma.done [#allocation11], 16
        $region60: #{tpu_custom_call.1} parent=47 // pred_fallthru
          _
        // Predicated region
        $region61: #{tpu_custom_call.1} parent=47 // pred_check
          %p339 = pneg %p145
        $region62: #{tpu_custom_call.1} parent=47 // pred_check_branch
          %341 = sbr.rel (%p339) target = $region64
        $region63: #{tpu_custom_call.1} parent=47 // pred_region
          %342 = dma.done [#allocation14], 16
        $region64: #{tpu_custom_call.1} parent=47 // pred_fallthru
          _
        // Predicated region
        $region65: #{tpu_custom_call.1} parent=47 // pred_check
          %p343 = pneg %p192
        $region66: #{tpu_custom_call.1} parent=47 // pred_check_branch
          %345 = sbr.rel (%p343) target = $region68
        $region67: #{tpu_custom_call.1} parent=47 // pred_region
          %346 = dma.done [#allocation9], 16
        $region68: #{tpu_custom_call.1} parent=47 // pred_fallthru
          _
        %347 = sfence
        %s348 = sand.u32 %s48, 1
        %s349 = scalar_lea.sflag [#allocation7], %s348
        %s350 = sand.u32 %s48, 1
        %s351 = smul.addr %s350, 32
        %s352 = scalar_lea.vmem [#allocation6], %s351
        %p353 = pneg %p61
        %p354 = pneg %p58
        %p355 = pneg %p82
        %p356 = pneg %p79
        %p357 = pneg %p103
        %p358 = pneg %p100
        %p359 = pneg %p124
        %p360 = pneg %p121
        %p361 = pneg %p145
        %p362 = pneg %p142
        %s363 = smul.u32 4, %s40
        %p364 = scmp.lt.s32.totalorder %s363, 7
        %s365 = scalar_select %p364, %s363, 7
        %s366 = scalar_lea.vmem %s8, %s365
        %p367 = pneg %p171
        %p368 = pneg %p168
        %p369 = pneg %p192
        %p370 = pneg %p189
        %p371 = pneg %p218
        %p372 = pneg %p215
        %s373 = sand.u32 %s205, 1
        %s374 = scalar_lea.sflag [#allocation8], %s373
        %s375 = sand.u32 %s205, 1
        %s376 = smul.addr %s375, 4
        %s377 = scalar_lea.vmem [#allocation16], %s376
        %s378 = smul.u32 4, %s40
        %s379 = smul.u32 4, %s40
        %p380 = scmp.lt.s32.totalorder %s379, 7
        %s381 = scalar_select %p380, %s379, 7
        %s382 = scalar_lea.vmem %s8, %s381
        %s383 = smul.u32 4, %s40
        %s384 = smul.u32 4, %s40
        %s385 = smul.u32 %s40, 4
        %v386 = vld [vmem:[%s326] sm:$0xff]
        %v387 = vld [vmem:[%s326 + $0x8] sm:$0xff]
        %v388 = vld [vmem:[%s326 + $0x10] sm:$0xff]
        %v389 = vld [vmem:[%s326 + $0x18] sm:$0xff]
        %v390 = vld [vmem:[#allocation10] sm:$0xff]
        %v391 = vld [vmem:[#allocation10 + $0x8] sm:$0xff]
        %v392 = vld [vmem:[#allocation10 + $0x10] sm:$0xff]
        %v393 = vld [vmem:[#allocation10 + $0x18] sm:$0xff]
        %v394 = vld [vmem:[#allocation12] sm:$0x1]
        %v396 = vlaneseq
        %v397 = vshrl.u32 %v396, 7
        %v398 = vsub.s32 0, %v397
        %v399 = vrot.slane %v394, %v398
        %vm401 = vcmask 261120
        %v403 = vsel %vm401, %v386, 0
        %v406 = vsel %vm401, %v387, 0
        %v409 = vsel %vm401, %v388, 0
        %v412 = vsel %vm401, %v389, 0
        %414 = vmatprep.subr.mxu0 0.0
        %415 = vmatpush1.msra.mxu0 %v390
        %416 = vmatprep.subr.mxu0 0.0
        %417 = vmatpush1.msra.mxu0 %v391
        %418 = vmatprep.subr.mxu0 0.0
        %419 = vmatpush1.msra.mxu0 %v392
        %420 = vmatprep.subr.mxu0 0.0
        %421 = vmatpush1.msra.mxu0 %v393
        %422 = vmatprep.subr.mxu0 0.0
        %423 = vmatpush1.msra.mxu0 0.0
        %424 = vmatprep.subr.mxu0 0.0
        %425 = vmatpush1.msra.mxu0 0.0
        %426 = vmatprep.subr.mxu0 0.0
        %427 = vmatpush1.msra.mxu0 0.0
        %428 = vmatprep.subr.mxu0 0.0
        %429 = vmatpush1.msra.mxu0 0.0
        %430 = vmatprep.subr.mxu0 0.0
        %431 = vmatpush1.msra.mxu0 0.0
        %432 = vmatprep.subr.mxu0 0.0
        %433 = vmatpush1.msra.mxu0 0.0
        %434 = vmatprep.subr.mxu0 0.0
        %435 = vmatpush1.msra.mxu0 0.0
        %436 = vmatprep.subr.mxu0 0.0
        %437 = vmatpush1.msra.mxu0 0.0
        %438 = vmatprep.subr.mxu0 0.0
        %439 = vmatpush1.msra.mxu0 0.0
        %440 = vmatprep.subr.mxu0 0.0
        %441 = vmatpush1.msra.mxu0 0.0
        %442 = vmatprep.subr.mxu0 0.0
        %443 = vmatpush1.msra.mxu0 0.0
        %444 = vmatprep.subr.mxu0 0.0
        %445 = vmatpush1.msra.mxu0 0.0
        %446 = vmatprep.subr.mxu0 0.0
        %447 = vmatpush1.msra.mxu0 0.0
        %448 = vmatprep.subr.mxu0 0.0
        %449 = vmatpush1.msra.mxu0 0.0
        %450 = vmatprep.subr.mxu0 0.0
        %451 = vmatpush1.msra.mxu0 0.0
        %452 = vmatprep.subr.mxu0 0.0
        %453 = vmatpush1.msra.mxu0 0.0
        %454 = vmatprep.subr.mxu0 0.0
        %455 = vmatpush1.msra.mxu0 0.0
        %456 = vmatprep.subr.mxu0 0.0
        %457 = vmatpush1.msra.mxu0 0.0
        %458 = vmatprep.subr.mxu0 0.0
        %459 = vmatpush1.msra.mxu0 0.0
        %460 = vmatprep.subr.mxu0 0.0
        %461 = vmatpush1.msra.mxu0 0.0
        %462 = vmatprep.subr.mxu0 0.0
        %463 = vmatpush1.msra.mxu0 0.0
        %464 = vmatprep.subr.mxu0 0.0
        %465 = vmatpush1.msra.mxu0 0.0
        %466 = vmatprep.subr.mxu0 0.0
        %467 = vmatpush1.msra.mxu0 0.0
        %468 = vmatprep.subr.mxu0 0.0
        %469 = vmatpush1.msra.mxu0 0.0
        %470 = vmatprep.subr.mxu0 0.0
        %471 = vmatpush1.msra.mxu0 0.0
        %472 = vmatprep.subr.mxu0 0.0
        %473 = vmatpush1.msra.mxu0 0.0
        %474 = vmatprep.subr.mxu0 0.0
        %475 = vmatpush1.msra.mxu0 0.0
        %476 = vmatprep.subr.mxu0 0.0
        %477 = vmatpush1.msra.mxu0 0.0
        %478 = vmatprep.mubr.f32.mxu0 0.0
        %479 = vmatmul.mubr.f32.gmra.mrb[0].mxu0 %v403
        %v480 = vpop.f32.mrb[0].mxu0
        %v481 = vadd.f32 %v399, %v480
        %v482 = vpop.f32.mrb[0].mxu0
        %483 = vmatprep.mubr.f32.mxu0 0.0
        %484 = vmatmul.mubr.f32.gmra.mrb[0].mxu0 %v406
        %v485 = vpop.f32.mrb[0].mxu0
        %v486 = vadd.f32 %v399, %v485
        %v487 = vpop.f32.mrb[0].mxu0
        %488 = vmatprep.mubr.f32.mxu0 0.0
        %489 = vmatmul.mubr.f32.gmra.mrb[0].mxu0 %v409
        %v490 = vpop.f32.mrb[0].mxu0
        %v491 = vadd.f32 %v399, %v490
        %v492 = vpop.f32.mrb[0].mxu0
        %493 = vmatprep.mubr.f32.mxu0 0.0
        %494 = vmatmul.mubr.f32.gmra.mrb[0].mxu0 %v412
        %v495 = vpop.f32.mrb[0].mxu0
        %v496 = vadd.f32 %v399, %v495
        %v497 = vpop.f32.mrb[0].mxu0
        %498 = vdwg.mxu0
        %v499 = vld [vmem:[%s6] sm:$0xff]
        %v500 = vld [vmem:[%s6 + $0x8] sm:$0xff]
        %v501 = vld [vmem:[%s6 + $0x10] sm:$0xff]
        %v502 = vld [vmem:[%s6 + $0x18] sm:$0xff]
        %v503 = vrot.slane %v387, 7
        %vm504 = vcmask 1041409
        %v505 = vsel %vm504, %v503, %v386
        %v506 = vrot.slane %v388, 6
        %vm507 = vcmask 1042434
        %v508 = vsel %vm507, %v506, %v505
        %v509 = vrot.slane %v389, 5
        %vm510 = vcmask 1043459
        %v511 = vsel %vm510, %v509, %v508
        %v512 = vsel %vm401, %v511, 0
        %514 = vmatprep.subr.mxu0 0.0
        %515 = vmatpush1.msra.mxu0 %v499
        %516 = vmatprep.subr.mxu0 0.0
        %517 = vmatpush1.msra.mxu0 %v500
        %518 = vmatprep.subr.mxu0 0.0
        %519 = vmatpush1.msra.mxu0 %v501
        %520 = vmatprep.subr.mxu0 0.0
        %521 = vmatpush1.msra.mxu0 %v502
        %522 = vmatprep.subr.mxu0 0.0
        %523 = vmatpush1.msra.mxu0 0.0
        %524 = vmatprep.subr.mxu0 0.0
        %525 = vmatpush1.msra.mxu0 0.0
        %526 = vmatprep.subr.mxu0 0.0
        %527 = vmatpush1.msra.mxu0 0.0
        %528 = vmatprep.subr.mxu0 0.0
        %529 = vmatpush1.msra.mxu0 0.0
        %530 = vmatprep.subr.mxu0 0.0
        %531 = vmatpush1.msra.mxu0 0.0
        %532 = vmatprep.subr.mxu0 0.0
        %533 = vmatpush1.msra.mxu0 0.0
        %534 = vmatprep.subr.mxu0 0.0
        %535 = vmatpush1.msra.mxu0 0.0
        %536 = vmatprep.subr.mxu0 0.0
        %537 = vmatpush1.msra.mxu0 0.0
        %538 = vmatprep.subr.mxu0 0.0
        %539 = vmatpush1.msra.mxu0 0.0
        %540 = vmatprep.subr.mxu0 0.0
        %541 = vmatpush1.msra.mxu0 0.0
        %542 = vmatprep.subr.mxu0 0.0
        %543 = vmatpush1.msra.mxu0 0.0
        %544 = vmatprep.subr.mxu0 0.0
        %545 = vmatpush1.msra.mxu0 0.0
        %546 = vmatprep.subr.mxu0 0.0
        %547 = vmatpush1.msra.mxu0 0.0
        %548 = vmatprep.subr.mxu0 0.0
        %549 = vmatpush1.msra.mxu0 0.0
        %550 = vmatprep.subr.mxu0 0.0
        %551 = vmatpush1.msra.mxu0 0.0
        %552 = vmatprep.subr.mxu0 0.0
        %553 = vmatpush1.msra.mxu0 0.0
        %554 = vmatprep.subr.mxu0 0.0
        %555 = vmatpush1.msra.mxu0 0.0
        %556 = vmatprep.subr.mxu0 0.0
        %557 = vmatpush1.msra.mxu0 0.0
        %558 = vmatprep.subr.mxu0 0.0
        %559 = vmatpush1.msra.mxu0 0.0
        %560 = vmatprep.subr.mxu0 0.0
        %561 = vmatpush1.msra.mxu0 0.0
        %562 = vmatprep.subr.mxu0 0.0
        %563 = vmatpush1.msra.mxu0 0.0
        %564 = vmatprep.subr.mxu0 0.0
        %565 = vmatpush1.msra.mxu0 0.0
        %566 = vmatprep.subr.mxu0 0.0
        %567 = vmatpush1.msra.mxu0 0.0
        %568 = vmatprep.subr.mxu0 0.0
        %569 = vmatpush1.msra.mxu0 0.0
        %570 = vmatprep.subr.mxu0 0.0
        %571 = vmatpush1.msra.mxu0 0.0
        %572 = vmatprep.subr.mxu0 0.0
        %573 = vmatpush1.msra.mxu0 0.0
        %574 = vmatprep.subr.mxu0 0.0
        %575 = vmatpush1.msra.mxu0 0.0
        %576 = vmatprep.subr.mxu0 0.0
        %577 = vmatpush1.msra.mxu0 0.0
        %578 = vmatprep.mubr.f32.mxu0 0.0
        %579 = vmatmul.mubr.f32.gmra.mrb[0].mxu0 %v512
        %v580 = vpop.f32.mrb[0].mxu0
        %v581 = vadd.f32 0.0, %v580
        %v582 = vpop.f32.mrb[0].mxu0
        %583 = vdwg.mxu0
        %v584 = vld [vmem:[%s382] sm:$0x1]
        %v585 = vld [vmem:[%s382 + $0x1] sm:$0x1]
        %v586 = vld [vmem:[%s382 + $0x2] sm:$0x1]
        %v587 = vld [vmem:[%s382 + $0x3] sm:$0x1]
        %v588 = vmul.f32 %v386, %v386
        %v589 = vmul.f32 %v387, %v387
        %v590 = vmul.f32 %v388, %v388
        %v591 = vmul.f32 %v389, %v389
        %v596 = vrot.slane %v589, 7
        %v597 = vsel %vm504, %v596, %v588
        %v598 = vrot.slane %v590, 6
        %v599 = vsel %vm507, %v598, %v597
        %v600 = vrot.slane %v591, 5
        %v601 = vsel %vm510, %v600, %v599
        %vm603 = vcmask 257024
        %v604 = vsel %vm603, %v601, 0.0
        %605 = vadd.xlane.f32.xlu0 %v604
        %v606 = vpop.xlane.xlu0 %605
        %v607 = vmax.f32 %v606, 1e-16
        %v608 = vrsqrt.pop %v607
        %v609 = vmul.f32 %v584, %v584
        %v610 = vmul.f32 %v585, %v585
        %v611 = vmul.f32 %v586, %v586
        %v612 = vmul.f32 %v587, %v587
        %v617 = vcombine.low %v609, %v610
        %v618 = vcombine.low %v611, %v612
        %v620 = vunpack.c.l.s4 1966171168
        %v621 = vunpack.c.0.s8 %v620
        %v622 = vlaneseq
        %v623 = vshrl.u32 %v622, 7
        %v624 = vsub.s32 %v621, %v623
        %v625 = vrot.slane %v617, %v624
        %v627 = vunpack.c.l.s4 1966171168
        %v628 = vunpack.c.0.s8 %v627
        %v629 = vlaneseq
        %v630 = vshrl.u32 %v629, 7
        %v631 = vsub.s32 %v628, %v630
        %v632 = vrot.slane %v618, %v631
        %v633 = vcombine.low %v625, %v632
        %v635 = vunpack.c.l.s4 1966171168
        %v636 = vunpack.c.0.s8 %v635
        %v637 = vlaneseq
        %v638 = vshrl.u32 %v637, 7
        %v639 = vsub.s32 %v636, %v638
        %v640 = vrot.slane %v633, %v639
        %v642 = vsel %vm603, %v640, 0.0
        %643 = vadd.xlane.f32.xlu0 %v642
        %v644 = vpop.xlane.xlu0 %643
        %v645 = vmax.f32 %v644, 1e-16
        %v646 = vrsqrt.pop %v645
        %v647 = vmul.f32 %v386, %v584
        %v648 = vmul.f32 %v387, %v585
        %v649 = vmul.f32 %v388, %v586
        %v650 = vmul.f32 %v389, %v587
        %v655 = vrot.slane %v648, 7
        %v656 = vsel %vm504, %v655, %v647
        %v657 = vrot.slane %v649, 6
        %v658 = vsel %vm507, %v657, %v656
        %v659 = vrot.slane %v650, 5
        %v660 = vsel %vm510, %v659, %v658
        %v662 = vsel %vm603, %v660, 0.0
        %663 = vadd.xlane.f32.xlu0 %v662
        %v664 = vpop.xlane.xlu0 %663
        %v665 = vmul.f32 %v664, %v608
        %v666 = vmul.f32 %v665, %v646
        %v667 = vmul.f32 %v581, %v608
        %v668 = vld [vmem:[#allocation13] sm:$0x1]
        %v670 = vlaneseq
        %v671 = vshrl.u32 %v670, 7
        %v672 = vsub.s32 0, %v671
        %v673 = vrot.slane %v668, %v672
        %v675 = vmul.f32 %v667, %v673
        %v676 = vlaneseq
        %v677 = vand.u32 %v676, 127
        %v678 = vlaneseq
        %v679 = vshrl.u32 %v678, 7
        %vm680 = vcmp.lt.s32.totalorder %v677, 3
        %vm681 = vcmp.eq.s32.totalorder %v677, 3
        %vm682 = vcmp.eq.s32.totalorder %v677, 4
        %vm683 = vmor %vm681, %vm682
        %vm684 = vcmp.gt.s32.totalorder %v679, 0
        %vm685 = vcmp.lt.s32.totalorder %v679, 8
        %vm686 = vmand %vm684, %vm685
        %vm687 = vcmp.ge.s32.totalorder %v677, 5
        %v688 = vsel %vm687, 1, 0
        %vm689 = vcmp.eq.s32.totalorder %v688, 1
        %v690 = vsel %vm689, -1.0, %v675
        %s691 = sld [smem:[#allocation3 + %s385]]
        %v692 = vsel %vm680, %v481, -1e+30
        %vm693 = vcmask 1040384
        %v694 = vsel %vm693, %v692, -inf
        %695 = vmax.xlane.f32.xlu0 %v694
        %v696 = vpop.xlane.xlu0 %695
        %v697 = vrot.slane %v696, 4
        %v698 = vmax.f32 %v696, %v697
        %v699 = vrot.slane %v698, 2
        %v700 = vmax.f32 %v698, %v699
        %v701 = vrot.slane %v700, 1
        %v702 = vmax.f32 %v700, %v701
        %s703 = vtos %v702
        %v704 = vstv %s703
        %v705 = vsub.f32 %v692, %v704
        %v706 = vmul.f32 %v705, 1.442695
        %v707 = vpow.pop %v706
        %v708 = vsel %vm680, %v707, 0.0
        %v709 = vsel %vm693, %v708, 0.0
        %710 = vadd.xlane.f32.xlu0 %v709
        %v711 = vpop.xlane.xlu0 %710
        %v712 = vrot.slane %v711, 4
        %v713 = vadd.f32 %v711, %v712
        %v714 = vrot.slane %v713, 2
        %v715 = vadd.f32 %v713, %v714
        %v716 = vrot.slane %v715, 1
        %v717 = vadd.f32 %v715, %v716
        %s718 = vtos %v717
        %v719 = vstv %s718
        %v720 = vlog2.pop %v719
        %v721 = vmul.f32 %v720, 0.6931472
        %s722 = vtos %v721
        %s723 = sadd.f32 %s703, %s722
        %v724 = vstv %s691
        %vm725 = vcmp.eq.s32.totalorder %v677, %v724
        %v726 = vsel %vm725, %v481, 0.0
        %v727 = vsel %vm693, %v726, 0.0
        %728 = vadd.xlane.f32.xlu0 %v727
        %v729 = vpop.xlane.xlu0 %728
        %v730 = vrot.slane %v729, 4
        %v731 = vadd.f32 %v729, %v730
        %v732 = vrot.slane %v731, 2
        %v733 = vadd.f32 %v731, %v732
        %v734 = vrot.slane %v733, 1
        %v735 = vadd.f32 %v733, %v734
        %s736 = vtos %v735
        %s737 = sld [smem:[#allocation15 + %s691]]
        %s738 = ssub.f32 0.0, %s737
        %s739 = ssub.f32 %s736, %s723
        %s740 = smul.f32 %s738, %s739
        %vm741 = vcmp.eq.f32.partialorder %v692, %v704
        %v742 = vsel %vm741, %v677, 128
        %v743 = vsel %vm693, %v742, 2147483647
        %v744 = vand.u32 %v743, 65535
        %v745 = vshra.s32 %v743, 16
        %v746 = vcvt.s32.f32 %v744
        %v747 = vcvt.s32.f32 %v745
        %748 = vmin.xlane.f32.xlu0 %v747
        %v749 = vpop.xlane.xlu0 %748
        %vm750 = vcmp.eq.f32.partialorder %v747, %v749
        %v751 = vsel %vm750, %v746, inf
        %752 = vmin.xlane.f32.xlu0 %v751
        %v753 = vpop.xlane.xlu0 %752
        %v754 = vcvt.f32.s32 %v753
        %v755 = vcvt.f32.s32 %v749
        %v756 = vshll.u32 %v755, 16
        %v757 = vadd.s32 %v756, %v754
        %v758 = vrot.slane %v757, 4
        %vm759 = vcmp.lt.s32.totalorder %v757, %v758
        %v760 = vsel %vm759, %v757, %v758
        %v761 = vrot.slane %v760, 2
        %vm762 = vcmp.lt.s32.totalorder %v760, %v761
        %v763 = vsel %vm762, %v760, %v761
        %v764 = vrot.slane %v763, 1
        %vm765 = vcmp.lt.s32.totalorder %v763, %v764
        %v766 = vsel %vm765, %v763, %v764
        %s767 = vtos %v766
        %p768 = scmp.eq.s32.totalorder %s767, %s691
        %s769 = scalar_select %p768, 1, 0
        %s770 = scvt.s32.f32 %s769
        %v771 = vsel %vm686, 1, 0
        %vm772 = vcmp.eq.s32.totalorder %v771, 1
        %v773 = vsel %vm772, %v481, -1e+30
        %v774 = vrot.slane %v773, 4
        %v775 = vmax.f32 %v773, %v774
        %v776 = vrot.slane %v775, 2
        %v777 = vmax.f32 %v775, %v776
        %v778 = vrot.slane %v777, 1
        %v779 = vmax.f32 %v777, %v778
        %v780 = vsub.f32 %v773, %v779
        %v781 = vmul.f32 %v780, 1.442695
        %v782 = vpow.pop %v781
        %v783 = vsel %vm772, %v782, 0.0
        %v784 = vrot.slane %v783, 4
        %v785 = vadd.f32 %v783, %v784
        %v786 = vrot.slane %v785, 2
        %v787 = vadd.f32 %v785, %v786
        %v788 = vrot.slane %v787, 1
        %v789 = vadd.f32 %v787, %v788
        %v790 = vlog2.pop %v789
        %v791 = vmul.f32 %v790, 0.6931472
        %v792 = vadd.f32 %v779, %v791
        %s793 = smul.u32 %s385, 128
        %s794 = sld [smem:[#allocation4 + %s793]]
        %s795 = sadd.s32 %s794, 1
        %s796 = sadd.s32 %s793, 1
        %s797 = sld [smem:[#allocation4 + %s796]]
        %s798 = sadd.s32 %s797, 1
        %v799 = vstv %s795
        %vm800 = vcmp.eq.s32.totalorder %v679, %v799
        %v801 = vsel %vm800, 1, 0
        %vm802 = vcmp.eq.s32.totalorder %v801, 1
        %v803 = vsel %vm681, 1, 0
        %vm804 = vcmp.eq.s32.totalorder %v803, 1
        %vm805 = vmand %vm802, %vm804
        %v806 = vstv %s798
        %vm807 = vcmp.eq.s32.totalorder %v679, %v806
        %v808 = vsel %vm807, 1, 0
        %vm809 = vcmp.eq.s32.totalorder %v808, 1
        %v810 = vsel %vm682, 1, 0
        %vm811 = vcmp.eq.s32.totalorder %v810, 1
        %vm812 = vmand %vm809, %vm811
        %vm813 = vmor %vm805, %vm812
        %v814 = vsel %vm813, %v481, 0.0
        %815 = vadd.xlane.f32.xlu0 %v814
        %v816 = vpop.xlane.xlu0 %815
        %v817 = vrot.slane %v816, 4
        %v818 = vadd.f32 %v816, %v817
        %v819 = vrot.slane %v818, 2
        %v820 = vadd.f32 %v818, %v819
        %v821 = vrot.slane %v820, 1
        %v822 = vadd.f32 %v820, %v821
        %s823 = vtos %v822
        %v824 = vsel %vm683, %v792, 0.0
        %v825 = vsel %vm693, %v824, 0.0
        %826 = vadd.xlane.f32.xlu0 %v825
        %v827 = vpop.xlane.xlu0 %826
        %v828 = vrot.slane %v827, 4
        %v829 = vadd.f32 %v827, %v828
        %v830 = vrot.slane %v829, 2
        %v831 = vadd.f32 %v829, %v830
        %v832 = vrot.slane %v831, 1
        %v833 = vadd.f32 %v831, %v832
        %s834 = vtos %v833
        %s835 = ssub.f32 %s834, %s823
        %s836 = sld [smem:[#allocation5 + %s385]]
        %v837 = vstv %s836
        %vm838 = vcmp.eq.s32.totalorder %v677, %v837
        %v839 = vsel %vm838, -1.0, %v690
        %v840 = vsel %vm693, %v839, -inf
        %841 = vmax.xlane.f32.xlu0 %v840
        %v842 = vpop.xlane.xlu0 %841
        %v843 = vrot.slane %v842, 4
        %v844 = vmax.f32 %v842, %v843
        %v845 = vrot.slane %v844, 2
        %v846 = vmax.f32 %v844, %v845
        %v847 = vrot.slane %v846, 1
        %v848 = vmax.f32 %v846, %v847
        %s849 = vtos %v848
        %v850 = vadd.f32 %v666, 0.0
        %s851 = vtos %v850
        %s852 = ssub.f32 0.4, %s851
        %s853 = sadd.f32 %s852, %s849
        %s854 = smax.f32 %s853, 0.0
        %s855 = sadd.f32 %s740, %s835
        %s856 = sadd.f32 %s855, %s854
        %vm857 = vcmp.eq.s32.totalorder %v677, 0
        %v858 = vstv %s856
        %v859 = vsel %vm857, %v858, 0.0
        %vm860 = vcmp.eq.s32.totalorder %v677, 1
        %v861 = vstv %s770
        %v862 = vsel %vm860, %v861, 0.0
        %v863 = vadd.f32 %v859, %v862
        %864 = vst [vmem:[%s377] sm:$0x1] %v863
        %s865 = sadd.s32 %s385, 1
        %s866 = sld [smem:[#allocation3 + %s865]]
        %v867 = vsel %vm680, %v486, -1e+30
        %v868 = vsel %vm693, %v867, -inf
        %869 = vmax.xlane.f32.xlu0 %v868
        %v870 = vpop.xlane.xlu0 %869
        %v871 = vrot.slane %v870, 4
        %v872 = vmax.f32 %v870, %v871
        %v873 = vrot.slane %v872, 2
        %v874 = vmax.f32 %v872, %v873
        %v875 = vrot.slane %v874, 1
        %v876 = vmax.f32 %v874, %v875
        %s877 = vtos %v876
        %v878 = vstv %s877
        %v879 = vsub.f32 %v867, %v878
        %v880 = vmul.f32 %v879, 1.442695
        %v881 = vpow.pop %v880
        %v882 = vsel %vm680, %v881, 0.0
        %v883 = vsel %vm693, %v882, 0.0
        %884 = vadd.xlane.f32.xlu0 %v883
        %v885 = vpop.xlane.xlu0 %884
        %v886 = vrot.slane %v885, 4
        %v887 = vadd.f32 %v885, %v886
        %v888 = vrot.slane %v887, 2
        %v889 = vadd.f32 %v887, %v888
        %v890 = vrot.slane %v889, 1
        %v891 = vadd.f32 %v889, %v890
        %s892 = vtos %v891
        %v893 = vstv %s892
        %v894 = vlog2.pop %v893
        %v895 = vmul.f32 %v894, 0.6931472
        %s896 = vtos %v895
        %s897 = sadd.f32 %s877, %s896
        %v898 = vstv %s866
        %vm899 = vcmp.eq.s32.totalorder %v677, %v898
        %v900 = vsel %vm899, %v486, 0.0
        %v901 = vsel %vm693, %v900, 0.0
        %902 = vadd.xlane.f32.xlu0 %v901
        %v903 = vpop.xlane.xlu0 %902
        %v904 = vrot.slane %v903, 4
        %v905 = vadd.f32 %v903, %v904
        %v906 = vrot.slane %v905, 2
        %v907 = vadd.f32 %v905, %v906
        %v908 = vrot.slane %v907, 1
        %v909 = vadd.f32 %v907, %v908
        %s910 = vtos %v909
        %s911 = sld [smem:[#allocation15 + %s866]]
        %s912 = ssub.f32 0.0, %s911
        %s913 = ssub.f32 %s910, %s897
        %s914 = smul.f32 %s912, %s913
        %vm915 = vcmp.eq.f32.partialorder %v867, %v878
        %v916 = vsel %vm915, %v677, 128
        %v917 = vsel %vm693, %v916, 2147483647
        %v918 = vand.u32 %v917, 65535
        %v919 = vshra.s32 %v917, 16
        %v920 = vcvt.s32.f32 %v918
        %v921 = vcvt.s32.f32 %v919
        %922 = vmin.xlane.f32.xlu0 %v921
        %v923 = vpop.xlane.xlu0 %922
        %vm924 = vcmp.eq.f32.partialorder %v921, %v923
        %v925 = vsel %vm924, %v920, inf
        %926 = vmin.xlane.f32.xlu0 %v925
        %v927 = vpop.xlane.xlu0 %926
        %v928 = vcvt.f32.s32 %v927
        %v929 = vcvt.f32.s32 %v923
        %v930 = vshll.u32 %v929, 16
        %v931 = vadd.s32 %v930, %v928
        %v932 = vrot.slane %v931, 4
        %vm933 = vcmp.lt.s32.totalorder %v931, %v932
        %v934 = vsel %vm933, %v931, %v932
        %v935 = vrot.slane %v934, 2
        %vm936 = vcmp.lt.s32.totalorder %v934, %v935
        %v937 = vsel %vm936, %v934, %v935
        %v938 = vrot.slane %v937, 1
        %vm939 = vcmp.lt.s32.totalorder %v937, %v938
        %v940 = vsel %vm939, %v937, %v938
        %s941 = vtos %v940
        %p942 = scmp.eq.s32.totalorder %s941, %s866
        %s943 = scalar_select %p942, 1, 0
        %s944 = scvt.s32.f32 %s943
        %v945 = vsel %vm772, %v486, -1e+30
        %v946 = vrot.slane %v945, 4
        %v947 = vmax.f32 %v945, %v946
        %v948 = vrot.slane %v947, 2
        %v949 = vmax.f32 %v947, %v948
        %v950 = vrot.slane %v949, 1
        %v951 = vmax.f32 %v949, %v950
        %v952 = vsub.f32 %v945, %v951
        %v953 = vmul.f32 %v952, 1.442695
        %v954 = vpow.pop %v953
        %v955 = vsel %vm772, %v954, 0.0
        %v956 = vrot.slane %v955, 4
        %v957 = vadd.f32 %v955, %v956
        %v958 = vrot.slane %v957, 2
        %v959 = vadd.f32 %v957, %v958
        %v960 = vrot.slane %v959, 1
        %v961 = vadd.f32 %v959, %v960
        %v962 = vlog2.pop %v961
        %v963 = vmul.f32 %v962, 0.6931472
        %v964 = vadd.f32 %v951, %v963
        %s965 = smul.u32 %s865, 128
        %s966 = sld [smem:[#allocation4 + %s965]]
        %s967 = sadd.s32 %s966, 1
        %s968 = sadd.s32 %s965, 1
        %s969 = sld [smem:[#allocation4 + %s968]]
        %s970 = sadd.s32 %s969, 1
        %v971 = vstv %s967
        %vm972 = vcmp.eq.s32.totalorder %v679, %v971
        %v973 = vsel %vm972, 1, 0
        %vm974 = vcmp.eq.s32.totalorder %v973, 1
        %vm975 = vmand %vm974, %vm804
        %v976 = vstv %s970
        %vm977 = vcmp.eq.s32.totalorder %v679, %v976
        %v978 = vsel %vm977, 1, 0
        %vm979 = vcmp.eq.s32.totalorder %v978, 1
        %vm980 = vmand %vm979, %vm811
        %vm981 = vmor %vm975, %vm980
        %v982 = vsel %vm981, %v486, 0.0
        %983 = vadd.xlane.f32.xlu0 %v982
        %v984 = vpop.xlane.xlu0 %983
        %v985 = vrot.slane %v984, 4
        %v986 = vadd.f32 %v984, %v985
        %v987 = vrot.slane %v986, 2
        %v988 = vadd.f32 %v986, %v987
        %v989 = vrot.slane %v988, 1
        %v990 = vadd.f32 %v988, %v989
        %s991 = vtos %v990
        %v992 = vsel %vm683, %v964, 0.0
        %v993 = vsel %vm693, %v992, 0.0
        %994 = vadd.xlane.f32.xlu0 %v993
        %v995 = vpop.xlane.xlu0 %994
        %v996 = vrot.slane %v995, 4
        %v997 = vadd.f32 %v995, %v996
        %v998 = vrot.slane %v997, 2
        %v999 = vadd.f32 %v997, %v998
        %v1000 = vrot.slane %v999, 1
        %v1001 = vadd.f32 %v999, %v1000
        %s1002 = vtos %v1001
        %s1003 = ssub.f32 %s1002, %s991
        %s1004 = sld [smem:[#allocation5 + %s865]]
        %v1005 = vstv %s1004
        %vm1006 = vcmp.eq.s32.totalorder %v677, %v1005
        %v1007 = vsel %vm1006, -1.0, %v690
        %v1008 = vsel %vm504, %v1007, -inf
        %1009 = vmax.xlane.f32.xlu0 %v1008
        %v1010 = vpop.xlane.xlu0 %1009
        %v1011 = vrot.slane %v1010, 4
        %v1012 = vmax.f32 %v1010, %v1011
        %v1013 = vrot.slane %v1012, 2
        %v1014 = vmax.f32 %v1012, %v1013
        %v1015 = vrot.slane %v1014, 1
        %v1016 = vmax.f32 %v1014, %v1015
        %s1017 = vtos %v1016
        %v1019 = vrot.slane %v850, 1
        %s1021 = vtos %v1019
        %s1022 = ssub.f32 0.4, %s1021
        %s1023 = sadd.f32 %s1022, %s1017
        %s1024 = smax.f32 %s1023, 0.0
        %s1025 = sadd.f32 %s914, %s1003
        %s1026 = sadd.f32 %s1025, %s1024
        %v1027 = vstv %s1026
        %v1028 = vsel %vm857, %v1027, 0.0
        %v1029 = vstv %s944
        %v1030 = vsel %vm860, %v1029, 0.0
        %v1031 = vadd.f32 %v1028, %v1030
        %s1032 = scalar_lea.vmem %s377, 1 [#allocation16]
        %1033 = vst [vmem:[%s1032] sm:$0x1] %v1031
        %s1034 = sadd.s32 %s385, 2
        %s1035 = sld [smem:[#allocation3 + %s1034]]
        %v1036 = vsel %vm680, %v491, -1e+30
        %v1037 = vsel %vm693, %v1036, -inf
        %1038 = vmax.xlane.f32.xlu0 %v1037
        %v1039 = vpop.xlane.xlu0 %1038
        %v1040 = vrot.slane %v1039, 4
        %v1041 = vmax.f32 %v1039, %v1040
        %v1042 = vrot.slane %v1041, 2
        %v1043 = vmax.f32 %v1041, %v1042
        %v1044 = vrot.slane %v1043, 1
        %v1045 = vmax.f32 %v1043, %v1044
        %s1046 = vtos %v1045
        %v1047 = vstv %s1046
        %v1048 = vsub.f32 %v1036, %v1047
        %v1049 = vmul.f32 %v1048, 1.442695
        %v1050 = vpow.pop %v1049
        %v1051 = vsel %vm680, %v1050, 0.0
        %v1052 = vsel %vm693, %v1051, 0.0
        %1053 = vadd.xlane.f32.xlu0 %v1052
        %v1054 = vpop.xlane.xlu0 %1053
        %v1055 = vrot.slane %v1054, 4
        %v1056 = vadd.f32 %v1054, %v1055
        %v1057 = vrot.slane %v1056, 2
        %v1058 = vadd.f32 %v1056, %v1057
        %v1059 = vrot.slane %v1058, 1
        %v1060 = vadd.f32 %v1058, %v1059
        %s1061 = vtos %v1060
        %v1062 = vstv %s1061
        %v1063 = vlog2.pop %v1062
        %v1064 = vmul.f32 %v1063, 0.6931472
        %s1065 = vtos %v1064
        %s1066 = sadd.f32 %s1046, %s1065
        %v1067 = vstv %s1035
        %vm1068 = vcmp.eq.s32.totalorder %v677, %v1067
        %v1069 = vsel %vm1068, %v491, 0.0
        %v1070 = vsel %vm693, %v1069, 0.0
        %1071 = vadd.xlane.f32.xlu0 %v1070
        %v1072 = vpop.xlane.xlu0 %1071
        %v1073 = vrot.slane %v1072, 4
        %v1074 = vadd.f32 %v1072, %v1073
        %v1075 = vrot.slane %v1074, 2
        %v1076 = vadd.f32 %v1074, %v1075
        %v1077 = vrot.slane %v1076, 1
        %v1078 = vadd.f32 %v1076, %v1077
        %s1079 = vtos %v1078
        %s1080 = sld [smem:[#allocation15 + %s1035]]
        %s1081 = ssub.f32 0.0, %s1080
        %s1082 = ssub.f32 %s1079, %s1066
        %s1083 = smul.f32 %s1081, %s1082
        %vm1084 = vcmp.eq.f32.partialorder %v1036, %v1047
        %v1085 = vsel %vm1084, %v677, 128
        %v1086 = vsel %vm693, %v1085, 2147483647
        %v1087 = vand.u32 %v1086, 65535
        %v1088 = vshra.s32 %v1086, 16
        %v1089 = vcvt.s32.f32 %v1087
        %v1090 = vcvt.s32.f32 %v1088
        %1091 = vmin.xlane.f32.xlu0 %v1090
        %v1092 = vpop.xlane.xlu0 %1091
        %vm1093 = vcmp.eq.f32.partialorder %v1090, %v1092
        %v1094 = vsel %vm1093, %v1089, inf
        %1095 = vmin.xlane.f32.xlu0 %v1094
        %v1096 = vpop.xlane.xlu0 %1095
        %v1097 = vcvt.f32.s32 %v1096
        %v1098 = vcvt.f32.s32 %v1092
        %v1099 = vshll.u32 %v1098, 16
        %v1100 = vadd.s32 %v1099, %v1097
        %v1101 = vrot.slane %v1100, 4
        %vm1102 = vcmp.lt.s32.totalorder %v1100, %v1101
        %v1103 = vsel %vm1102, %v1100, %v1101
        %v1104 = vrot.slane %v1103, 2
        %vm1105 = vcmp.lt.s32.totalorder %v1103, %v1104
        %v1106 = vsel %vm1105, %v1103, %v1104
        %v1107 = vrot.slane %v1106, 1
        %vm1108 = vcmp.lt.s32.totalorder %v1106, %v1107
        %v1109 = vsel %vm1108, %v1106, %v1107
        %s1110 = vtos %v1109
        %p1111 = scmp.eq.s32.totalorder %s1110, %s1035
        %s1112 = scalar_select %p1111, 1, 0
        %s1113 = scvt.s32.f32 %s1112
        %v1114 = vsel %vm772, %v491, -1e+30
        %v1115 = vrot.slane %v1114, 4
        %v1116 = vmax.f32 %v1114, %v1115
        %v1117 = vrot.slane %v1116, 2
        %v1118 = vmax.f32 %v1116, %v1117
        %v1119 = vrot.slane %v1118, 1
        %v1120 = vmax.f32 %v1118, %v1119
        %v1121 = vsub.f32 %v1114, %v1120
        %v1122 = vmul.f32 %v1121, 1.442695
        %v1123 = vpow.pop %v1122
        %v1124 = vsel %vm772, %v1123, 0.0
        %v1125 = vrot.slane %v1124, 4
        %v1126 = vadd.f32 %v1124, %v1125
        %v1127 = vrot.slane %v1126, 2
        %v1128 = vadd.f32 %v1126, %v1127
        %v1129 = vrot.slane %v1128, 1
        %v1130 = vadd.f32 %v1128, %v1129
        %v1131 = vlog2.pop %v1130
        %v1132 = vmul.f32 %v1131, 0.6931472
        %v1133 = vadd.f32 %v1120, %v1132
        %s1134 = smul.u32 %s1034, 128
        %s1135 = sld [smem:[#allocation4 + %s1134]]
        %s1136 = sadd.s32 %s1135, 1
        %s1137 = sadd.s32 %s1134, 1
        %s1138 = sld [smem:[#allocation4 + %s1137]]
        %s1139 = sadd.s32 %s1138, 1
        %v1140 = vstv %s1136
        %vm1141 = vcmp.eq.s32.totalorder %v679, %v1140
        %v1142 = vsel %vm1141, 1, 0
        %vm1143 = vcmp.eq.s32.totalorder %v1142, 1
        %vm1144 = vmand %vm1143, %vm804
        %v1145 = vstv %s1139
        %vm1146 = vcmp.eq.s32.totalorder %v679, %v1145
        %v1147 = vsel %vm1146, 1, 0
        %vm1148 = vcmp.eq.s32.totalorder %v1147, 1
        %vm1149 = vmand %vm1148, %vm811
        %vm1150 = vmor %vm1144, %vm1149
        %v1151 = vsel %vm1150, %v491, 0.0
        %1152 = vadd.xlane.f32.xlu0 %v1151
        %v1153 = vpop.xlane.xlu0 %1152
        %v1154 = vrot.slane %v1153, 4
        %v1155 = vadd.f32 %v1153, %v1154
        %v1156 = vrot.slane %v1155, 2
        %v1157 = vadd.f32 %v1155, %v1156
        %v1158 = vrot.slane %v1157, 1
        %v1159 = vadd.f32 %v1157, %v1158
        %s1160 = vtos %v1159
        %v1161 = vsel %vm683, %v1133, 0.0
        %v1162 = vsel %vm693, %v1161, 0.0
        %1163 = vadd.xlane.f32.xlu0 %v1162
        %v1164 = vpop.xlane.xlu0 %1163
        %v1165 = vrot.slane %v1164, 4
        %v1166 = vadd.f32 %v1164, %v1165
        %v1167 = vrot.slane %v1166, 2
        %v1168 = vadd.f32 %v1166, %v1167
        %v1169 = vrot.slane %v1168, 1
        %v1170 = vadd.f32 %v1168, %v1169
        %s1171 = vtos %v1170
        %s1172 = ssub.f32 %s1171, %s1160
        %s1173 = sld [smem:[#allocation5 + %s1034]]
        %v1174 = vstv %s1173
        %vm1175 = vcmp.eq.s32.totalorder %v677, %v1174
        %v1176 = vsel %vm1175, -1.0, %v690
        %v1177 = vsel %vm507, %v1176, -inf
        %1178 = vmax.xlane.f32.xlu0 %v1177
        %v1179 = vpop.xlane.xlu0 %1178
        %v1180 = vrot.slane %v1179, 4
        %v1181 = vmax.f32 %v1179, %v1180
        %v1182 = vrot.slane %v1181, 2
        %v1183 = vmax.f32 %v1181, %v1182
        %v1184 = vrot.slane %v1183, 1
        %v1185 = vmax.f32 %v1183, %v1184
        %s1186 = vtos %v1185
        %v1187 = vrot.slane %v850, 2
        %s1189 = vtos %v1187
        %s1190 = ssub.f32 0.4, %s1189
        %s1191 = sadd.f32 %s1190, %s1186
        %s1192 = smax.f32 %s1191, 0.0
        %s1193 = sadd.f32 %s1083, %s1172
        %s1194 = sadd.f32 %s1193, %s1192
        %v1195 = vstv %s1194
        %v1196 = vsel %vm857, %v1195, 0.0
        %v1197 = vstv %s1113
        %v1198 = vsel %vm860, %v1197, 0.0
        %v1199 = vadd.f32 %v1196, %v1198
        %s1200 = scalar_lea.vmem %s377, 2 [#allocation16]
        %1201 = vst [vmem:[%s1200] sm:$0x1] %v1199
        %s1202 = sadd.s32 %s385, 3
        %s1203 = sld [smem:[#allocation3 + %s1202]]
        %v1204 = vsel %vm680, %v496, -1e+30
        %v1205 = vsel %vm693, %v1204, -inf
        %1206 = vmax.xlane.f32.xlu0 %v1205
        %v1207 = vpop.xlane.xlu0 %1206
        %v1208 = vrot.slane %v1207, 4
        %v1209 = vmax.f32 %v1207, %v1208
        %v1210 = vrot.slane %v1209, 2
        %v1211 = vmax.f32 %v1209, %v1210
        %v1212 = vrot.slane %v1211, 1
        %v1213 = vmax.f32 %v1211, %v1212
        %s1214 = vtos %v1213
        %v1215 = vstv %s1214
        %v1216 = vsub.f32 %v1204, %v1215
        %v1217 = vmul.f32 %v1216, 1.442695
        %v1218 = vpow.pop %v1217
        %v1219 = vsel %vm680, %v1218, 0.0
        %v1220 = vsel %vm693, %v1219, 0.0
        %1221 = vadd.xlane.f32.xlu0 %v1220
        %v1222 = vpop.xlane.xlu0 %1221
        %v1223 = vrot.slane %v1222, 4
        %v1224 = vadd.f32 %v1222, %v1223
        %v1225 = vrot.slane %v1224, 2
        %v1226 = vadd.f32 %v1224, %v1225
        %v1227 = vrot.slane %v1226, 1
        %v1228 = vadd.f32 %v1226, %v1227
        %s1229 = vtos %v1228
        %v1230 = vstv %s1229
        %v1231 = vlog2.pop %v1230
        %v1232 = vmul.f32 %v1231, 0.6931472
        %s1233 = vtos %v1232
        %s1234 = sadd.f32 %s1214, %s1233
        %v1235 = vstv %s1203
        %vm1236 = vcmp.eq.s32.totalorder %v677, %v1235
        %v1237 = vsel %vm1236, %v496, 0.0
        %v1238 = vsel %vm693, %v1237, 0.0
        %1239 = vadd.xlane.f32.xlu0 %v1238
        %v1240 = vpop.xlane.xlu0 %1239
        %v1241 = vrot.slane %v1240, 4
        %v1242 = vadd.f32 %v1240, %v1241
        %v1243 = vrot.slane %v1242, 2
        %v1244 = vadd.f32 %v1242, %v1243
        %v1245 = vrot.slane %v1244, 1
        %v1246 = vadd.f32 %v1244, %v1245
        %s1247 = vtos %v1246
        %s1248 = sld [smem:[#allocation15 + %s1203]]
        %s1249 = ssub.f32 0.0, %s1248
        %s1250 = ssub.f32 %s1247, %s1234
        %s1251 = smul.f32 %s1249, %s1250
        %vm1252 = vcmp.eq.f32.partialorder %v1204, %v1215
        %v1253 = vsel %vm1252, %v677, 128
        %v1254 = vsel %vm693, %v1253, 2147483647
        %v1255 = vand.u32 %v1254, 65535
        %v1256 = vshra.s32 %v1254, 16
        %v1257 = vcvt.s32.f32 %v1255
        %v1258 = vcvt.s32.f32 %v1256
        %1259 = vmin.xlane.f32.xlu0 %v1258
        %v1260 = vpop.xlane.xlu0 %1259
        %vm1261 = vcmp.eq.f32.partialorder %v1258, %v1260
        %v1262 = vsel %vm1261, %v1257, inf
        %1263 = vmin.xlane.f32.xlu0 %v1262
        %v1264 = vpop.xlane.xlu0 %1263
        %v1265 = vcvt.f32.s32 %v1264
        %v1266 = vcvt.f32.s32 %v1260
        %v1267 = vshll.u32 %v1266, 16
        %v1268 = vadd.s32 %v1267, %v1265
        %v1269 = vrot.slane %v1268, 4
        %vm1270 = vcmp.lt.s32.totalorder %v1268, %v1269
        %v1271 = vsel %vm1270, %v1268, %v1269
        %v1272 = vrot.slane %v1271, 2
        %vm1273 = vcmp.lt.s32.totalorder %v1271, %v1272
        %v1274 = vsel %vm1273, %v1271, %v1272
        %v1275 = vrot.slane %v1274, 1
        %vm1276 = vcmp.lt.s32.totalorder %v1274, %v1275
        %v1277 = vsel %vm1276, %v1274, %v1275
        %s1278 = vtos %v1277
        %p1279 = scmp.eq.s32.totalorder %s1278, %s1203
        %s1280 = scalar_select %p1279, 1, 0
        %s1281 = scvt.s32.f32 %s1280
        %v1282 = vsel %vm772, %v496, -1e+30
        %v1283 = vrot.slane %v1282, 4
        %v1284 = vmax.f32 %v1282, %v1283
        %v1285 = vrot.slane %v1284, 2
        %v1286 = vmax.f32 %v1284, %v1285
        %v1287 = vrot.slane %v1286, 1
        %v1288 = vmax.f32 %v1286, %v1287
        %v1289 = vsub.f32 %v1282, %v1288
        %v1290 = vmul.f32 %v1289, 1.442695
        %v1291 = vpow.pop %v1290
        %v1292 = vsel %vm772, %v1291, 0.0
        %v1293 = vrot.slane %v1292, 4
        %v1294 = vadd.f32 %v1292, %v1293
        %v1295 = vrot.slane %v1294, 2
        %v1296 = vadd.f32 %v1294, %v1295
        %v1297 = vrot.slane %v1296, 1
        %v1298 = vadd.f32 %v1296, %v1297
        %v1299 = vlog2.pop %v1298
        %v1300 = vmul.f32 %v1299, 0.6931472
        %v1301 = vadd.f32 %v1288, %v1300
        %s1302 = smul.u32 %s1202, 128
        %s1303 = sld [smem:[#allocation4 + %s1302]]
        %s1304 = sadd.s32 %s1303, 1
        %s1305 = sadd.s32 %s1302, 1
        %s1306 = sld [smem:[#allocation4 + %s1305]]
        %s1307 = sadd.s32 %s1306, 1
        %v1308 = vstv %s1304
        %vm1309 = vcmp.eq.s32.totalorder %v679, %v1308
        %v1310 = vsel %vm1309, 1, 0
        %vm1311 = vcmp.eq.s32.totalorder %v1310, 1
        %vm1312 = vmand %vm1311, %vm804
        %v1313 = vstv %s1307
        %vm1314 = vcmp.eq.s32.totalorder %v679, %v1313
        %v1315 = vsel %vm1314, 1, 0
        %vm1316 = vcmp.eq.s32.totalorder %v1315, 1
        %vm1317 = vmand %vm1316, %vm811
        %vm1318 = vmor %vm1312, %vm1317
        %v1319 = vsel %vm1318, %v496, 0.0
        %1320 = vadd.xlane.f32.xlu0 %v1319
        %v1321 = vpop.xlane.xlu0 %1320
        %v1322 = vrot.slane %v1321, 4
        %v1323 = vadd.f32 %v1321, %v1322
        %v1324 = vrot.slane %v1323, 2
        %v1325 = vadd.f32 %v1323, %v1324
        %v1326 = vrot.slane %v1325, 1
        %v1327 = vadd.f32 %v1325, %v1326
        %s1328 = vtos %v1327
        %v1329 = vsel %vm683, %v1301, 0.0
        %v1330 = vsel %vm693, %v1329, 0.0
        %1331 = vadd.xlane.f32.xlu0 %v1330
        %v1332 = vpop.xlane.xlu0 %1331
        %v1333 = vrot.slane %v1332, 4
        %v1334 = vadd.f32 %v1332, %v1333
        %v1335 = vrot.slane %v1334, 2
        %v1336 = vadd.f32 %v1334, %v1335
        %v1337 = vrot.slane %v1336, 1
        %v1338 = vadd.f32 %v1336, %v1337
        %s1339 = vtos %v1338
        %s1340 = ssub.f32 %s1339, %s1328
        %s1341 = sld [smem:[#allocation5 + %s1202]]
        %v1342 = vstv %s1341
        %vm1343 = vcmp.eq.s32.totalorder %v677, %v1342
        %v1344 = vsel %vm1343, -1.0, %v690
        %v1345 = vsel %vm510, %v1344, -inf
        %1346 = vmax.xlane.f32.xlu0 %v1345
        %v1347 = vpop.xlane.xlu0 %1346
        %v1348 = vrot.slane %v1347, 4
        %v1349 = vmax.f32 %v1347, %v1348
        %v1350 = vrot.slane %v1349, 2
        %v1351 = vmax.f32 %v1349, %v1350
        %v1352 = vrot.slane %v1351, 1
        %v1353 = vmax.f32 %v1351, %v1352
        %s1354 = vtos %v1353
        %v1355 = vrot.slane %v850, 3
        %s1357 = vtos %v1355
        %s1358 = ssub.f32 0.4, %s1357
        %s1359 = sadd.f32 %s1358, %s1354
        %s1360 = smax.f32 %s1359, 0.0
        %s1361 = sadd.f32 %s1251, %s1340
        %s1362 = sadd.f32 %s1361, %s1360
        %v1363 = vstv %s1362
        %v1364 = vsel %vm857, %v1363, 0.0
        %v1365 = vstv %s1281
        %v1366 = vsel %vm860, %v1365, 0.0
        %v1367 = vadd.f32 %v1364, %v1366
        %s1368 = scalar_lea.vmem %s377, 3 [#allocation16]
        %1369 = vst [vmem:[%s1368] sm:$0x1] %v1367
        %s1370 = sand.u32 %s205, 1
        %s1371 = scalar_lea.sflag [#allocation8], %s1370
        %s1372 = sand.u32 %s205, 1
        %s1373 = smul.addr %s1372, 4
        %s1374 = scalar_lea.vmem [#allocation16], %s1373
        // Predicated region
        $region69: #{tpu_custom_call.1} parent=47 // pred_check
          %p1375 = pneg %p215
        $region70: #{tpu_custom_call.1} parent=47 // pred_check_branch
          %1377 = sbr.rel (%p1375) target = $region72
        $region71: #{tpu_custom_call.1} parent=47 // pred_region
          %s1378 = smul.u32 4, %s40
          %s1380 = ssub.s32 64, 64
          %1381 = vsyncadd %s1371, %s1380
          %s1382 = smul.addr %s1378, 16
          %s1383 = scalar_lea.hbm %s10, %s1382
          %s1384 = sshll.u32 %s1374, 4
          %s1385 = int_to_ptr.vmem [resolvable:$true] %s1384
          %1390 = dma.vmem_to_hbm [thread:$0]  %s1385, 64, %s1383, %s1371, 16, 16, 1
        $region72: #{tpu_custom_call.1} parent=47 // pred_fallthru
          _
      $region48: #{tpu_custom_call.1} parent=5 // pred_fallthru
        _
      %p1391 = scmp.le.s32.totalorder 2, %s35
      // Predicated region
      $region73: #{tpu_custom_call.1} parent=5 // pred_check
        %p1392 = pneg %p1391
      $region74: #{tpu_custom_call.1} parent=5 // pred_check_branch
        %1394 = sbr.rel (%p1392) target = $region76
      $region75: #{tpu_custom_call.1} parent=5 // pred_region
        %s1395 = ssub.s32 %s35, 2
        // Predicated region
        $region77: #{tpu_custom_call.1} parent=75 // pred_check
          %p1396 = pneg %p221
        $region78: #{tpu_custom_call.1} parent=75 // pred_check_branch
          %1398 = sbr.rel (%p1396) target = $region80
        $region79: #{tpu_custom_call.1} parent=75 // pred_region
          %s1399 = sand.u32 %s206, 1
          %s1400 = scalar_lea.sflag [#allocation8], %s1399
          %s1401 = sand.u32 %s206, 1
          %s1402 = smul.addr %s1401, 4
          %s1403 = scalar_lea.vmem [#allocation16], %s1402
          %1404 = dma.done %s1400, 64
        $region80: #{tpu_custom_call.1} parent=75 // pred_fallthru
          _
      $region76: #{tpu_custom_call.1} parent=5 // pred_fallthru
        _
    $region6: #{tpu_custom_call.1} parent=1 // loop_footer
      %s39 = sadd.s32 1, %s35
    $region7: #{tpu_custom_call.1} parent=1 // loop_footer_branch
      %34 = sbr.rel target = $region3
    $region8: #{tpu_custom_call.1} parent=1 // loop_exit
      _
    %1405 = vsyncpa [#allocation7], 1
    %s1406 = scalar_lea.sflag [#allocation7], 1
    %1407 = vsyncpa %s1406, 1
    %1408 = vsyncpa [#allocation11], 1
    %1409 = vsyncpa [#allocation14], 1
    %1410 = vsyncpa [#allocation8], 1
    %s1411 = scalar_lea.sflag [#allocation8], 1
    %1412 = vsyncpa %s1411, 1
    %1413 = vsyncpa [#allocation9], 1
    %s1414 = scalar_lea.sflag [#allocation9], 1
    %1415 = vsyncpa %s1414, 1

// kernel: tpu_custom_call.1
$region0: #{tpu_custom_call.1}
  #allocation0 [shape = 'u32[]', space=smem, size = 0x4, offset = 0x4, fixed_abs, tag = 'smem constant byte address 0x4 - core index']
  #allocation1 [shape = 'u32[144,128]{1,0:T(1,128)}', space=vmem, size = 0x12000, scoped, tag = 'internal scratch']
  #allocation2 [shape = 's32[1]{0}', space=sflag, size = 0x4, scoped, tag = 'scoped memory for tpu_custom_call.1']
  #allocation3 [shape = 'u8[512]{0}', space=smem, size = 0x200, scoped, tag = 'prefetched SMEM operand 0']
  #allocation4 [shape = 'u8[4096]{0}', space=smem, size = 0x1000, scoped, tag = 'prefetched SMEM operand 1']
  #allocation5 [shape = 'u8[512]{0}', space=smem, size = 0x200, scoped, tag = 'prefetched SMEM operand 2']
  %s0 = inlined_call_operand.hbm [shape: s32[8], index: 0, kind: input, shape index: {}]
  %s1 = inlined_call_operand.vmem [shape: s32[8,2], index: 1, kind: input, shape index: {}]
  %s2 = inlined_call_operand.hbm [shape: s32[8], index: 2, kind: input, shape index: {}]
  %s3 = inlined_call_operand.hbm [shape: f32[8,8,32], index: 3, kind: input, shape index: {}]
  %s4 = inlined_call_operand.hbm [shape: f32[32,128], index: 4, kind: input, shape index: {}]
  %s5 = inlined_call_operand.hbm [shape: f32[1,128], index: 5, kind: input, shape index: {}]
  %s6 = inlined_call_operand.vmem [shape: f32[32,128], index: 6, kind: input, shape index: {}]
  %s7 = inlined_call_operand.hbm [shape: f32[1,128], index: 7, kind: input, shape index: {}]
  %s8 = inlined_call_operand.vmem [shape: f32[8,1,32], index: 8, kind: input, shape index: {}]
  %s9 = inlined_call_operand.vmem [shape: f32[3], index: 9, kind: input, shape index: {}]
  %s10 = inlined_call_operand.hbm [shape: f32[8,1,128], index: 10, kind: output, shape index: {}]
  %s11 = sld [smem:[#allocation0]]
  $region81: #{tpu_custom_call.1} parent=0
    _
  %s13 = ssub.s32 1, %s11
  %s14 = scalar_select 0, %s13, %s11
  %16 = dma.hbm_to_smem %s0, 16, [#allocation3], [#allocation2]
  %s17 = sshll.u32 %s1, 4
  %s18 = int_to_ptr.vmem [resolvable:$true] %s17
  %20 = dma.vmem_to_smem %s18, 128, [#allocation4], [#allocation2]
  %22 = dma.hbm_to_smem %s2, 16, [#allocation5], [#allocation2]
  %23 = dma.done [#allocation2], 160
  %24 = sfence
  $region1: #{tpu_custom_call.1} parent=0
    #allocation6 [shape = 'u8[32768]{0}', space=vmem, size = 0x8000, scoped, tag = 'input window, operand 3']
    #allocation7 [shape = 's32[2]{0}', space=sflag, size = 0x8, scoped, tag = 'scoped memory for tpu_custom_call.1']
    #allocation8 [shape = 's32[2]{0}', space=sflag, size = 0x8, scoped, tag = 'scoped memory for tpu_custom_call.1']
    #allocation9 [shape = 's32[2]{0}', space=sflag, size = 0x8, scoped, tag = 'scoped memory for tpu_custom_call.1']
    #allocation10 [shape = 'u8[16384]{0}', space=vmem, size = 0x4000, scoped, tag = 'input window, operand 4, single buffered']
    #allocation11 [shape = 's32[1]{0}', space=sflag, size = 0x4, scoped, tag = 'scoped memory for tpu_custom_call.1']
    #allocation12 [shape = 'u8[512]{0}', space=vmem, size = 0x400, scoped, tag = 'input window, operand 5, single buffered']
    #allocation13 [shape = 'u8[512]{0}', space=vmem, size = 0x400, scoped, tag = 'input window, operand 7, single buffered']
    #allocation14 [shape = 's32[1]{0}', space=sflag, size = 0x4, scoped, tag = 'scoped memory for tpu_custom_call.1']
    #allocation15 [shape = 'u8[512]{0}', space=smem, size = 0x200, scoped, tag = 'input window, operand 9, single buffered']
    #allocation16 [shape = 'u8[4096]{0}', space=vmem, size = 0x1000, scoped, tag = 'output window, operand 0']
    %25 = vsyncpa [#allocation7], 0
    %s26 = scalar_lea.sflag [#allocation7], 1
    %27 = vsyncpa %s26, 0
    %28 = vsyncpa [#allocation11], 0
    %29 = vsyncpa [#allocation14], 0
    %30 = vsyncpa [#allocation9], 0
    %31 = vsyncpa [#allocation8], 0
    %s32 = scalar_lea.sflag [#allocation8], 1
    %33 = vsyncpa %s32, 0
    loop: start=0, step=1, limit=4
    $region2: #{tpu_custom_call.1} parent=1 // loop_pre_header
      _
    $region3: #{tpu_custom_call.1} parent=1 // loop_header
      %s35 = sphi 0, %s39
      %p36 = scmp.ge.s32.totalorder %s35, 4
      %s45 = sphi 0, %s47
      %s48 = sphi 0, %s45
      %s49 = sphi 0, %s48
      %s65 = sphi 0, %s49
      %s69 = sphi 0, %s69
      %s71 = sphi 0, %s69
      %s72 = sphi 0, %s71
      %s86 = sphi 0, %s72
      %s90 = sphi 0, %s90
      %s92 = sphi 0, %s90
      %s93 = sphi 0, %s92
      %s107 = sphi 0, %s93
      %s111 = sphi 0, %s111
      %s113 = sphi 0, %s111
      %s114 = sphi 0, %s113
      %s128 = sphi 0, %s114
      %s132 = sphi 0, %s132
      %s134 = sphi 0, %s132
      %s135 = sphi 0, %s134
      %s149 = sphi 0, %s135
      %s155 = sphi 0, %s157
      %s158 = sphi 0, %s155
      %s159 = sphi 0, %s158
      %s175 = sphi 0, %s159
      %s179 = sphi 0, %s179
      %s181 = sphi 0, %s179
      %s182 = sphi 0, %s181
      %s196 = sphi 0, %s182
      %s202 = sphi 0, %s204
      %s205 = sphi 0, %s202
      %s206 = sphi 0, %s205
      %s222 = sphi 0, %s206
    $region4: #{tpu_custom_call.1} parent=1 // loop_header_branch
      %38 = sbr.rel (%p36) target = $region8
    $region5: #{tpu_custom_call.1} parent=1 // loop_body
      %s40 = ssub.s32 %s35, 1
      %s41 = ssub.s32 %s35, 2
      %s42 = sadd.s32 %s35, 1
      %s43 = ssub.s32 %s35, %s42
      %p44 = scmp.eq.s32.totalorder %s43, 0
      %s46 = sadd.s32 %s45, 1
      %s47 = scalar_select %p44, %s45, %s46
      %p50 = pneg %p44
      %p51 = scmp.eq.s32.totalorder %s35, 1
      %p52 = por %p50, %p51
      %p53 = scmp.ne.s32.totalorder %s45, %s48
      %p54 = scmp.eq.s32.totalorder %s35, 0
      %p55 = por %p53, %p54
      %p56 = scmp.ne.s32.totalorder %s45, %s48
      %p57 = scmp.eq.s32.totalorder %s40, 1
      %p58 = por %p56, %p57
      %p59 = scmp.ne.s32.totalorder %s48, %s49
      %p60 = scmp.eq.s32.totalorder %s40, 0
      %p61 = por %p59, %p60
      %p62 = scmp.ne.s32.totalorder %s48, %s49
      %p63 = scmp.eq.s32.totalorder %s41, 1
      %p64 = por %p62, %p63
      %p66 = scmp.ne.s32.totalorder %s49, %s65
      %p67 = scmp.eq.s32.totalorder %s41, 0
      %p68 = por %p66, %p67
      %s70 = sadd.s32 %s69, 1
      %p73 = scmp.eq.s32.totalorder %s35, 1
      %p74 = scmp.ne.s32.totalorder %s69, %s71
      %p75 = scmp.eq.s32.totalorder %s35, 0
      %p76 = por %p74, %p75
      %p77 = scmp.ne.s32.totalorder %s69, %s71
      %p78 = scmp.eq.s32.totalorder %s40, 1
      %p79 = por %p77, %p78
      %p80 = scmp.ne.s32.totalorder %s71, %s72
      %p81 = scmp.eq.s32.totalorder %s40, 0
      %p82 = por %p80, %p81
      %p83 = scmp.ne.s32.totalorder %s71, %s72
      %p84 = scmp.eq.s32.totalorder %s41, 1
      %p85 = por %p83, %p84
      %p87 = scmp.ne.s32.totalorder %s72, %s86
      %p88 = scmp.eq.s32.totalorder %s41, 0
      %p89 = por %p87, %p88
      %s91 = sadd.s32 %s90, 1
      %p94 = scmp.eq.s32.totalorder %s35, 1
      %p95 = scmp.ne.s32.totalorder %s90, %s92
      %p96 = scmp.eq.s32.totalorder %s35, 0
      %p97 = por %p95, %p96
      %p98 = scmp.ne.s32.totalorder %s90, %s92
      %p99 = scmp.eq.s32.totalorder %s40, 1
      %p100 = por %p98, %p99
      %p101 = scmp.ne.s32.totalorder %s92, %s93
      %p102 = scmp.eq.s32.totalorder %s40, 0
      %p103 = por %p101, %p102
      %p104 = scmp.ne.s32.totalorder %s92, %s93
      %p105 = scmp.eq.s32.totalorder %s41, 1
      %p106 = por %p104, %p105
      %p108 = scmp.ne.s32.totalorder %s93, %s107
      %p109 = scmp.eq.s32.totalorder %s41, 0
      %p110 = por %p108, %p109
      %s112 = sadd.s32 %s111, 1
      %p115 = scmp.eq.s32.totalorder %s35, 1
      %p116 = scmp.ne.s32.totalorder %s111, %s113
      %p117 = scmp.eq.s32.totalorder %s35, 0
      %p118 = por %p116, %p117
      %p119 = scmp.ne.s32.totalorder %s111, %s113
      %p120 = scmp.eq.s32.totalorder %s40, 1
      %p121 = por %p119, %p120
      %p122 = scmp.ne.s32.totalorder %s113, %s114
      %p123 = scmp.eq.s32.totalorder %s40, 0
      %p124 = por %p122, %p123
      %p125 = scmp.ne.s32.totalorder %s113, %s114
      %p126 = scmp.eq.s32.totalorder %s41, 1
      %p127 = por %p125, %p126
      %p129 = scmp.ne.s32.totalorder %s114, %s128
      %p130 = scmp.eq.s32.totalorder %s41, 0
      %p131 = por %p129, %p130
      %s133 = sadd.s32 %s132, 1
      %p136 = scmp.eq.s32.totalorder %s35, 1
      %p137 = scmp.ne.s32.totalorder %s132, %s134
      %p138 = scmp.eq.s32.totalorder %s35, 0
      %p139 = por %p137, %p138
      %p140 = scmp.ne.s32.totalorder %s132, %s134
      %p141 = scmp.eq.s32.totalorder %s40, 1
      %p142 = por %p140, %p141
      %p143 = scmp.ne.s32.totalorder %s134, %s135
      %p144 = scmp.eq.s32.totalorder %s40, 0
      %p145 = por %p143, %p144
      %p146 = scmp.ne.s32.totalorder %s134, %s135
      %p147 = scmp.eq.s32.totalorder %s41, 1
      %p148 = por %p146, %p147
      %p150 = scmp.ne.s32.totalorder %s135, %s149
      %p151 = scmp.eq.s32.totalorder %s41, 0
      %p152 = por %p150, %p151
      %s153 = ssub.s32 %s35, %s42
      %p154 = scmp.eq.s32.totalorder %s153, 0
      %s156 = sadd.s32 %s155, 1
      %s157 = scalar_select %p154, %s155, %s156
      %p160 = pneg %p154
      %p161 = scmp.eq.s32.totalorder %s35, 1
      %p162 = por %p160, %p161
      %p163 = scmp.ne.s32.totalorder %s155, %s158
      %p164 = scmp.eq.s32.totalorder %s35, 0
      %p165 = por %p163, %p164
      %p166 = scmp.ne.s32.totalorder %s155, %s158
      %p167 = scmp.eq.s32.totalorder %s40, 1
      %p168 = por %p166, %p167
      %p169 = scmp.ne.s32.totalorder %s158, %s159
      %p170 = scmp.eq.s32.totalorder %s40, 0
      %p171 = por %p169, %p170
      %p172 = scmp.ne.s32.totalorder %s158, %s159
      %p173 = scmp.eq.s32.totalorder %s41, 1
      %p174 = por %p172, %p173
      %p176 = scmp.ne.s32.totalorder %s159, %s175
      %p177 = scmp.eq.s32.totalorder %s41, 0
      %p178 = por %p176, %p177
      %s180 = sadd.s32 %s179, 1
      %p183 = scmp.eq.s32.totalorder %s35, 1
      %p184 = scmp.ne.s32.totalorder %s179, %s181
      %p185 = scmp.eq.s32.totalorder %s35, 0
      %p186 = por %p184, %p185
      %p187 = scmp.ne.s32.totalorder %s179, %s181
      %p188 = scmp.eq.s32.totalorder %s40, 1
      %p189 = por %p187, %p188
      %p190 = scmp.ne.s32.totalorder %s181, %s182
      %p191 = scmp.eq.s32.totalorder %s40, 0
      %p192 = por %p190, %p191
      %p193 = scmp.ne.s32.totalorder %s181, %s182
      %p194 = scmp.eq.s32.totalorder %s41, 1
      %p195 = por %p193, %p194
      %p197 = scmp.ne.s32.totalorder %s182, %s196
      %p198 = scmp.eq.s32.totalorder %s41, 0
      %p199 = por %p197, %p198
      %s200 = ssub.s32 %s35, %s42
      %p201 = scmp.eq.s32.totalorder %s200, 0
      %s203 = sadd.s32 %s202, 1
      %s204 = scalar_select %p201, %s202, %s203
      %p207 = pneg %p201
      %p208 = scmp.eq.s32.totalorder %s35, 1
      %p209 = por %p207, %p208
      %p210 = scmp.ne.s32.totalorder %s202, %s205
      %p211 = scmp.eq.s32.totalorder %s35, 0
      %p212 = por %p210, %p211
      %p213 = scmp.ne.s32.totalorder %s202, %s205
      %p214 = scmp.eq.s32.totalorder %s40, 1
      %p215 = por %p213, %p214
      %p216 = scmp.ne.s32.totalorder %s205, %s206
      %p217 = scmp.eq.s32.totalorder %s40, 0
      %p218 = por %p216, %p217
      %p219 = scmp.ne.s32.totalorder %s205, %s206
      %p220 = scmp.eq.s32.totalorder %s41, 1
      %p221 = por %p219, %p220
      %p223 = scmp.ne.s32.totalorder %s206, %s222
      %p224 = scmp.eq.s32.totalorder %s41, 0
      %p225 = por %p223, %p224
      %p226 = scmp.le.s32.totalorder 1, %s35
      %p227 = scmp.lt.s32.totalorder %s35, 3
      %p228 = pnand %p226, %p227
      %p229 = pneg %p228
      // Predicated region
      $region9: #{tpu_custom_call.1} parent=5 // pred_check
        _
      $region10: #{tpu_custom_call.1} parent=5 // pred_check_branch
        %231 = sbr.rel (%p228) target = $region12
      $region11: #{tpu_custom_call.1} parent=5 // pred_region
        %s232 = ssub.s32 %s35, 1
        // Predicated region
        $region13: #{tpu_custom_call.1} parent=11 // pred_check
          %p233 = pneg %p82
        $region14: #{tpu_custom_call.1} parent=11 // pred_check_branch
          %235 = sbr.rel (%p233) target = $region16
        $region15: #{tpu_custom_call.1} parent=11 // pred_region
          %s237 = ssub.s32 512, 512
          %238 = vsyncadd [#allocation11], %s237
          %s239 = sshll.u32 [#allocation10], 4
          %s240 = int_to_ptr.vmem [resolvable:$true] %s239
          %245 = dma.hbm_to_vmem [thread:$0]  %s4, 512, %s240, [#allocation11], 128, 128, 8
        $region16: #{tpu_custom_call.1} parent=11 // pred_fallthru
          _
        // Predicated region
        $region17: #{tpu_custom_call.1} parent=11 // pred_check
          %p246 = pneg %p103
        $region18: #{tpu_custom_call.1} parent=11 // pred_check_branch
          %248 = sbr.rel (%p246) target = $region20
        $region19: #{tpu_custom_call.1} parent=11 // pred_region
          %s250 = ssub.s32 16, 16
          %251 = vsyncadd [#allocation11], %s250
          %s253 = sshll.u32 [#allocation12], 4
          %s254 = int_to_ptr.vmem [resolvable:$true] %s253
          %256 = dma.hbm_to_vmem [thread:$0]  %s5, 16, %s254, [#allocation11]
        $region20: #{tpu_custom_call.1} parent=11 // pred_fallthru
          _
        // Predicated region
        $region21: #{tpu_custom_call.1} parent=11 // pred_check
          %p257 = pneg %p124
        $region22: #{tpu_custom_call.1} parent=11 // pred_check_branch
          %259 = sbr.rel (%p257) target = $region24
        $region23: #{tpu_custom_call.1} parent=11 // pred_region
          _
        $region24: #{tpu_custom_call.1} parent=11 // pred_fallthru
          _
        // Predicated region
        $region25: #{tpu_custom_call.1} parent=11 // pred_check
          %p260 = pneg %p145
        $region26: #{tpu_custom_call.1} parent=11 // pred_check_branch
          %262 = sbr.rel (%p260) target = $region28
        $region27: #{tpu_custom_call.1} parent=11 // pred_region
          %s264 = ssub.s32 16, 16
          %265 = vsyncadd [#allocation14], %s264
          %s267 = sshll.u32 [#allocation13], 4
          %s268 = int_to_ptr.vmem [resolvable:$true] %s267
          %270 = dma.hbm_to_vmem [thread:$0]  %s7, 16, %s268, [#allocation14]
        $region28: #{tpu_custom_call.1} parent=11 // pred_fallthru
          _
        // Predicated region
        $region29: #{tpu_custom_call.1} parent=11 // pred_check
          %p271 = pneg %p192
        $region30: #{tpu_custom_call.1} parent=11 // pred_check_branch
          %273 = sbr.rel (%p271) target = $region32
        $region31: #{tpu_custom_call.1} parent=11 // pred_region
          %s275 = ssub.s32 16, 16
          %276 = vsyncadd [#allocation9], %s275
          %s278 = sshll.u32 %s9, 4
          %s279 = int_to_ptr.vmem [resolvable:$true] %s278
          %281 = dma.vmem_to_smem %s279, 16, [#allocation15], [#allocation9]
        $region32: #{tpu_custom_call.1} parent=11 // pred_fallthru
          _
      $region12: #{tpu_custom_call.1} parent=5 // pred_fallthru
        _
      %p282 = scmp.lt.s32.totalorder %s35, 2
      // Predicated region
      $region33: #{tpu_custom_call.1} parent=5 // pred_check
        %p283 = pneg %p282
      $region34: #{tpu_custom_call.1} parent=5 // pred_check_branch
        %285 = sbr.rel (%p283) target = $region36
      $region35: #{tpu_custom_call.1} parent=5 // pred_region
        // Predicated region
        $region37: #{tpu_custom_call.1} parent=35 // pred_check
          %p286 = pneg %p55
        $region38: #{tpu_custom_call.1} parent=35 // pred_check_branch
          %288 = sbr.rel (%p286) target = $region40
        $region39: #{tpu_custom_call.1} parent=35 // pred_region
          %s289 = sand.u32 %s45, 1
          %s290 = scalar_lea.sflag [#allocation7], %s289
          %s291 = sand.u32 %s45, 1
          %s292 = smul.addr %s291, 32
          %s293 = scalar_lea.vmem [#allocation6], %s292
          %s294 = smul.u32 4, %s35
          %s296 = ssub.s32 512, 512
          %297 = vsyncadd %s290, %s296
          %s298 = smul.addr %s294, 128
          %s299 = scalar_lea.hbm %s3, %s298
          %s300 = sshll.u32 %s293, 4
          %s301 = int_to_ptr.vmem [resolvable:$true] %s300
          %306 = dma.hbm_to_vmem [thread:$0]  %s299, 512, %s301, %s290, 128, 128, 8
        $region40: #{tpu_custom_call.1} parent=35 // pred_fallthru
          _
        // Predicated region
        $region41: #{tpu_custom_call.1} parent=35 // pred_check
          %p307 = pneg %p165
        $region42: #{tpu_custom_call.1} parent=35 // pred_check_branch
          %309 = sbr.rel (%p307) target = $region44
        $region43: #{tpu_custom_call.1} parent=35 // pred_region
          %s310 = smul.u32 4, %s35
          %p311 = scmp.lt.s32.totalorder %s310, 7
          %s312 = scalar_select %p311, %s310, 7
          %s313 = scalar_lea.vmem %s8, %s312
          %s314 = smul.u32 4, %s35
        $region44: #{tpu_custom_call.1} parent=35 // pred_fallthru
          _
      $region36: #{tpu_custom_call.1} parent=5 // pred_fallthru
        _
      %p315 = scmp.le.s32.totalorder 1, %s35
      %p316 = scmp.lt.s32.totalorder %s35, 3
      %p317 = pnand %p315, %p316
      %p318 = pneg %p317
      // Predicated region
      $region45: #{tpu_custom_call.1} parent=5 // pred_check
        _
      $region46: #{tpu_custom_call.1} parent=5 // pred_check_branch
        %320 = sbr.rel (%p317) target = $region48
      $region47: #{tpu_custom_call.1} parent=5 // pred_region
        %s321 = ssub.s32 %s35, 1
        %s322 = sand.u32 %s48, 1
        %s323 = scalar_lea.sflag [#allocation7], %s322
        %s324 = sand.u32 %s48, 1
        %s325 = smul.addr %s324, 32
        %s326 = scalar_lea.vmem [#allocation6], %s325
        // Predicated region
        $region49: #{tpu_custom_call.1} parent=47 // pred_check
          %p327 = pneg %p61
        $region50: #{tpu_custom_call.1} parent=47 // pred_check_branch
          %329 = sbr.rel (%p327) target = $region52
        $region51: #{tpu_custom_call.1} parent=47 // pred_region
          %330 = dma.done %s323, 512
        $region52: #{tpu_custom_call.1} parent=47 // pred_fallthru
          _
        // Predicated region
        $region53: #{tpu_custom_call.1} parent=47 // pred_check
          %p331 = pneg %p82
        $region54: #{tpu_custom_call.1} parent=47 // pred_check_branch
          %333 = sbr.rel (%p331) target = $region56
        $region55: #{tpu_custom_call.1} parent=47 // pred_region
          %334 = dma.done [#allocation11], 512
        $region56: #{tpu_custom_call.1} parent=47 // pred_fallthru
          _
        // Predicated region
        $region57: #{tpu_custom_call.1} parent=47 // pred_check
          %p335 = pneg %p103
        $region58: #{tpu_custom_call.1} parent=47 // pred_check_branch
          %337 = sbr.rel (%p335) target = $region60
        $region59: #{tpu_custom_call.1} parent=47 // pred_region
          %338 = dma.done [#allocation11], 16
        $region60: #{tpu_custom_call.1} parent=47 // pred_fallthru
          _
        // Predicated region
        $region61: #{tpu_custom_call.1} parent=47 // pred_check
          %p339 = pneg %p145
        $region62: #{tpu_custom_call.1} parent=47 // pred_check_branch
          %341 = sbr.rel (%p339) target = $region64
        $region63: #{tpu_custom_call.1} parent=47 // pred_region
          %342 = dma.done [#allocation14], 16
        $region64: #{tpu_custom_call.1} parent=47 // pred_fallthru
          _
        // Predicated region
        $region65: #{tpu_custom_call.1} parent=47 // pred_check
          %p343 = pneg %p192
        $region66: #{tpu_custom_call.1} parent=47 // pred_check_branch
          %345 = sbr.rel (%p343) target = $region68
        $region67: #{tpu_custom_call.1} parent=47 // pred_region
          %346 = dma.done [#allocation9], 16
        $region68: #{tpu_custom_call.1} parent=47 // pred_fallthru
          _
        %347 = sfence
        %s348 = sand.u32 %s48, 1
        %s349 = scalar_lea.sflag [#allocation7], %s348
        %s350 = sand.u32 %s48, 1
        %s351 = smul.addr %s350, 32
        %s352 = scalar_lea.vmem [#allocation6], %s351
        %p353 = pneg %p61
        %p354 = pneg %p58
        %p355 = pneg %p82
        %p356 = pneg %p79
        %p357 = pneg %p103
        %p358 = pneg %p100
        %p359 = pneg %p124
        %p360 = pneg %p121
        %p361 = pneg %p145
        %p362 = pneg %p142
        %s363 = smul.u32 4, %s40
        %p364 = scmp.lt.s32.totalorder %s363, 7
        %s365 = scalar_select %p364, %s363, 7
        %s366 = scalar_lea.vmem %s8, %s365
        %p367 = pneg %p171
        %p368 = pneg %p168
        %p369 = pneg %p192
        %p370 = pneg %p189
        %p371 = pneg %p218
        %p372 = pneg %p215
        %s373 = sand.u32 %s205, 1
        %s374 = scalar_lea.sflag [#allocation8], %s373
        %s375 = sand.u32 %s205, 1
        %s376 = smul.addr %s375, 4
        %s377 = scalar_lea.vmem [#allocation16], %s376
        %s378 = smul.u32 4, %s40
        %s379 = smul.u32 4, %s40
        %p380 = scmp.lt.s32.totalorder %s379, 7
        %s381 = scalar_select %p380, %s379, 7
        %s382 = scalar_lea.vmem %s8, %s381
        %s383 = smul.u32 4, %s40
        %s384 = smul.u32 4, %s40
        %s385 = smul.u32 %s40, 4
        %v386 = vld [vmem:[%s326] sm:$0xff]
        %v387 = vld [vmem:[%s326 + $0x8] sm:$0xff]
        %v388 = vld [vmem:[%s326 + $0x10] sm:$0xff]
        %v389 = vld [vmem:[%s326 + $0x18] sm:$0xff]
        %v390 = vld [vmem:[#allocation10] sm:$0xff]
        %v391 = vld [vmem:[#allocation10 + $0x8] sm:$0xff]
        %v392 = vld [vmem:[#allocation10 + $0x10] sm:$0xff]
        %v393 = vld [vmem:[#allocation10 + $0x18] sm:$0xff]
        %v394 = vld [vmem:[#allocation12] sm:$0x1]
        %v396 = vlaneseq
        %v397 = vshrl.u32 %v396, 7
        %v398 = vsub.s32 0, %v397
        %v399 = vrot.slane %v394, %v398
        %vm401 = vcmask 261120
        %v403 = vsel %vm401, %v386, 0
        %v406 = vsel %vm401, %v387, 0
        %v409 = vsel %vm401, %v388, 0
        %v412 = vsel %vm401, %v389, 0
        %414 = vmatprep.subr.mxu0 0.0
        %415 = vmatpush1.msra.mxu0 %v390
        %416 = vmatprep.subr.mxu0 0.0
        %417 = vmatpush1.msra.mxu0 %v391
        %418 = vmatprep.subr.mxu0 0.0
        %419 = vmatpush1.msra.mxu0 %v392
        %420 = vmatprep.subr.mxu0 0.0
        %421 = vmatpush1.msra.mxu0 %v393
        %422 = vmatprep.subr.mxu0 0.0
        %423 = vmatpush1.msra.mxu0 0.0
        %424 = vmatprep.subr.mxu0 0.0
        %425 = vmatpush1.msra.mxu0 0.0
        %426 = vmatprep.subr.mxu0 0.0
        %427 = vmatpush1.msra.mxu0 0.0
        %428 = vmatprep.subr.mxu0 0.0
        %429 = vmatpush1.msra.mxu0 0.0
        %430 = vmatprep.subr.mxu0 0.0
        %431 = vmatpush1.msra.mxu0 0.0
        %432 = vmatprep.subr.mxu0 0.0
        %433 = vmatpush1.msra.mxu0 0.0
        %434 = vmatprep.subr.mxu0 0.0
        %435 = vmatpush1.msra.mxu0 0.0
        %436 = vmatprep.subr.mxu0 0.0
        %437 = vmatpush1.msra.mxu0 0.0
        %438 = vmatprep.subr.mxu0 0.0
        %439 = vmatpush1.msra.mxu0 0.0
        %440 = vmatprep.subr.mxu0 0.0
        %441 = vmatpush1.msra.mxu0 0.0
        %442 = vmatprep.subr.mxu0 0.0
        %443 = vmatpush1.msra.mxu0 0.0
        %444 = vmatprep.subr.mxu0 0.0
        %445 = vmatpush1.msra.mxu0 0.0
        %446 = vmatprep.subr.mxu0 0.0
        %447 = vmatpush1.msra.mxu0 0.0
        %448 = vmatprep.subr.mxu0 0.0
        %449 = vmatpush1.msra.mxu0 0.0
        %450 = vmatprep.subr.mxu0 0.0
        %451 = vmatpush1.msra.mxu0 0.0
        %452 = vmatprep.subr.mxu0 0.0
        %453 = vmatpush1.msra.mxu0 0.0
        %454 = vmatprep.subr.mxu0 0.0
        %455 = vmatpush1.msra.mxu0 0.0
        %456 = vmatprep.subr.mxu0 0.0
        %457 = vmatpush1.msra.mxu0 0.0
        %458 = vmatprep.subr.mxu0 0.0
        %459 = vmatpush1.msra.mxu0 0.0
        %460 = vmatprep.subr.mxu0 0.0
        %461 = vmatpush1.msra.mxu0 0.0
        %462 = vmatprep.subr.mxu0 0.0
        %463 = vmatpush1.msra.mxu0 0.0
        %464 = vmatprep.subr.mxu0 0.0
        %465 = vmatpush1.msra.mxu0 0.0
        %466 = vmatprep.subr.mxu0 0.0
        %467 = vmatpush1.msra.mxu0 0.0
        %468 = vmatprep.subr.mxu0 0.0
        %469 = vmatpush1.msra.mxu0 0.0
        %470 = vmatprep.subr.mxu0 0.0
        %471 = vmatpush1.msra.mxu0 0.0
        %472 = vmatprep.subr.mxu0 0.0
        %473 = vmatpush1.msra.mxu0 0.0
        %474 = vmatprep.subr.mxu0 0.0
        %475 = vmatpush1.msra.mxu0 0.0
        %476 = vmatprep.subr.mxu0 0.0
        %477 = vmatpush1.msra.mxu0 0.0
        %478 = vmatprep.mubr.f32.mxu0 0.0
        %479 = vmatmul.mubr.f32.gmra.mrb[0].mxu0 %v403
        %v480 = vpop.f32.mrb[0].mxu0
        %v481 = vadd.f32 %v399, %v480
        %v482 = vpop.f32.mrb[0].mxu0
        %483 = vmatprep.mubr.f32.mxu0 0.0
        %484 = vmatmul.mubr.f32.gmra.mrb[0].mxu0 %v406
        %v485 = vpop.f32.mrb[0].mxu0
        %v486 = vadd.f32 %v399, %v485
        %v487 = vpop.f32.mrb[0].mxu0
        %488 = vmatprep.mubr.f32.mxu0 0.0
        %489 = vmatmul.mubr.f32.gmra.mrb[0].mxu0 %v409
        %v490 = vpop.f32.mrb[0].mxu0
        %v491 = vadd.f32 %v399, %v490
        %v492 = vpop.f32.mrb[0].mxu0
        %493 = vmatprep.mubr.f32.mxu0 0.0
        %494 = vmatmul.mubr.f32.gmra.mrb[0].mxu0 %v412
        %v495 = vpop.f32.mrb[0].mxu0
        %v496 = vadd.f32 %v399, %v495
        %v497 = vpop.f32.mrb[0].mxu0
        %498 = vdwg.mxu0
        %v499 = vld [vmem:[%s6] sm:$0xff]
        %v500 = vld [vmem:[%s6 + $0x8] sm:$0xff]
        %v501 = vld [vmem:[%s6 + $0x10] sm:$0xff]
        %v502 = vld [vmem:[%s6 + $0x18] sm:$0xff]
        %v503 = vrot.slane %v387, 7
        %vm504 = vcmask 1041409
        %v505 = vsel %vm504, %v503, %v386
        %v506 = vrot.slane %v388, 6
        %vm507 = vcmask 1042434
        %v508 = vsel %vm507, %v506, %v505
        %v509 = vrot.slane %v389, 5
        %vm510 = vcmask 1043459
        %v511 = vsel %vm510, %v509, %v508
        %v512 = vsel %vm401, %v511, 0
        %514 = vmatprep.subr.mxu0 0.0
        %515 = vmatpush1.msra.mxu0 %v499
        %516 = vmatprep.subr.mxu0 0.0
        %517 = vmatpush1.msra.mxu0 %v500
        %518 = vmatprep.subr.mxu0 0.0
        %519 = vmatpush1.msra.mxu0 %v501
        %520 = vmatprep.subr.mxu0 0.0
        %521 = vmatpush1.msra.mxu0 %v502
        %522 = vmatprep.subr.mxu0 0.0
        %523 = vmatpush1.msra.mxu0 0.0
        %524 = vmatprep.subr.mxu0 0.0
        %525 = vmatpush1.msra.mxu0 0.0
        %526 = vmatprep.subr.mxu0 0.0
        %527 = vmatpush1.msra.mxu0 0.0
        %528 = vmatprep.subr.mxu0 0.0
        %529 = vmatpush1.msra.mxu0 0.0
        %530 = vmatprep.subr.mxu0 0.0
        %531 = vmatpush1.msra.mxu0 0.0
        %532 = vmatprep.subr.mxu0 0.0
        %533 = vmatpush1.msra.mxu0 0.0
        %534 = vmatprep.subr.mxu0 0.0
        %535 = vmatpush1.msra.mxu0 0.0
        %536 = vmatprep.subr.mxu0 0.0
        %537 = vmatpush1.msra.mxu0 0.0
        %538 = vmatprep.subr.mxu0 0.0
        %539 = vmatpush1.msra.mxu0 0.0
        %540 = vmatprep.subr.mxu0 0.0
        %541 = vmatpush1.msra.mxu0 0.0
        %542 = vmatprep.subr.mxu0 0.0
        %543 = vmatpush1.msra.mxu0 0.0
        %544 = vmatprep.subr.mxu0 0.0
        %545 = vmatpush1.msra.mxu0 0.0
        %546 = vmatprep.subr.mxu0 0.0
        %547 = vmatpush1.msra.mxu0 0.0
        %548 = vmatprep.subr.mxu0 0.0
        %549 = vmatpush1.msra.mxu0 0.0
        %550 = vmatprep.subr.mxu0 0.0
        %551 = vmatpush1.msra.mxu0 0.0
        %552 = vmatprep.subr.mxu0 0.0
        %553 = vmatpush1.msra.mxu0 0.0
        %554 = vmatprep.subr.mxu0 0.0
        %555 = vmatpush1.msra.mxu0 0.0
        %556 = vmatprep.subr.mxu0 0.0
        %557 = vmatpush1.msra.mxu0 0.0
        %558 = vmatprep.subr.mxu0 0.0
        %559 = vmatpush1.msra.mxu0 0.0
        %560 = vmatprep.subr.mxu0 0.0
        %561 = vmatpush1.msra.mxu0 0.0
        %562 = vmatprep.subr.mxu0 0.0
        %563 = vmatpush1.msra.mxu0 0.0
        %564 = vmatprep.subr.mxu0 0.0
        %565 = vmatpush1.msra.mxu0 0.0
        %566 = vmatprep.subr.mxu0 0.0
        %567 = vmatpush1.msra.mxu0 0.0
        %568 = vmatprep.subr.mxu0 0.0
        %569 = vmatpush1.msra.mxu0 0.0
        %570 = vmatprep.subr.mxu0 0.0
        %571 = vmatpush1.msra.mxu0 0.0
        %572 = vmatprep.subr.mxu0 0.0
        %573 = vmatpush1.msra.mxu0 0.0
        %574 = vmatprep.subr.mxu0 0.0
        %575 = vmatpush1.msra.mxu0 0.0
        %576 = vmatprep.subr.mxu0 0.0
        %577 = vmatpush1.msra.mxu0 0.0
        %578 = vmatprep.mubr.f32.mxu0 0.0
        %579 = vmatmul.mubr.f32.gmra.mrb[0].mxu0 %v512
        %v580 = vpop.f32.mrb[0].mxu0
        %v581 = vadd.f32 0.0, %v580
        %v582 = vpop.f32.mrb[0].mxu0
        %583 = vdwg.mxu0
        %v584 = vld [vmem:[%s382] sm:$0x1]
        %v585 = vld [vmem:[%s382 + $0x1] sm:$0x1]
        %v586 = vld [vmem:[%s382 + $0x2] sm:$0x1]
        %v587 = vld [vmem:[%s382 + $0x3] sm:$0x1]
        %v588 = vmul.f32 %v386, %v386
        %v589 = vmul.f32 %v387, %v387
        %v590 = vmul.f32 %v388, %v388
        %v591 = vmul.f32 %v389, %v389
        %v596 = vrot.slane %v589, 7
        %v597 = vsel %vm504, %v596, %v588
        %v598 = vrot.slane %v590, 6
        %v599 = vsel %vm507, %v598, %v597
        %v600 = vrot.slane %v591, 5
        %v601 = vsel %vm510, %v600, %v599
        %vm603 = vcmask 257024
        %v604 = vsel %vm603, %v601, 0.0
        %605 = vadd.xlane.f32.xlu0 %v604
        %v606 = vpop.xlane.xlu0 %605
        %v607 = vmax.f32 %v606, 1e-16
        %v608 = vrsqrt.pop %v607
        %v609 = vmul.f32 %v584, %v584
        %v610 = vmul.f32 %v585, %v585
        %v611 = vmul.f32 %v586, %v586
        %v612 = vmul.f32 %v587, %v587
        %v617 = vcombine.low %v609, %v610
        %v618 = vcombine.low %v611, %v612
        %v620 = vunpack.c.l.s4 1966171168
        %v621 = vunpack.c.0.s8 %v620
        %v622 = vlaneseq
        %v623 = vshrl.u32 %v622, 7
        %v624 = vsub.s32 %v621, %v623
        %v625 = vrot.slane %v617, %v624
        %v627 = vunpack.c.l.s4 1966171168
        %v628 = vunpack.c.0.s8 %v627
        %v629 = vlaneseq
        %v630 = vshrl.u32 %v629, 7
        %v631 = vsub.s32 %v628, %v630
        %v632 = vrot.slane %v618, %v631
        %v633 = vcombine.low %v625, %v632
        %v635 = vunpack.c.l.s4 1966171168
        %v636 = vunpack.c.0.s8 %v635
        %v637 = vlaneseq
        %v638 = vshrl.u32 %v637, 7
        %v639 = vsub.s32 %v636, %v638
        %v640 = vrot.slane %v633, %v639
        %v642 = vsel %vm603, %v640, 0.0
        %643 = vadd.xlane.f32.xlu0 %v642
        %v644 = vpop.xlane.xlu0 %643
        %v645 = vmax.f32 %v644, 1e-16
        %v646 = vrsqrt.pop %v645
        %v647 = vmul.f32 %v386, %v584
        %v648 = vmul.f32 %v387, %v585
        %v649 = vmul.f32 %v388, %v586
        %v650 = vmul.f32 %v389, %v587
        %v655 = vrot.slane %v648, 7
        %v656 = vsel %vm504, %v655, %v647
        %v657 = vrot.slane %v649, 6
        %v658 = vsel %vm507, %v657, %v656
        %v659 = vrot.slane %v650, 5
        %v660 = vsel %vm510, %v659, %v658
        %v662 = vsel %vm603, %v660, 0.0
        %663 = vadd.xlane.f32.xlu0 %v662
        %v664 = vpop.xlane.xlu0 %663
        %v665 = vmul.f32 %v664, %v608
        %v666 = vmul.f32 %v665, %v646
        %v667 = vmul.f32 %v581, %v608
        %v668 = vld [vmem:[#allocation13] sm:$0x1]
        %v670 = vlaneseq
        %v671 = vshrl.u32 %v670, 7
        %v672 = vsub.s32 0, %v671
        %v673 = vrot.slane %v668, %v672
        %v675 = vmul.f32 %v667, %v673
        %v676 = vlaneseq
        %v677 = vand.u32 %v676, 127
        %v678 = vlaneseq
        %v679 = vshrl.u32 %v678, 7
        %vm680 = vcmp.lt.s32.totalorder %v677, 3
        %vm681 = vcmp.eq.s32.totalorder %v677, 3
        %vm682 = vcmp.eq.s32.totalorder %v677, 4
        %vm683 = vmor %vm681, %vm682
        %vm684 = vcmp.gt.s32.totalorder %v679, 0
        %vm685 = vcmp.lt.s32.totalorder %v679, 8
        %vm686 = vmand %vm684, %vm685
        %vm687 = vcmp.ge.s32.totalorder %v677, 5
        %v688 = vsel %vm687, 1, 0
        %vm689 = vcmp.eq.s32.totalorder %v688, 1
        %v690 = vsel %vm689, -1.0, %v675
        %s691 = sld [smem:[#allocation3 + %s385]]
        %v692 = vsel %vm680, %v481, -1e+30
        %vm693 = vcmask 1040384
        %v694 = vsel %vm693, %v692, -inf
        %695 = vmax.xlane.f32.xlu0 %v694
        %v696 = vpop.xlane.xlu0 %695
        %v697 = vrot.slane %v696, 4
        %v698 = vmax.f32 %v696, %v697
        %v699 = vrot.slane %v698, 2
        %v700 = vmax.f32 %v698, %v699
        %v701 = vrot.slane %v700, 1
        %v702 = vmax.f32 %v700, %v701
        %s703 = vtos %v702
        %v704 = vstv %s703
        %v705 = vsub.f32 %v692, %v704
        %v706 = vmul.f32 %v705, 1.442695
        %v707 = vpow.pop %v706
        %v708 = vsel %vm680, %v707, 0.0
        %v709 = vsel %vm693, %v708, 0.0
        %710 = vadd.xlane.f32.xlu0 %v709
        %v711 = vpop.xlane.xlu0 %710
        %v712 = vrot.slane %v711, 4
        %v713 = vadd.f32 %v711, %v712
        %v714 = vrot.slane %v713, 2
        %v715 = vadd.f32 %v713, %v714
        %v716 = vrot.slane %v715, 1
        %v717 = vadd.f32 %v715, %v716
        %s718 = vtos %v717
        %v719 = vstv %s718
        %v720 = vlog2.pop %v719
        %v721 = vmul.f32 %v720, 0.6931472
        %s722 = vtos %v721
        %s723 = sadd.f32 %s703, %s722
        %v724 = vstv %s691
        %vm725 = vcmp.eq.s32.totalorder %v677, %v724
        %v726 = vsel %vm725, %v481, 0.0
        %v727 = vsel %vm693, %v726, 0.0
        %728 = vadd.xlane.f32.xlu0 %v727
        %v729 = vpop.xlane.xlu0 %728
        %v730 = vrot.slane %v729, 4
        %v731 = vadd.f32 %v729, %v730
        %v732 = vrot.slane %v731, 2
        %v733 = vadd.f32 %v731, %v732
        %v734 = vrot.slane %v733, 1
        %v735 = vadd.f32 %v733, %v734
        %s736 = vtos %v735
        %s737 = sld [smem:[#allocation15 + %s691]]
        %s738 = ssub.f32 0.0, %s737
        %s739 = ssub.f32 %s736, %s723
        %s740 = smul.f32 %s738, %s739
        %vm741 = vcmp.eq.f32.partialorder %v692, %v704
        %v742 = vsel %vm741, %v677, 128
        %v743 = vsel %vm693, %v742, 2147483647
        %v744 = vand.u32 %v743, 65535
        %v745 = vshra.s32 %v743, 16
        %v746 = vcvt.s32.f32 %v744
        %v747 = vcvt.s32.f32 %v745
        %748 = vmin.xlane.f32.xlu0 %v747
        %v749 = vpop.xlane.xlu0 %748
        %vm750 = vcmp.eq.f32.partialorder %v747, %v749
        %v751 = vsel %vm750, %v746, inf
        %752 = vmin.xlane.f32.xlu0 %v751
        %v753 = vpop.xlane.xlu0 %752
        %v754 = vcvt.f32.s32 %v753
        %v755 = vcvt.f32.s32 %v749
        %v756 = vshll.u32 %v755, 16
        %v757 = vadd.s32 %v756, %v754
        %v758 = vrot.slane %v757, 4
        %vm759 = vcmp.lt.s32.totalorder %v757, %v758
        %v760 = vsel %vm759, %v757, %v758
        %v761 = vrot.slane %v760, 2
        %vm762 = vcmp.lt.s32.totalorder %v760, %v761
        %v763 = vsel %vm762, %v760, %v761
        %v764 = vrot.slane %v763, 1
        %vm765 = vcmp.lt.s32.totalorder %v763, %v764
        %v766 = vsel %vm765, %v763, %v764
        %s767 = vtos %v766
        %p768 = scmp.eq.s32.totalorder %s767, %s691
        %s769 = scalar_select %p768, 1, 0
        %s770 = scvt.s32.f32 %s769
        %v771 = vsel %vm686, 1, 0
        %vm772 = vcmp.eq.s32.totalorder %v771, 1
        %v773 = vsel %vm772, %v481, -1e+30
        %v774 = vrot.slane %v773, 4
        %v775 = vmax.f32 %v773, %v774
        %v776 = vrot.slane %v775, 2
        %v777 = vmax.f32 %v775, %v776
        %v778 = vrot.slane %v777, 1
        %v779 = vmax.f32 %v777, %v778
        %v780 = vsub.f32 %v773, %v779
        %v781 = vmul.f32 %v780, 1.442695
        %v782 = vpow.pop %v781
        %v783 = vsel %vm772, %v782, 0.0
        %v784 = vrot.slane %v783, 4
        %v785 = vadd.f32 %v783, %v784
        %v786 = vrot.slane %v785, 2
        %v787 = vadd.f32 %v785, %v786
        %v788 = vrot.slane %v787, 1
        %v789 = vadd.f32 %v787, %v788
        %v790 = vlog2.pop %v789
        %v791 = vmul.f32 %v790, 0.6931472
        %v792 = vadd.f32 %v779, %v791
        %s793 = smul.u32 %s385, 128
        %s794 = sld [smem:[#allocation4 + %s793]]
        %s795 = sadd.s32 %s794, 1
        %s796 = sadd.s32 %s793, 1
        %s797 = sld [smem:[#allocation4 + %s796]]
        %s798 = sadd.s32 %s797, 1
        %v799 = vstv %s795
        %vm800 = vcmp.eq.s32.totalorder %v679, %v799
        %v801 = vsel %vm800, 1, 0
        %vm802 = vcmp.eq.s32.totalorder %v801, 1
        %v803 = vsel %vm681, 1, 0
        %vm804 = vcmp.eq.s32.totalorder %v803, 1
        %vm805 = vmand %vm802, %vm804
        %v806 = vstv %s798
        %vm807 = vcmp.eq.s32.totalorder %v679, %v806
        %v808 = vsel %vm807, 1, 0
        %vm809 = vcmp.eq.s32.totalorder %v808, 1
        %v810 = vsel %vm682, 1, 0
        %vm811 = vcmp.eq.s32.totalorder %v810, 1
        %vm812 = vmand %vm809, %vm811
        %vm813 = vmor %vm805, %vm812
        %v814 = vsel %vm813, %v481, 0.0
        %815 = vadd.xlane.f32.xlu0 %v814
        %v816 = vpop.xlane.xlu0 %815
        %v817 = vrot.slane %v816, 4
        %v818 = vadd.f32 %v816, %v817
        %v819 = vrot.slane %v818, 2
        %v820 = vadd.f32 %v818, %v819
        %v821 = vrot.slane %v820, 1
        %v822 = vadd.f32 %v820, %v821
        %s823 = vtos %v822
        %v824 = vsel %vm683, %v792, 0.0
        %v825 = vsel %vm693, %v824, 0.0
        %826 = vadd.xlane.f32.xlu0 %v825
        %v827 = vpop.xlane.xlu0 %826
        %v828 = vrot.slane %v827, 4
        %v829 = vadd.f32 %v827, %v828
        %v830 = vrot.slane %v829, 2
        %v831 = vadd.f32 %v829, %v830
        %v832 = vrot.slane %v831, 1
        %v833 = vadd.f32 %v831, %v832
        %s834 = vtos %v833
        %s835 = ssub.f32 %s834, %s823
        %s836 = sld [smem:[#allocation5 + %s385]]
        %v837 = vstv %s836
        %vm838 = vcmp.eq.s32.totalorder %v677, %v837
        %v839 = vsel %vm838, -1.0, %v690
        %v840 = vsel %vm693, %v839, -inf
        %841 = vmax.xlane.f32.xlu0 %v840
        %v842 = vpop.xlane.xlu0 %841
        %v843 = vrot.slane %v842, 4
        %v844 = vmax.f32 %v842, %v843
        %v845 = vrot.slane %v844, 2
        %v846 = vmax.f32 %v844, %v845
        %v847 = vrot.slane %v846, 1
        %v848 = vmax.f32 %v846, %v847
        %s849 = vtos %v848
        %v850 = vadd.f32 %v666, 0.0
        %s851 = vtos %v850
        %s852 = ssub.f32 0.4, %s851
        %s853 = sadd.f32 %s852, %s849
        %s854 = smax.f32 %s853, 0.0
        %s855 = sadd.f32 %s740, %s835
        %s856 = sadd.f32 %s855, %s854
        %vm857 = vcmp.eq.s32.totalorder %v677, 0
        %v858 = vstv %s856
        %v859 = vsel %vm857, %v858, 0.0
        %vm860 = vcmp.eq.s32.totalorder %v677, 1
        %v861 = vstv %s770
        %v862 = vsel %vm860, %v861, 0.0
        %v863 = vadd.f32 %v859, %v862
        %864 = vst [vmem:[%s377] sm:$0x1] %v863
        %s865 = sadd.s32 %s385, 1
        %s866 = sld [smem:[#allocation3 + %s865]]
        %v867 = vsel %vm680, %v486, -1e+30
        %v868 = vsel %vm693, %v867, -inf
        %869 = vmax.xlane.f32.xlu0 %v868
        %v870 = vpop.xlane.xlu0 %869
        %v871 = vrot.slane %v870, 4
        %v872 = vmax.f32 %v870, %v871
        %v873 = vrot.slane %v872, 2
        %v874 = vmax.f32 %v872, %v873
        %v875 = vrot.slane %v874, 1
        %v876 = vmax.f32 %v874, %v875
        %s877 = vtos %v876
        %v878 = vstv %s877
        %v879 = vsub.f32 %v867, %v878
        %v880 = vmul.f32 %v879, 1.442695
        %v881 = vpow.pop %v880
        %v882 = vsel %vm680, %v881, 0.0
        %v883 = vsel %vm693, %v882, 0.0
        %884 = vadd.xlane.f32.xlu0 %v883
        %v885 = vpop.xlane.xlu0 %884
        %v886 = vrot.slane %v885, 4
        %v887 = vadd.f32 %v885, %v886
        %v888 = vrot.slane %v887, 2
        %v889 = vadd.f32 %v887, %v888
        %v890 = vrot.slane %v889, 1
        %v891 = vadd.f32 %v889, %v890
        %s892 = vtos %v891
        %v893 = vstv %s892
        %v894 = vlog2.pop %v893
        %v895 = vmul.f32 %v894, 0.6931472
        %s896 = vtos %v895
        %s897 = sadd.f32 %s877, %s896
        %v898 = vstv %s866
        %vm899 = vcmp.eq.s32.totalorder %v677, %v898
        %v900 = vsel %vm899, %v486, 0.0
        %v901 = vsel %vm693, %v900, 0.0
        %902 = vadd.xlane.f32.xlu0 %v901
        %v903 = vpop.xlane.xlu0 %902
        %v904 = vrot.slane %v903, 4
        %v905 = vadd.f32 %v903, %v904
        %v906 = vrot.slane %v905, 2
        %v907 = vadd.f32 %v905, %v906
        %v908 = vrot.slane %v907, 1
        %v909 = vadd.f32 %v907, %v908
        %s910 = vtos %v909
        %s911 = sld [smem:[#allocation15 + %s866]]
        %s912 = ssub.f32 0.0, %s911
        %s913 = ssub.f32 %s910, %s897
        %s914 = smul.f32 %s912, %s913
        %vm915 = vcmp.eq.f32.partialorder %v867, %v878
        %v916 = vsel %vm915, %v677, 128
        %v917 = vsel %vm693, %v916, 2147483647
        %v918 = vand.u32 %v917, 65535
        %v919 = vshra.s32 %v917, 16
        %v920 = vcvt.s32.f32 %v918
        %v921 = vcvt.s32.f32 %v919
        %922 = vmin.xlane.f32.xlu0 %v921
        %v923 = vpop.xlane.xlu0 %922
        %vm924 = vcmp.eq.f32.partialorder %v921, %v923
        %v925 = vsel %vm924, %v920, inf
        %926 = vmin.xlane.f32.xlu0 %v925
        %v927 = vpop.xlane.xlu0 %926
        %v928 = vcvt.f32.s32 %v927
        %v929 = vcvt.f32.s32 %v923
        %v930 = vshll.u32 %v929, 16
        %v931 = vadd.s32 %v930, %v928
        %v932 = vrot.slane %v931, 4
        %vm933 = vcmp.lt.s32.totalorder %v931, %v932
        %v934 = vsel %vm933, %v931, %v932
        %v935 = vrot.slane %v934, 2
        %vm936 = vcmp.lt.s32.totalorder %v934, %v935
        %v937 = vsel %vm936, %v934, %v935
        %v938 = vrot.slane %v937, 1
        %vm939 = vcmp.lt.s32.totalorder %v937, %v938
        %v940 = vsel %vm939, %v937, %v938
        %s941 = vtos %v940
        %p942 = scmp.eq.s32.totalorder %s941, %s866
        %s943 = scalar_select %p942, 1, 0
        %s944 = scvt.s32.f32 %s943
        %v945 = vsel %vm772, %v486, -1e+30
        %v946 = vrot.slane %v945, 4
        %v947 = vmax.f32 %v945, %v946
        %v948 = vrot.slane %v947, 2
        %v949 = vmax.f32 %v947, %v948
        %v950 = vrot.slane %v949, 1
        %v951 = vmax.f32 %v949, %v950
        %v952 = vsub.f32 %v945, %v951
        %v953 = vmul.f32 %v952, 1.442695
        %v954 = vpow.pop %v953
        %v955 = vsel %vm772, %v954, 0.0
        %v956 = vrot.slane %v955, 4
        %v957 = vadd.f32 %v955, %v956
        %v958 = vrot.slane %v957, 2
        %v959 = vadd.f32 %v957, %v958
        %v960 = vrot.slane %v959, 1
        %v961 = vadd.f32 %v959, %v960
        %v962 = vlog2.pop %v961
        %v963 = vmul.f32 %v962, 0.6931472
        %v964 = vadd.f32 %v951, %v963
        %s965 = smul.u32 %s865, 128
        %s966 = sld [smem:[#allocation4 + %s965]]
        %s967 = sadd.s32 %s966, 1
        %s968 = sadd.s32 %s965, 1
        %s969 = sld [smem:[#allocation4 + %s968]]
        %s970 = sadd.s32 %s969, 1
        %v971 = vstv %s967
        %vm972 = vcmp.eq.s32.totalorder %v679, %v971
        %v973 = vsel %vm972, 1, 0
        %vm974 = vcmp.eq.s32.totalorder %v973, 1
        %vm975 = vmand %vm974, %vm804
        %v976 = vstv %s970
        %vm977 = vcmp.eq.s32.totalorder %v679, %v976
        %v978 = vsel %vm977, 1, 0
        %vm979 = vcmp.eq.s32.totalorder %v978, 1
        %vm980 = vmand %vm979, %vm811
        %vm981 = vmor %vm975, %vm980
        %v982 = vsel %vm981, %v486, 0.0
        %983 = vadd.xlane.f32.xlu0 %v982
        %v984 = vpop.xlane.xlu0 %983
        %v985 = vrot.slane %v984, 4
        %v986 = vadd.f32 %v984, %v985
        %v987 = vrot.slane %v986, 2
        %v988 = vadd.f32 %v986, %v987
        %v989 = vrot.slane %v988, 1
        %v990 = vadd.f32 %v988, %v989
        %s991 = vtos %v990
        %v992 = vsel %vm683, %v964, 0.0
        %v993 = vsel %vm693, %v992, 0.0
        %994 = vadd.xlane.f32.xlu0 %v993
        %v995 = vpop.xlane.xlu0 %994
        %v996 = vrot.slane %v995, 4
        %v997 = vadd.f32 %v995, %v996
        %v998 = vrot.slane %v997, 2
        %v999 = vadd.f32 %v997, %v998
        %v1000 = vrot.slane %v999, 1
        %v1001 = vadd.f32 %v999, %v1000
        %s1002 = vtos %v1001
        %s1003 = ssub.f32 %s1002, %s991
        %s1004 = sld [smem:[#allocation5 + %s865]]
        %v1005 = vstv %s1004
        %vm1006 = vcmp.eq.s32.totalorder %v677, %v1005
        %v1007 = vsel %vm1006, -1.0, %v690
        %v1008 = vsel %vm504, %v1007, -inf
        %1009 = vmax.xlane.f32.xlu0 %v1008
        %v1010 = vpop.xlane.xlu0 %1009
        %v1011 = vrot.slane %v1010, 4
        %v1012 = vmax.f32 %v1010, %v1011
        %v1013 = vrot.slane %v1012, 2
        %v1014 = vmax.f32 %v1012, %v1013
        %v1015 = vrot.slane %v1014, 1
        %v1016 = vmax.f32 %v1014, %v1015
        %s1017 = vtos %v1016
        %v1019 = vrot.slane %v850, 1
        %s1021 = vtos %v1019
        %s1022 = ssub.f32 0.4, %s1021
        %s1023 = sadd.f32 %s1022, %s1017
        %s1024 = smax.f32 %s1023, 0.0
        %s1025 = sadd.f32 %s914, %s1003
        %s1026 = sadd.f32 %s1025, %s1024
        %v1027 = vstv %s1026
        %v1028 = vsel %vm857, %v1027, 0.0
        %v1029 = vstv %s944
        %v1030 = vsel %vm860, %v1029, 0.0
        %v1031 = vadd.f32 %v1028, %v1030
        %s1032 = scalar_lea.vmem %s377, 1 [#allocation16]
        %1033 = vst [vmem:[%s1032] sm:$0x1] %v1031
        %s1034 = sadd.s32 %s385, 2
        %s1035 = sld [smem:[#allocation3 + %s1034]]
        %v1036 = vsel %vm680, %v491, -1e+30
        %v1037 = vsel %vm693, %v1036, -inf
        %1038 = vmax.xlane.f32.xlu0 %v1037
        %v1039 = vpop.xlane.xlu0 %1038
        %v1040 = vrot.slane %v1039, 4
        %v1041 = vmax.f32 %v1039, %v1040
        %v1042 = vrot.slane %v1041, 2
        %v1043 = vmax.f32 %v1041, %v1042
        %v1044 = vrot.slane %v1043, 1
        %v1045 = vmax.f32 %v1043, %v1044
        %s1046 = vtos %v1045
        %v1047 = vstv %s1046
        %v1048 = vsub.f32 %v1036, %v1047
        %v1049 = vmul.f32 %v1048, 1.442695
        %v1050 = vpow.pop %v1049
        %v1051 = vsel %vm680, %v1050, 0.0
        %v1052 = vsel %vm693, %v1051, 0.0
        %1053 = vadd.xlane.f32.xlu0 %v1052
        %v1054 = vpop.xlane.xlu0 %1053
        %v1055 = vrot.slane %v1054, 4
        %v1056 = vadd.f32 %v1054, %v1055
        %v1057 = vrot.slane %v1056, 2
        %v1058 = vadd.f32 %v1056, %v1057
        %v1059 = vrot.slane %v1058, 1
        %v1060 = vadd.f32 %v1058, %v1059
        %s1061 = vtos %v1060
        %v1062 = vstv %s1061
        %v1063 = vlog2.pop %v1062
        %v1064 = vmul.f32 %v1063, 0.6931472
        %s1065 = vtos %v1064
        %s1066 = sadd.f32 %s1046, %s1065
        %v1067 = vstv %s1035
        %vm1068 = vcmp.eq.s32.totalorder %v677, %v1067
        %v1069 = vsel %vm1068, %v491, 0.0
        %v1070 = vsel %vm693, %v1069, 0.0
        %1071 = vadd.xlane.f32.xlu0 %v1070
        %v1072 = vpop.xlane.xlu0 %1071
        %v1073 = vrot.slane %v1072, 4
        %v1074 = vadd.f32 %v1072, %v1073
        %v1075 = vrot.slane %v1074, 2
        %v1076 = vadd.f32 %v1074, %v1075
        %v1077 = vrot.slane %v1076, 1
        %v1078 = vadd.f32 %v1076, %v1077
        %s1079 = vtos %v1078
        %s1080 = sld [smem:[#allocation15 + %s1035]]
        %s1081 = ssub.f32 0.0, %s1080
        %s1082 = ssub.f32 %s1079, %s1066
        %s1083 = smul.f32 %s1081, %s1082
        %vm1084 = vcmp.eq.f32.partialorder %v1036, %v1047
        %v1085 = vsel %vm1084, %v677, 128
        %v1086 = vsel %vm693, %v1085, 2147483647
        %v1087 = vand.u32 %v1086, 65535
        %v1088 = vshra.s32 %v1086, 16
        %v1089 = vcvt.s32.f32 %v1087
        %v1090 = vcvt.s32.f32 %v1088
        %1091 = vmin.xlane.f32.xlu0 %v1090
        %v1092 = vpop.xlane.xlu0 %1091
        %vm1093 = vcmp.eq.f32.partialorder %v1090, %v1092
        %v1094 = vsel %vm1093, %v1089, inf
        %1095 = vmin.xlane.f32.xlu0 %v1094
        %v1096 = vpop.xlane.xlu0 %1095
        %v1097 = vcvt.f32.s32 %v1096
        %v1098 = vcvt.f32.s32 %v1092
        %v1099 = vshll.u32 %v1098, 16
        %v1100 = vadd.s32 %v1099, %v1097
        %v1101 = vrot.slane %v1100, 4
        %vm1102 = vcmp.lt.s32.totalorder %v1100, %v1101
        %v1103 = vsel %vm1102, %v1100, %v1101
        %v1104 = vrot.slane %v1103, 2
        %vm1105 = vcmp.lt.s32.totalorder %v1103, %v1104
        %v1106 = vsel %vm1105, %v1103, %v1104
        %v1107 = vrot.slane %v1106, 1
        %vm1108 = vcmp.lt.s32.totalorder %v1106, %v1107
        %v1109 = vsel %vm1108, %v1106, %v1107
        %s1110 = vtos %v1109
        %p1111 = scmp.eq.s32.totalorder %s1110, %s1035
        %s1112 = scalar_select %p1111, 1, 0
        %s1113 = scvt.s32.f32 %s1112
        %v1114 = vsel %vm772, %v491, -1e+30
        %v1115 = vrot.slane %v1114, 4
        %v1116 = vmax.f32 %v1114, %v1115
        %v1117 = vrot.slane %v1116, 2
        %v1118 = vmax.f32 %v1116, %v1117
        %v1119 = vrot.slane %v1118, 1
        %v1120 = vmax.f32 %v1118, %v1119
        %v1121 = vsub.f32 %v1114, %v1120
        %v1122 = vmul.f32 %v1121, 1.442695
        %v1123 = vpow.pop %v1122
        %v1124 = vsel %vm772, %v1123, 0.0
        %v1125 = vrot.slane %v1124, 4
        %v1126 = vadd.f32 %v1124, %v1125
        %v1127 = vrot.slane %v1126, 2
        %v1128 = vadd.f32 %v1126, %v1127
        %v1129 = vrot.slane %v1128, 1
        %v1130 = vadd.f32 %v1128, %v1129
        %v1131 = vlog2.pop %v1130
        %v1132 = vmul.f32 %v1131, 0.6931472
        %v1133 = vadd.f32 %v1120, %v1132
        %s1134 = smul.u32 %s1034, 128
        %s1135 = sld [smem:[#allocation4 + %s1134]]
        %s1136 = sadd.s32 %s1135, 1
        %s1137 = sadd.s32 %s1134, 1
        %s1138 = sld [smem:[#allocation4 + %s1137]]
        %s1139 = sadd.s32 %s1138, 1
        %v1140 = vstv %s1136
        %vm1141 = vcmp.eq.s32.totalorder %v679, %v1140
        %v1142 = vsel %vm1141, 1, 0
        %vm1143 = vcmp.eq.s32.totalorder %v1142, 1
        %vm1144 = vmand %vm1143, %vm804
        %v1145 = vstv %s1139
        %vm1146 = vcmp.eq.s32.totalorder %v679, %v1145
        %v1147 = vsel %vm1146, 1, 0
        %vm1148 = vcmp.eq.s32.totalorder %v1147, 1
        %vm1149 = vmand %vm1148, %vm811
        %vm1150 = vmor %vm1144, %vm1149
        %v1151 = vsel %vm1150, %v491, 0.0
        %1152 = vadd.xlane.f32.xlu0 %v1151
        %v1153 = vpop.xlane.xlu0 %1152
        %v1154 = vrot.slane %v1153, 4
        %v1155 = vadd.f32 %v1153, %v1154
        %v1156 = vrot.slane %v1155, 2
        %v1157 = vadd.f32 %v1155, %v1156
        %v1158 = vrot.slane %v1157, 1
        %v1159 = vadd.f32 %v1157, %v1158
        %s1160 = vtos %v1159
        %v1161 = vsel %vm683, %v1133, 0.0
        %v1162 = vsel %vm693, %v1161, 0.0
        %1163 = vadd.xlane.f32.xlu0 %v1162
        %v1164 = vpop.xlane.xlu0 %1163
        %v1165 = vrot.slane %v1164, 4
        %v1166 = vadd.f32 %v1164, %v1165
        %v1167 = vrot.slane %v1166, 2
        %v1168 = vadd.f32 %v1166, %v1167
        %v1169 = vrot.slane %v1168, 1
        %v1170 = vadd.f32 %v1168, %v1169
        %s1171 = vtos %v1170
        %s1172 = ssub.f32 %s1171, %s1160
        %s1173 = sld [smem:[#allocation5 + %s1034]]
        %v1174 = vstv %s1173
        %vm1175 = vcmp.eq.s32.totalorder %v677, %v1174
        %v1176 = vsel %vm1175, -1.0, %v690
        %v1177 = vsel %vm507, %v1176, -inf
        %1178 = vmax.xlane.f32.xlu0 %v1177
        %v1179 = vpop.xlane.xlu0 %1178
        %v1180 = vrot.slane %v1179, 4
        %v1181 = vmax.f32 %v1179, %v1180
        %v1182 = vrot.slane %v1181, 2
        %v1183 = vmax.f32 %v1181, %v1182
        %v1184 = vrot.slane %v1183, 1
        %v1185 = vmax.f32 %v1183, %v1184
        %s1186 = vtos %v1185
        %v1187 = vrot.slane %v850, 2
        %s1189 = vtos %v1187
        %s1190 = ssub.f32 0.4, %s1189
        %s1191 = sadd.f32 %s1190, %s1186
        %s1192 = smax.f32 %s1191, 0.0
        %s1193 = sadd.f32 %s1083, %s1172
        %s1194 = sadd.f32 %s1193, %s1192
        %v1195 = vstv %s1194
        %v1196 = vsel %vm857, %v1195, 0.0
        %v1197 = vstv %s1113
        %v1198 = vsel %vm860, %v1197, 0.0
        %v1199 = vadd.f32 %v1196, %v1198
        %s1200 = scalar_lea.vmem %s377, 2 [#allocation16]
        %1201 = vst [vmem:[%s1200] sm:$0x1] %v1199
        %s1202 = sadd.s32 %s385, 3
        %s1203 = sld [smem:[#allocation3 + %s1202]]
        %v1204 = vsel %vm680, %v496, -1e+30
        %v1205 = vsel %vm693, %v1204, -inf
        %1206 = vmax.xlane.f32.xlu0 %v1205
        %v1207 = vpop.xlane.xlu0 %1206
        %v1208 = vrot.slane %v1207, 4
        %v1209 = vmax.f32 %v1207, %v1208
        %v1210 = vrot.slane %v1209, 2
        %v1211 = vmax.f32 %v1209, %v1210
        %v1212 = vrot.slane %v1211, 1
        %v1213 = vmax.f32 %v1211, %v1212
        %s1214 = vtos %v1213
        %v1215 = vstv %s1214
        %v1216 = vsub.f32 %v1204, %v1215
        %v1217 = vmul.f32 %v1216, 1.442695
        %v1218 = vpow.pop %v1217
        %v1219 = vsel %vm680, %v1218, 0.0
        %v1220 = vsel %vm693, %v1219, 0.0
        %1221 = vadd.xlane.f32.xlu0 %v1220
        %v1222 = vpop.xlane.xlu0 %1221
        %v1223 = vrot.slane %v1222, 4
        %v1224 = vadd.f32 %v1222, %v1223
        %v1225 = vrot.slane %v1224, 2
        %v1226 = vadd.f32 %v1224, %v1225
        %v1227 = vrot.slane %v1226, 1
        %v1228 = vadd.f32 %v1226, %v1227
        %s1229 = vtos %v1228
        %v1230 = vstv %s1229
        %v1231 = vlog2.pop %v1230
        %v1232 = vmul.f32 %v1231, 0.6931472
        %s1233 = vtos %v1232
        %s1234 = sadd.f32 %s1214, %s1233
        %v1235 = vstv %s1203
        %vm1236 = vcmp.eq.s32.totalorder %v677, %v1235
        %v1237 = vsel %vm1236, %v496, 0.0
        %v1238 = vsel %vm693, %v1237, 0.0
        %1239 = vadd.xlane.f32.xlu0 %v1238
        %v1240 = vpop.xlane.xlu0 %1239
        %v1241 = vrot.slane %v1240, 4
        %v1242 = vadd.f32 %v1240, %v1241
        %v1243 = vrot.slane %v1242, 2
        %v1244 = vadd.f32 %v1242, %v1243
        %v1245 = vrot.slane %v1244, 1
        %v1246 = vadd.f32 %v1244, %v1245
        %s1247 = vtos %v1246
        %s1248 = sld [smem:[#allocation15 + %s1203]]
        %s1249 = ssub.f32 0.0, %s1248
        %s1250 = ssub.f32 %s1247, %s1234
        %s1251 = smul.f32 %s1249, %s1250
        %vm1252 = vcmp.eq.f32.partialorder %v1204, %v1215
        %v1253 = vsel %vm1252, %v677, 128
        %v1254 = vsel %vm693, %v1253, 2147483647
        %v1255 = vand.u32 %v1254, 65535
        %v1256 = vshra.s32 %v1254, 16
        %v1257 = vcvt.s32.f32 %v1255
        %v1258 = vcvt.s32.f32 %v1256
        %1259 = vmin.xlane.f32.xlu0 %v1258
        %v1260 = vpop.xlane.xlu0 %1259
        %vm1261 = vcmp.eq.f32.partialorder %v1258, %v1260
        %v1262 = vsel %vm1261, %v1257, inf
        %1263 = vmin.xlane.f32.xlu0 %v1262
        %v1264 = vpop.xlane.xlu0 %1263
        %v1265 = vcvt.f32.s32 %v1264
        %v1266 = vcvt.f32.s32 %v1260
        %v1267 = vshll.u32 %v1266, 16
        %v1268 = vadd.s32 %v1267, %v1265
        %v1269 = vrot.slane %v1268, 4
        %vm1270 = vcmp.lt.s32.totalorder %v1268, %v1269
        %v1271 = vsel %vm1270, %v1268, %v1269
        %v1272 = vrot.slane %v1271, 2
        %vm1273 = vcmp.lt.s32.totalorder %v1271, %v1272
        %v1274 = vsel %vm1273, %v1271, %v1272
        %v1275 = vrot.slane %v1274, 1
        %vm1276 = vcmp.lt.s32.totalorder %v1274, %v1275
        %v1277 = vsel %vm1276, %v1274, %v1275
        %s1278 = vtos %v1277
        %p1279 = scmp.eq.s32.totalorder %s1278, %s1203
        %s1280 = scalar_select %p1279, 1, 0
        %s1281 = scvt.s32.f32 %s1280
        %v1282 = vsel %vm772, %v496, -1e+30
        %v1283 = vrot.slane %v1282, 4
        %v1284 = vmax.f32 %v1282, %v1283
        %v1285 = vrot.slane %v1284, 2
        %v1286 = vmax.f32 %v1284, %v1285
        %v1287 = vrot.slane %v1286, 1
        %v1288 = vmax.f32 %v1286, %v1287
        %v1289 = vsub.f32 %v1282, %v1288
        %v1290 = vmul.f32 %v1289, 1.442695
        %v1291 = vpow.pop %v1290
        %v1292 = vsel %vm772, %v1291, 0.0
        %v1293 = vrot.slane %v1292, 4
        %v1294 = vadd.f32 %v1292, %v1293
        %v1295 = vrot.slane %v1294, 2
        %v1296 = vadd.f32 %v1294, %v1295
        %v1297 = vrot.slane %v1296, 1
        %v1298 = vadd.f32 %v1296, %v1297
        %v1299 = vlog2.pop %v1298
        %v1300 = vmul.f32 %v1299, 0.6931472
        %v1301 = vadd.f32 %v1288, %v1300
        %s1302 = smul.u32 %s1202, 128
        %s1303 = sld [smem:[#allocation4 + %s1302]]
        %s1304 = sadd.s32 %s1303, 1
        %s1305 = sadd.s32 %s1302, 1
        %s1306 = sld [smem:[#allocation4 + %s1305]]
        %s1307 = sadd.s32 %s1306, 1
        %v1308 = vstv %s1304
        %vm1309 = vcmp.eq.s32.totalorder %v679, %v1308
        %v1310 = vsel %vm1309, 1, 0
        %vm1311 = vcmp.eq.s32.totalorder %v1310, 1
        %vm1312 = vmand %vm1311, %vm804
        %v1313 = vstv %s1307
        %vm1314 = vcmp.eq.s32.totalorder %v679, %v1313
        %v1315 = vsel %vm1314, 1, 0
        %vm1316 = vcmp.eq.s32.totalorder %v1315, 1
        %vm1317 = vmand %vm1316, %vm811
        %vm1318 = vmor %vm1312, %vm1317
        %v1319 = vsel %vm1318, %v496, 0.0
        %1320 = vadd.xlane.f32.xlu0 %v1319
        %v1321 = vpop.xlane.xlu0 %1320
        %v1322 = vrot.slane %v1321, 4
        %v1323 = vadd.f32 %v1321, %v1322
        %v1324 = vrot.slane %v1323, 2
        %v1325 = vadd.f32 %v1323, %v1324
        %v1326 = vrot.slane %v1325, 1
        %v1327 = vadd.f32 %v1325, %v1326
        %s1328 = vtos %v1327
        %v1329 = vsel %vm683, %v1301, 0.0
        %v1330 = vsel %vm693, %v1329, 0.0
        %1331 = vadd.xlane.f32.xlu0 %v1330
        %v1332 = vpop.xlane.xlu0 %1331
        %v1333 = vrot.slane %v1332, 4
        %v1334 = vadd.f32 %v1332, %v1333
        %v1335 = vrot.slane %v1334, 2
        %v1336 = vadd.f32 %v1334, %v1335
        %v1337 = vrot.slane %v1336, 1
        %v1338 = vadd.f32 %v1336, %v1337
        %s1339 = vtos %v1338
        %s1340 = ssub.f32 %s1339, %s1328
        %s1341 = sld [smem:[#allocation5 + %s1202]]
        %v1342 = vstv %s1341
        %vm1343 = vcmp.eq.s32.totalorder %v677, %v1342
        %v1344 = vsel %vm1343, -1.0, %v690
        %v1345 = vsel %vm510, %v1344, -inf
        %1346 = vmax.xlane.f32.xlu0 %v1345
        %v1347 = vpop.xlane.xlu0 %1346
        %v1348 = vrot.slane %v1347, 4
        %v1349 = vmax.f32 %v1347, %v1348
        %v1350 = vrot.slane %v1349, 2
        %v1351 = vmax.f32 %v1349, %v1350
        %v1352 = vrot.slane %v1351, 1
        %v1353 = vmax.f32 %v1351, %v1352
        %s1354 = vtos %v1353
        %v1355 = vrot.slane %v850, 3
        %s1357 = vtos %v1355
        %s1358 = ssub.f32 0.4, %s1357
        %s1359 = sadd.f32 %s1358, %s1354
        %s1360 = smax.f32 %s1359, 0.0
        %s1361 = sadd.f32 %s1251, %s1340
        %s1362 = sadd.f32 %s1361, %s1360
        %v1363 = vstv %s1362
        %v1364 = vsel %vm857, %v1363, 0.0
        %v1365 = vstv %s1281
        %v1366 = vsel %vm860, %v1365, 0.0
        %v1367 = vadd.f32 %v1364, %v1366
        %s1368 = scalar_lea.vmem %s377, 3 [#allocation16]
        %1369 = vst [vmem:[%s1368] sm:$0x1] %v1367
        %s1370 = sand.u32 %s205, 1
        %s1371 = scalar_lea.sflag [#allocation8], %s1370
        %s1372 = sand.u32 %s205, 1
        %s1373 = smul.addr %s1372, 4
        %s1374 = scalar_lea.vmem [#allocation16], %s1373
        // Predicated region
        $region69: #{tpu_custom_call.1} parent=47 // pred_check
          %p1375 = pneg %p215
        $region70: #{tpu_custom_call.1} parent=47 // pred_check_branch
          %1377 = sbr.rel (%p1375) target = $region72
        $region71: #{tpu_custom_call.1} parent=47 // pred_region
          %s1378 = smul.u32 4, %s40
          %s1380 = ssub.s32 64, 64
          %1381 = vsyncadd %s1371, %s1380
          %s1382 = smul.addr %s1378, 16
          %s1383 = scalar_lea.hbm %s10, %s1382
          %s1384 = sshll.u32 %s1374, 4
          %s1385 = int_to_ptr.vmem [resolvable:$true] %s1384
          %1390 = dma.vmem_to_hbm [thread:$0]  %s1385, 64, %s1383, %s1371, 16, 16, 1
        $region72: #{tpu_custom_call.1} parent=47 // pred_fallthru
          _
      $region48: #{tpu_custom_call.1} parent=5 // pred_fallthru
        _
      %p1391 = scmp.le.s32.totalorder 2, %s35
      // Predicated region
      $region73: #{tpu_custom_call.1} parent=5 // pred_check
        %p1392 = pneg %p1391
      $region74: #{tpu_custom_call.1} parent=5 // pred_check_branch
        %1394 = sbr.rel (%p1392) target = $region76
      $region75: #{tpu_custom_call.1} parent=5 // pred_region
        %s1395 = ssub.s32 %s35, 2
        // Predicated region
        $region77: #{tpu_custom_call.1} parent=75 // pred_check
          %p1396 = pneg %p221
        $region78: #{tpu_custom_call.1} parent=75 // pred_check_branch
          %1398 = sbr.rel (%p1396) target = $region80
        $region79: #{tpu_custom_call.1} parent=75 // pred_region
          %s1399 = sand.u32 %s206, 1
          %s1400 = scalar_lea.sflag [#allocation8], %s1399
          %s1401 = sand.u32 %s206, 1
          %s1402 = smul.addr %s1401, 4
          %s1403 = scalar_lea.vmem [#allocation16], %s1402
          %1404 = dma.done %s1400, 64
        $region80: #{tpu_custom_call.1} parent=75 // pred_fallthru
          _
      $region76: #{tpu_custom_call.1} parent=5 // pred_fallthru
        _
    $region6: #{tpu_custom_call.1} parent=1 // loop_footer
      %s39 = sadd.s32 1, %s35
    $region7: #{tpu_custom_call.1} parent=1 // loop_footer_branch
      %34 = sbr.rel target = $region3
    $region8: #{tpu_custom_call.1} parent=1 // loop_exit
      _
    %1405 = vsyncpa [#allocation7], 1
    %s1406 = scalar_lea.sflag [#allocation7], 1
    %1407 = vsyncpa %s1406, 1
    %1408 = vsyncpa [#allocation11], 1
    %1409 = vsyncpa [#allocation14], 1
    %1410 = vsyncpa [#allocation8], 1
    %s1411 = scalar_lea.sflag [#allocation8], 1
    %1412 = vsyncpa %s1411, 1
    %1413 = vsyncpa [#allocation9], 1
    %s1414 = scalar_lea.sflag [#allocation9], 1
    %1415 = vsyncpa %s1414, 1

</llo_original>
